<compile_context>
chip_gen: v6e
topology: v6e:2x2x1
jax: 0.10.0
libtpu: 0.0.40
codegen_flags: <defaults>
</compile_context>

<pallas_src>
import functools

import jax
import jax.numpy as jnp
from jax import lax
from jax.experimental import pallas as pl
from jax.experimental.pallas import tpu as pltpu

PAD_IDX = 0


# ------------------------------ fused forward kernel ------------------------------
def _cnn_lstm_fused_kernel(
    lens_ref, x_ref,
    wc1_ref, bc1_ref, wc2_ref, bc2_ref,
    wif_ref, bf_ref, wib_ref, bb_ref, whh_ref,
    wcls_ref, bcls_ref,
    o_ref,
    gf_ref, gb_ref,
    *, B, T,
):
    f32 = jnp.float32
    bf16 = jnp.bfloat16
    H = whh_ref.shape[0] // 2
    NB = T * B                                   # rows, t-major: r = t*B + b

    def conv_relu(xv, w_ref, b_ref):
        # xv: (T*B, Cin) f32, t-major.  k=3 "same" conv == one MXU matmul
        # against a (3*Cin, Cout) weight: the t-1 / t / t+1 taps are row
        # shifts by B (zero rows at the time boundaries), lane-concatenated so
        # K = 3*Cin stays 128-aligned.  Built entirely in registers — no VMEM
        # zero-fill / store / reload round trip.
        Cin = xv.shape[-1]
        zrow = jnp.zeros((B, Cin), f32)
        prev = jnp.concatenate([zrow, xv[0:NB - B, :]], axis=0)   # x[t-1]
        nxt = jnp.concatenate([xv[B:NB, :], zrow], axis=0)        # x[t+1]
        x3 = jnp.concatenate([prev, xv, nxt], axis=-1).astype(bf16)
        y = jnp.dot(x3, w_ref[...], preferred_element_type=f32) + b_ref[...]
        return jnp.maximum(y, 0.0)                                 # (T*B, Cout) f32

    # ---- conv1 -> ReLU -> conv2 -> ReLU (register resident) ----
    h1 = conv_relu(x_ref[...], wc1_ref, bc1_ref)                   # (T*B, C)
    h2 = conv_relu(h1, wc2_ref, bc2_ref)                           # (T*B, C)

    # ---- LSTM input projections hoisted out of the recurrence (t-major) ----
    h2b = h2.astype(bf16)
    gf_ref[...] = jnp.dot(h2b, wif_ref[...], preferred_element_type=f32) + bf_ref[...]
    gb_ref[...] = jnp.dot(h2b, wib_ref[...], preferred_element_type=f32) + bb_ref[...]

    # ---- per-step length masks precomputed once (packed-sequence semantics) ----
    lens_v = lens_ref[...]                                         # (B, 1) int32
    tcol = lax.broadcasted_iota(jnp.int32, (B, T), 1)
    mf_tab = (tcol < lens_v).astype(f32)                           # fwd step t valid: t < len
    mb_tab = (tcol >= (T - lens_v)).astype(f32)                    # bwd step t (time T-1-t) valid
    m_tab = jnp.concatenate([mf_tab, mb_tab], axis=0)              # (2B, T)

    # block-diagonal selectors for the fused fwd+bwd recurrent matmul
    row = lax.broadcasted_iota(jnp.int32, (2 * B, 1), 0)
    sel_f = (row < B).astype(f32)                                  # rows 0:B
    sel_b = 1.0 - sel_f                                            # rows B:2B

    hc = jnp.zeros((2 * B, H), f32)      # [h_fwd ; h_bwd] stacked on sublanes
    cc = jnp.zeros((2 * B, H), f32)
    acc = jnp.zeros((2 * B, H), f32)     # masked output sums [fwd ; bwd]

    # ---- fused bidirectional recurrence (T static & small -> full unroll) ----
    for t in range(T):
        tb = T - 1 - t
        # contiguous t-major gate reads (static starts)
        g_pre = jnp.concatenate(
            [gf_ref[pl.ds(t * B, B), :], gb_ref[pl.ds(tb * B, B), :]], axis=0)  # (2B, 4H)
        # block-diagonal LHS [hf, 0; 0, hb] -> ONE (2B,2H)@(2H,4H) MXU matmul
        lhs = jnp.concatenate([hc * sel_f, hc * sel_b], axis=-1).astype(bf16)
        g = g_pre + jnp.dot(lhs, whh_ref[...], preferred_element_type=f32)
        i = jax.nn.sigmoid(g[:, 0:H])                # torch gate order i, f, g, o
        f = jax.nn.sigmoid(g[:, H:2 * H])
        gg = jnp.tanh(g[:, 2 * H:3 * H])
        o = jax.nn.sigmoid(g[:, 3 * H:4 * H])
        c_new = f * cc + i * gg
        h_new = o * jnp.tanh(c_new)
        m = m_tab[:, t:t + 1]                        # (2B, 1), static slice
        cc = cc + m * (c_new - cc)                   # hold state where masked
        hc = hc + m * (h_new - hc)                   # (bwd stays 0 until time len-1)
        acc = acc + m * h_new

    # ---- masked mean pool + classifier (single fused matmul) ----
    inv_len = 1.0 / jnp.maximum(lens_v.astype(f32), 1.0)           # guard len == 0
    pooled = jnp.concatenate([acc[0:B, :], acc[B:2 * B, :]], axis=-1) * inv_len  # (B, 2H)
    logits = jnp.dot(pooled.astype(bf16), wcls_ref[...],
                     preferred_element_type=f32) + bcls_ref[...]
    o_ref[...] = logits.astype(o_ref.dtype)


def cnn_lstm_forward(seq_pad, lens, params):
    # Embedding lookup stays as plain-JAX glue (data-dependent gather);
    # everything after it runs as ONE fused Pallas kernel.
    x = jnp.take(params["emb"], seq_pad, axis=0).astype(jnp.float32)   # (B, T, E)
    B, T, E = x.shape
    C = params["w_conv1"].shape[-1]
    H = params["w_hh_f"].shape[0]
    NC = params["w_cls"].shape[1]
    bf16 = jnp.bfloat16

    # t-major 2-D activation layout: row r = t*B + b (contiguous per-step reads).
    x_tm = jnp.transpose(x, (1, 0, 2)).reshape(T * B, E)
    # TODO(synk): lens could ride in SMEM via scalar prefetch instead of a (B,1)
    # VMEM tile; minor at these shapes.
    lens2d = lens.astype(jnp.int32).reshape(B, 1)

    # MXU operands in bf16 (f32 accumulation); in-kernel elementwise stays f32.
    wc1 = params["w_conv1"].reshape(3 * E, C).astype(bf16)     # rows: [tap t-1; t; t+1]
    wc2 = params["w_conv2"].reshape(3 * C, C).astype(bf16)
    wif = params["w_ih_f"].astype(bf16)
    wib = params["w_ih_b"].astype(bf16)
    whh = jnp.concatenate([params["w_hh_f"], params["w_hh_b"]], axis=0).astype(bf16)
    wcls = params["w_cls"].astype(bf16)

    # TODO(synk): for non-toy batch sizes make the batch a real grid axis
    # (grid=(B//Bb,), Bb a multiple of 8) so "parallel" shards onto v7x's second
    # TensorCore, and set vmem_limit_bytes when H/B/T are scaled up (v7x has
    # only 64 MiB VMEM).  At B=2 a single grid step batches everything.
    const2 = lambda i: (0, 0)
    kernel = functools.partial(_cnn_lstm_fused_kernel, B=B, T=T)
    return pl.pallas_call(
        kernel,
        out_shape=jax.ShapeDtypeStruct((B, NC), jnp.float32),
        grid_spec=pltpu.PrefetchScalarGridSpec(
            num_scalar_prefetch=0,
            grid=(1,),
            in_specs=[
                pl.BlockSpec((B, 1), const2),                # lens
                pl.BlockSpec((T * B, E), const2),            # t-major embeddings
                pl.BlockSpec((3 * E, C), const2),            # conv1 weight (K = 3*E)
                pl.BlockSpec((1, C), const2),                # conv1 bias
                pl.BlockSpec((3 * C, C), const2),            # conv2 weight (K = 3*C)
                pl.BlockSpec((1, C), const2),                # conv2 bias
                pl.BlockSpec((C, 4 * H), const2),            # W_ih fwd (bf16)
                pl.BlockSpec((1, 4 * H), const2),            # bias fwd (b_ih + b_hh)
                pl.BlockSpec((C, 4 * H), const2),            # W_ih bwd (bf16)
                pl.BlockSpec((1, 4 * H), const2),            # bias bwd
                pl.BlockSpec((2 * H, 4 * H), const2),        # [W_hh_f; W_hh_b] (bf16)
                pl.BlockSpec((2 * H, NC), const2),           # classifier weight (bf16)
                pl.BlockSpec((1, NC), const2),               # classifier bias
            ],
            out_specs=pl.BlockSpec((B, NC), const2),
            scratch_shapes=[
                pltpu.VMEM((T * B, 4 * H), jnp.float32),     # hoisted fwd gates (t-major)
                pltpu.VMEM((T * B, 4 * H), jnp.float32),     # hoisted bwd gates (t-major)
            ],
        ),
        compiler_params=pltpu.CompilerParams(
            dimension_semantics=("parallel",)),
    )(lens2d, x_tm,
      wc1, params["b_conv1"].reshape(1, C),
      wc2, params["b_conv2"].reshape(1, C),
      wif, params["b_f"], wib, params["b_b"], whh,
      wcls, params["b_cls"])


# ---------------------------------- model params ----------------------------------
def init_params(key, vocab_size, num_classes, emb_dim, conv_dim, lstm_hidden):
    H = lstm_hidden // 2
    ks = jax.random.split(key, 12)

    def rn(k, shape, scale=0.05):
        return jax.random.normal(k, shape, jnp.float32) * scale

    emb = rn(ks[0], (vocab_size, emb_dim))
    emb = emb.at[PAD_IDX].set(0.0)                   # padding_idx=0 row is zero
    params = dict(
        emb=emb,
        # conv weights stored as (K, Cin, Cout) == transpose of torch (Cout, Cin, K)
        w_conv1=rn(ks[1], (3, emb_dim, conv_dim)), b_conv1=rn(ks[2], (conv_dim,)),
        w_conv2=rn(ks[3], (3, conv_dim, conv_dim)), b_conv2=rn(ks[4], (conv_dim,)),
        # LSTM weights stored transposed: (in, 4H) and (H, 4H); bias = b_ih + b_hh
        w_ih_f=rn(ks[5], (conv_dim, 4 * H)), w_hh_f=rn(ks[6], (H, 4 * H)),
        b_f=rn(ks[7], (1, 4 * H)),
        w_ih_b=rn(ks[8], (conv_dim, 4 * H)), w_hh_b=rn(ks[9], (H, 4 * H)),
        b_b=rn(ks[10], (1, 4 * H)),
        w_cls=rn(ks[11], (lstm_hidden, num_classes)),
        b_cls=jnp.zeros((1, num_classes), jnp.float32),
    )
    return params


# --------------------------- pure-JAX reference (checking) ---------------------------
def reference_forward(seq_pad, lens, params):
    x = jnp.take(params["emb"], seq_pad, axis=0)

    def conv(x, w, b):
        xp = jnp.pad(x, ((0, 0), (1, 1), (0, 0)))
        y = (jnp.einsum("btc,cd->btd", xp[:, 0:-2], w[0])
             + jnp.einsum("btc,cd->btd", xp[:, 1:-1], w[1])
             + jnp.einsum("btc,cd->btd", xp[:, 2:], w[2]) + b)
        return jax.nn.relu(y)

    x = conv(x, params["w_conv1"], params["b_conv1"])
    x = conv(x, params["w_conv2"], params["b_conv2"])
    B, T, _ = x.shape
    H = params["w_hh_f"].shape[0]

    def cell(x_t, h, c, wih, whh, bias):
        g = x_t @ wih + h @ whh + bias
        i = jax.nn.sigmoid(g[..., 0:H])
        f = jax.nn.sigmoid(g[..., H:2 * H])
        gg = jnp.tanh(g[..., 2 * H:3 * H])
        o = jax.nn.sigmoid(g[..., 3 * H:4 * H])
        c = f * c + i * gg
        return o * jnp.tanh(c), c

    outs = []
    for b in range(B):
        L = int(lens[b])
        h = c = accf = jnp.zeros((1, H), jnp.float32)
        for t in range(L):
            h, c = cell(x[b, t][None], h, c, params["w_ih_f"], params["w_hh_f"], params["b_f"])
            accf = accf + h
        h = c = accb = jnp.zeros((1, H), jnp.float32)
        for t in range(L - 1, -1, -1):
            h, c = cell(x[b, t][None], h, c, params["w_ih_b"], params["w_hh_b"], params["b_b"])
            accb = accb + h
        pooled = jnp.concatenate([accf, accb], axis=-1) / L
        outs.append(pooled @ params["w_cls"] + params["b_cls"])
    return jnp.concatenate(outs, axis=0)


if __name__ == "__main__":
    vocab_size, num_classes = 32, 8
    emb_dim, conv_dim, lstm_hidden = 128, 128, 256
    B, T = 2, 16

    key = jax.random.PRNGKey(0)
    pk, dk = jax.random.split(key)
    params = init_params(pk, vocab_size, num_classes, emb_dim, conv_dim, lstm_hidden)

    lens = jnp.array([T, 11], dtype=jnp.int32)
    tok = jax.random.randint(dk, (B, T), 1, vocab_size)          # valid tokens are >= 1
    t_idx = jnp.arange(T)[None, :]
    seq_pad = jnp.where(t_idx < lens[:, None], tok, PAD_IDX).astype(jnp.int32)

    out = cnn_lstm_forward(seq_pad, lens, params)
    out = jax.block_until_ready(out)
    assert out.shape == (B, num_classes)
    assert bool(jnp.all(jnp.isfinite(out)))

    ref = reference_forward(seq_pad, lens, params)
    # bf16 MXU operands (f32 accumulation) vs pure-f32 reference -> slightly
    # wider tolerance than the previous all-f32 kernel.
    if not bool(jnp.allclose(out, ref, atol=2e-3, rtol=2e-2)):
        raise AssertionError("Pallas kernel output does not match reference")

    print("KERNEL_OK")
</pallas_src>

<mosaic_0001>
module attributes {stable_mosaic.version = 11 : i64} {
  func.func @_cnn_lstm_fused_kernel(%arg0: i32, %arg1: memref<2x1xi32, #tpu.memory_space<vmem>>, %arg2: memref<32x128xf32, #tpu.memory_space<vmem>>, %arg3: memref<384x128xbf16, #tpu.memory_space<vmem>>, %arg4: memref<1x128xf32, #tpu.memory_space<vmem>>, %arg5: memref<384x128xbf16, #tpu.memory_space<vmem>>, %arg6: memref<1x128xf32, #tpu.memory_space<vmem>>, %arg7: memref<128x512xbf16, #tpu.memory_space<vmem>>, %arg8: memref<1x512xf32, #tpu.memory_space<vmem>>, %arg9: memref<128x512xbf16, #tpu.memory_space<vmem>>, %arg10: memref<1x512xf32, #tpu.memory_space<vmem>>, %arg11: memref<256x512xbf16, #tpu.memory_space<vmem>>, %arg12: memref<256x8xbf16, #tpu.memory_space<vmem>>, %arg13: memref<1x8xf32, #tpu.memory_space<vmem>>, %arg14: memref<2x8xf32, #tpu.memory_space<vmem>>, %arg15: memref<32x512xf32, #tpu.memory_space<vmem>>, %arg16: memref<32x512xf32, #tpu.memory_space<vmem>>) attributes {dimension_semantics = [#tpu.dimension_semantics<parallel>], iteration_bounds = array<i64: 1>, scalar_prefetch = 0 : i64, scratch_operands = 2 : i64, tpu.core_type = #tpu.core_type<tc>, window_params = [{pipeline_mode = #tpu.pipeline_mode<synchronous>, transform_indices = @transform_0, window_bounds = array<i64: 2, 1>}, {pipeline_mode = #tpu.pipeline_mode<synchronous>, transform_indices = @transform_1, window_bounds = array<i64: 32, 128>}, {pipeline_mode = #tpu.pipeline_mode<synchronous>, transform_indices = @transform_2, window_bounds = array<i64: 384, 128>}, {pipeline_mode = #tpu.pipeline_mode<synchronous>, transform_indices = @transform_3, window_bounds = array<i64: 1, 128>}, {pipeline_mode = #tpu.pipeline_mode<synchronous>, transform_indices = @transform_4, window_bounds = array<i64: 384, 128>}, {pipeline_mode = #tpu.pipeline_mode<synchronous>, transform_indices = @transform_5, window_bounds = array<i64: 1, 128>}, {pipeline_mode = #tpu.pipeline_mode<synchronous>, transform_indices = @transform_6, window_bounds = array<i64: 128, 512>}, {pipeline_mode = #tpu.pipeline_mode<synchronous>, transform_indices = @transform_7, window_bounds = array<i64: 1, 512>}, {pipeline_mode = #tpu.pipeline_mode<synchronous>, transform_indices = @transform_8, window_bounds = array<i64: 128, 512>}, {pipeline_mode = #tpu.pipeline_mode<synchronous>, transform_indices = @transform_9, window_bounds = array<i64: 1, 512>}, {pipeline_mode = #tpu.pipeline_mode<synchronous>, transform_indices = @transform_10, window_bounds = array<i64: 256, 512>}, {pipeline_mode = #tpu.pipeline_mode<synchronous>, transform_indices = @transform_11, window_bounds = array<i64: 256, 8>}, {pipeline_mode = #tpu.pipeline_mode<synchronous>, transform_indices = @transform_12, window_bounds = array<i64: 1, 8>}, {pipeline_mode = #tpu.pipeline_mode<synchronous>, transform_indices = @transform_13, window_bounds = array<i64: 2, 8>}]} {
    %c0 = arith.constant 0 : index
    %c0_0 = arith.constant 0 : index
    %0 = vector.load %arg2[%c0, %c0_0] : memref<32x128xf32, #tpu.memory_space<vmem>>, vector<32x128xf32>
    %cst = arith.constant 0.000000e+00 : f32
    %1 = vector.broadcast %cst : f32 to vector<2x128xf32>
    %2 = vector.extract_strided_slice %0 {offsets = [0, 0], sizes = [30, 128], strides = [1, 1]} : vector<32x128xf32> to vector<30x128xf32>
    %3 = tpu.concatenate %1, %2 in 0 : vector<2x128xf32>, vector<30x128xf32> -> vector<32x128xf32>
    %4 = vector.extract_strided_slice %0 {offsets = [2, 0], sizes = [30, 128], strides = [1, 1]} : vector<32x128xf32> to vector<30x128xf32>
    %5 = tpu.concatenate %4, %1 in 0 : vector<30x128xf32>, vector<2x128xf32> -> vector<32x128xf32>
    %6 = tpu.concatenate %3, %0, %5 in 1 : vector<32x128xf32>, vector<32x128xf32>, vector<32x128xf32> -> vector<32x384xf32>
    %7 = arith.truncf %6 : vector<32x384xf32> to vector<32x384xbf16>
    %c0_1 = arith.constant 0 : index
    %c0_2 = arith.constant 0 : index
    %8 = vector.load %arg3[%c0_1, %c0_2] : memref<384x128xbf16, #tpu.memory_space<vmem>>, vector<384x128xbf16>
    %cst_3 = arith.constant dense<0.000000e+00> : vector<32x128xf32>
    %9 = tpu.matmul %7, %8, %cst_3 {dimension_numbers = #tpu.dot_dimension_numbers<[1], [0], [0], [1], [0, 0, 1, 1], [], []>} : vector<32x384xbf16>, vector<384x128xbf16>, vector<32x128xf32> -> vector<32x128xf32>
    %c0_4 = arith.constant 0 : index
    %c0_5 = arith.constant 0 : index
    %10 = vector.load %arg4[%c0_4, %c0_5] : memref<1x128xf32, #tpu.memory_space<vmem>>, vector<1x128xf32>
    %11 = vector.broadcast %10 : vector<1x128xf32> to vector<32x128xf32>
    %12 = arith.addf %9, %11 : vector<32x128xf32>
    %cst_6 = arith.constant 0.000000e+00 : f32
    %13 = vector.broadcast %cst_6 : f32 to vector<32x128xf32>
    %14 = arith.maximumf %12, %13 : vector<32x128xf32>
    %cst_7 = arith.constant 0.000000e+00 : f32
    %15 = vector.broadcast %cst_7 : f32 to vector<2x128xf32>
    %16 = vector.extract_strided_slice %14 {offsets = [0, 0], sizes = [30, 128], strides = [1, 1]} : vector<32x128xf32> to vector<30x128xf32>
    %17 = tpu.concatenate %15, %16 in 0 : vector<2x128xf32>, vector<30x128xf32> -> vector<32x128xf32>
    %18 = vector.extract_strided_slice %14 {offsets = [2, 0], sizes = [30, 128], strides = [1, 1]} : vector<32x128xf32> to vector<30x128xf32>
    %19 = tpu.concatenate %18, %15 in 0 : vector<30x128xf32>, vector<2x128xf32> -> vector<32x128xf32>
    %20 = tpu.concatenate %17, %14, %19 in 1 : vector<32x128xf32>, vector<32x128xf32>, vector<32x128xf32> -> vector<32x384xf32>
    %21 = arith.truncf %20 : vector<32x384xf32> to vector<32x384xbf16>
    %c0_8 = arith.constant 0 : index
    %c0_9 = arith.constant 0 : index
    %22 = vector.load %arg5[%c0_8, %c0_9] : memref<384x128xbf16, #tpu.memory_space<vmem>>, vector<384x128xbf16>
    %cst_10 = arith.constant dense<0.000000e+00> : vector<32x128xf32>
    %23 = tpu.matmul %21, %22, %cst_10 {dimension_numbers = #tpu.dot_dimension_numbers<[1], [0], [0], [1], [0, 0, 1, 1], [], []>} : vector<32x384xbf16>, vector<384x128xbf16>, vector<32x128xf32> -> vector<32x128xf32>
    %c0_11 = arith.constant 0 : index
    %c0_12 = arith.constant 0 : index
    %24 = vector.load %arg6[%c0_11, %c0_12] : memref<1x128xf32, #tpu.memory_space<vmem>>, vector<1x128xf32>
    %25 = vector.broadcast %24 : vector<1x128xf32> to vector<32x128xf32>
    %26 = arith.addf %23, %25 : vector<32x128xf32>
    %cst_13 = arith.constant 0.000000e+00 : f32
    %27 = vector.broadcast %cst_13 : f32 to vector<32x128xf32>
    %28 = arith.maximumf %26, %27 : vector<32x128xf32>
    %29 = arith.truncf %28 : vector<32x128xf32> to vector<32x128xbf16>
    %c0_14 = arith.constant 0 : index
    %c0_15 = arith.constant 0 : index
    %30 = vector.load %arg7[%c0_14, %c0_15] : memref<128x512xbf16, #tpu.memory_space<vmem>>, vector<128x512xbf16>
    %cst_16 = arith.constant dense<0.000000e+00> : vector<32x512xf32>
    %31 = tpu.matmul %29, %30, %cst_16 {dimension_numbers = #tpu.dot_dimension_numbers<[1], [0], [0], [1], [0, 0, 1, 1], [], []>} : vector<32x128xbf16>, vector<128x512xbf16>, vector<32x512xf32> -> vector<32x512xf32>
    %c0_17 = arith.constant 0 : index
    %c0_18 = arith.constant 0 : index
    %32 = vector.load %arg8[%c0_17, %c0_18] : memref<1x512xf32, #tpu.memory_space<vmem>>, vector<1x512xf32>
    %33 = vector.broadcast %32 : vector<1x512xf32> to vector<32x512xf32>
    %34 = arith.addf %31, %33 : vector<32x512xf32>
    %c0_19 = arith.constant 0 : index
    %c0_20 = arith.constant 0 : index
    %35 = vector.load %arg15[%c0_19, %c0_20] : memref<32x512xf32, #tpu.memory_space<vmem>>, vector<32x512xf32>
    tpu.vector_store %arg15[%c0_19, %c0_20], %34 {strides = array<i32>} : memref<32x512xf32, #tpu.memory_space<vmem>>, vector<32x512xf32>,
    %c0_21 = arith.constant 0 : index
    %c0_22 = arith.constant 0 : index
    %36 = vector.load %arg9[%c0_21, %c0_22] : memref<128x512xbf16, #tpu.memory_space<vmem>>, vector<128x512xbf16>
    %cst_23 = arith.constant dense<0.000000e+00> : vector<32x512xf32>
    %37 = tpu.matmul %29, %36, %cst_23 {dimension_numbers = #tpu.dot_dimension_numbers<[1], [0], [0], [1], [0, 0, 1, 1], [], []>} : vector<32x128xbf16>, vector<128x512xbf16>, vector<32x512xf32> -> vector<32x512xf32>
    %c0_24 = arith.constant 0 : index
    %c0_25 = arith.constant 0 : index
    %38 = vector.load %arg10[%c0_24, %c0_25] : memref<1x512xf32, #tpu.memory_space<vmem>>, vector<1x512xf32>
    %39 = vector.broadcast %38 : vector<1x512xf32> to vector<32x512xf32>
    %40 = arith.addf %37, %39 : vector<32x512xf32>
    %c0_26 = arith.constant 0 : index
    %c0_27 = arith.constant 0 : index
    %41 = vector.load %arg16[%c0_26, %c0_27] : memref<32x512xf32, #tpu.memory_space<vmem>>, vector<32x512xf32>
    tpu.vector_store %arg16[%c0_26, %c0_27], %40 {strides = array<i32>} : memref<32x512xf32, #tpu.memory_space<vmem>>, vector<32x512xf32>,
    %c0_28 = arith.constant 0 : index
    %c0_29 = arith.constant 0 : index
    %42 = vector.load %arg1[%c0_28, %c0_29] : memref<2x1xi32, #tpu.memory_space<vmem>>, vector<2x1xi32>
    %43 = tpu.iota {dimensions = array<i32: 1>} : vector<2x16xi32>
    %44 = vector.broadcast %42 : vector<2x1xi32> to vector<2x16xi32>
    %45 = arith.cmpi slt, %43, %44 : vector<2x16xi32>
    %46 = arith.extui %45 : vector<2x16xi1> to vector<2x16xi32>
    %47 = arith.sitofp %46 : vector<2x16xi32> to vector<2x16xf32>
    %c16_i32 = arith.constant 16 : i32
    %48 = vector.broadcast %c16_i32 : i32 to vector<2x1xi32>
    %49 = arith.subi %48, %42 : vector<2x1xi32>
    %50 = vector.broadcast %49 : vector<2x1xi32> to vector<2x16xi32>
    %51 = arith.cmpi sge, %43, %50 : vector<2x16xi32>
    %52 = arith.extui %51 : vector<2x16xi1> to vector<2x16xi32>
    %53 = arith.sitofp %52 : vector<2x16xi32> to vector<2x16xf32>
    %54 = tpu.concatenate %47, %53 in 0 : vector<2x16xf32>, vector<2x16xf32> -> vector<4x16xf32>
    %55 = tpu.iota {dimensions = array<i32: 0>} : vector<4x1xi32>
    %c2_i32 = arith.constant 2 : i32
    %56 = vector.broadcast %c2_i32 : i32 to vector<4x1xi32>
    %57 = arith.cmpi slt, %55, %56 : vector<4x1xi32>
    %58 = arith.extui %57 : vector<4x1xi1> to vector<4x1xi32>
    %59 = arith.sitofp %58 : vector<4x1xi32> to vector<4x1xf32>
    %cst_30 = arith.constant 1.000000e+00 : f32
    %60 = vector.broadcast %cst_30 : f32 to vector<4x1xf32>
    %61 = arith.subf %60, %59 : vector<4x1xf32>
    %cst_31 = arith.constant 0.000000e+00 : f32
    %62 = vector.broadcast %cst_31 : f32 to vector<4x128xf32>
    %cst_32 = arith.constant 0.000000e+00 : f32
    %63 = vector.broadcast %cst_32 : f32 to vector<4x128xf32>
    %cst_33 = arith.constant 0.000000e+00 : f32
    %64 = vector.broadcast %cst_33 : f32 to vector<4x128xf32>
    %c0_34 = arith.constant 0 : index
    %c0_35 = arith.constant 0 : index
    %65 = vector.load %arg15[%c0_34, %c0_35] : memref<32x512xf32, #tpu.memory_space<vmem>>, vector<2x512xf32>
    %c30 = arith.constant 30 : index
    %c0_36 = arith.constant 0 : index
    %66 = vector.load %arg16[%c30, %c0_36] : memref<32x512xf32, #tpu.memory_space<vmem>>, vector<2x512xf32>
    %67 = tpu.concatenate %65, %66 in 0 : vector<2x512xf32>, vector<2x512xf32> -> vector<4x512xf32>
    %68 = vector.broadcast %59 : vector<4x1xf32> to vector<4x128xf32>
    %69 = arith.mulf %62, %68 : vector<4x128xf32>
    %70 = vector.broadcast %61 : vector<4x1xf32> to vector<4x128xf32>
    %71 = arith.mulf %62, %70 : vector<4x128xf32>
    %72 = tpu.concatenate %69, %71 in 1 : vector<4x128xf32>, vector<4x128xf32> -> vector<4x256xf32>
    %73 = arith.truncf %72 : vector<4x256xf32> to vector<4x256xbf16>
    %c0_37 = arith.constant 0 : index
    %c0_38 = arith.constant 0 : index
    %74 = vector.load %arg11[%c0_37, %c0_38] : memref<256x512xbf16, #tpu.memory_space<vmem>>, vector<256x512xbf16>
    %cst_39 = arith.constant dense<0.000000e+00> : vector<4x512xf32>
    %75 = tpu.matmul %73, %74, %cst_39 {dimension_numbers = #tpu.dot_dimension_numbers<[1], [0], [0], [1], [0, 0, 1, 1], [], []>} : vector<4x256xbf16>, vector<256x512xbf16>, vector<4x512xf32> -> vector<4x512xf32>
    %76 = arith.addf %67, %75 : vector<4x512xf32>
    %77 = vector.extract_strided_slice %76 {offsets = [0, 0], sizes = [4, 128], strides = [1, 1]} : vector<4x512xf32> to vector<4x128xf32>
    %78 = arith.negf %77 : vector<4x128xf32>
    %79 = math.exp %78 : vector<4x128xf32>
    %cst_40 = arith.constant 1.000000e+00 : f32
    %80 = vector.broadcast %cst_40 : f32 to vector<4x128xf32>
    %81 = arith.addf %80, %79 : vector<4x128xf32>
    %82 = arith.divf %80, %81 : vector<4x128xf32>
    %83 = vector.extract_strided_slice %76 {offsets = [0, 128], sizes = [4, 128], strides = [1, 1]} : vector<4x512xf32> to vector<4x128xf32>
    %84 = arith.negf %83 : vector<4x128xf32>
    %85 = math.exp %84 : vector<4x128xf32>
    %cst_41 = arith.constant 1.000000e+00 : f32
    %86 = vector.broadcast %cst_41 : f32 to vector<4x128xf32>
    %87 = arith.addf %86, %85 : vector<4x128xf32>
    %88 = arith.divf %86, %87 : vector<4x128xf32>
    %89 = vector.extract_strided_slice %76 {offsets = [0, 256], sizes = [4, 128], strides = [1, 1]} : vector<4x512xf32> to vector<4x128xf32>
    %90 = math.tanh %89 : vector<4x128xf32>
    %91 = vector.extract_strided_slice %76 {offsets = [0, 384], sizes = [4, 128], strides = [1, 1]} : vector<4x512xf32> to vector<4x128xf32>
    %92 = arith.negf %91 : vector<4x128xf32>
    %93 = math.exp %92 : vector<4x128xf32>
    %cst_42 = arith.constant 1.000000e+00 : f32
    %94 = vector.broadcast %cst_42 : f32 to vector<4x128xf32>
    %95 = arith.addf %94, %93 : vector<4x128xf32>
    %96 = arith.divf %94, %95 : vector<4x128xf32>
    %97 = arith.mulf %88, %63 : vector<4x128xf32>
    %98 = arith.mulf %82, %90 : vector<4x128xf32>
    %99 = arith.addf %97, %98 : vector<4x128xf32>
    %100 = math.tanh %99 : vector<4x128xf32>
    %101 = arith.mulf %96, %100 : vector<4x128xf32>
    %102 = vector.extract_strided_slice %54 {offsets = [0, 0], sizes = [4, 1], strides = [1, 1]} : vector<4x16xf32> to vector<4x1xf32>
    %103 = arith.subf %99, %63 : vector<4x128xf32>
    %104 = vector.broadcast %102 : vector<4x1xf32> to vector<4x128xf32>
    %105 = arith.mulf %104, %103 : vector<4x128xf32>
    %106 = arith.addf %63, %105 : vector<4x128xf32>
    %107 = arith.subf %101, %62 : vector<4x128xf32>
    %108 = vector.broadcast %102 : vector<4x1xf32> to vector<4x128xf32>
    %109 = arith.mulf %108, %107 : vector<4x128xf32>
    %110 = arith.addf %62, %109 : vector<4x128xf32>
    %111 = vector.broadcast %102 : vector<4x1xf32> to vector<4x128xf32>
    %112 = arith.mulf %111, %101 : vector<4x128xf32>
    %113 = arith.addf %64, %112 : vector<4x128xf32>
    %c2 = arith.constant 2 : index
    %c0_43 = arith.constant 0 : index
    %114 = vector.load %arg15[%c2, %c0_43] : memref<32x512xf32, #tpu.memory_space<vmem>>, vector<2x512xf32>
    %c28 = arith.constant 28 : index
    %c0_44 = arith.constant 0 : index
    %115 = vector.load %arg16[%c28, %c0_44] : memref<32x512xf32, #tpu.memory_space<vmem>>, vector<2x512xf32>
    %116 = tpu.concatenate %114, %115 in 0 : vector<2x512xf32>, vector<2x512xf32> -> vector<4x512xf32>
    %117 = vector.broadcast %59 : vector<4x1xf32> to vector<4x128xf32>
    %118 = arith.mulf %110, %117 : vector<4x128xf32>
    %119 = vector.broadcast %61 : vector<4x1xf32> to vector<4x128xf32>
    %120 = arith.mulf %110, %119 : vector<4x128xf32>
    %121 = tpu.concatenate %118, %120 in 1 : vector<4x128xf32>, vector<4x128xf32> -> vector<4x256xf32>
    %122 = arith.truncf %121 : vector<4x256xf32> to vector<4x256xbf16>
    %c0_45 = arith.constant 0 : index
    %c0_46 = arith.constant 0 : index
    %123 = vector.load %arg11[%c0_45, %c0_46] : memref<256x512xbf16, #tpu.memory_space<vmem>>, vector<256x512xbf16>
    %cst_47 = arith.constant dense<0.000000e+00> : vector<4x512xf32>
    %124 = tpu.matmul %122, %123, %cst_47 {dimension_numbers = #tpu.dot_dimension_numbers<[1], [0], [0], [1], [0, 0, 1, 1], [], []>} : vector<4x256xbf16>, vector<256x512xbf16>, vector<4x512xf32> -> vector<4x512xf32>
    %125 = arith.addf %116, %124 : vector<4x512xf32>
    %126 = vector.extract_strided_slice %125 {offsets = [0, 0], sizes = [4, 128], strides = [1, 1]} : vector<4x512xf32> to vector<4x128xf32>
    %127 = arith.negf %126 : vector<4x128xf32>
    %128 = math.exp %127 : vector<4x128xf32>
    %cst_48 = arith.constant 1.000000e+00 : f32
    %129 = vector.broadcast %cst_48 : f32 to vector<4x128xf32>
    %130 = arith.addf %129, %128 : vector<4x128xf32>
    %131 = arith.divf %129, %130 : vector<4x128xf32>
    %132 = vector.extract_strided_slice %125 {offsets = [0, 128], sizes = [4, 128], strides = [1, 1]} : vector<4x512xf32> to vector<4x128xf32>
    %133 = arith.negf %132 : vector<4x128xf32>
    %134 = math.exp %133 : vector<4x128xf32>
    %cst_49 = arith.constant 1.000000e+00 : f32
    %135 = vector.broadcast %cst_49 : f32 to vector<4x128xf32>
    %136 = arith.addf %135, %134 : vector<4x128xf32>
    %137 = arith.divf %135, %136 : vector<4x128xf32>
    %138 = vector.extract_strided_slice %125 {offsets = [0, 256], sizes = [4, 128], strides = [1, 1]} : vector<4x512xf32> to vector<4x128xf32>
    %139 = math.tanh %138 : vector<4x128xf32>
    %140 = vector.extract_strided_slice %125 {offsets = [0, 384], sizes = [4, 128], strides = [1, 1]} : vector<4x512xf32> to vector<4x128xf32>
    %141 = arith.negf %140 : vector<4x128xf32>
    %142 = math.exp %141 : vector<4x128xf32>
    %cst_50 = arith.constant 1.000000e+00 : f32
    %143 = vector.broadcast %cst_50 : f32 to vector<4x128xf32>
    %144 = arith.addf %143, %142 : vector<4x128xf32>
    %145 = arith.divf %143, %144 : vector<4x128xf32>
    %146 = arith.mulf %137, %106 : vector<4x128xf32>
    %147 = arith.mulf %131, %139 : vector<4x128xf32>
    %148 = arith.addf %146, %147 : vector<4x128xf32>
    %149 = math.tanh %148 : vector<4x128xf32>
    %150 = arith.mulf %145, %149 : vector<4x128xf32>
    %151 = vector.extract_strided_slice %54 {offsets = [0, 1], sizes = [4, 1], strides = [1, 1]} : vector<4x16xf32> to vector<4x1xf32>
    %152 = arith.subf %148, %106 : vector<4x128xf32>
    %153 = vector.broadcast %151 : vector<4x1xf32> to vector<4x128xf32>
    %154 = arith.mulf %153, %152 : vector<4x128xf32>
    %155 = arith.addf %106, %154 : vector<4x128xf32>
    %156 = arith.subf %150, %110 : vector<4x128xf32>
    %157 = vector.broadcast %151 : vector<4x1xf32> to vector<4x128xf32>
    %158 = arith.mulf %157, %156 : vector<4x128xf32>
    %159 = arith.addf %110, %158 : vector<4x128xf32>
    %160 = vector.broadcast %151 : vector<4x1xf32> to vector<4x128xf32>
    %161 = arith.mulf %160, %150 : vector<4x128xf32>
    %162 = arith.addf %113, %161 : vector<4x128xf32>
    %c4 = arith.constant 4 : index
    %c0_51 = arith.constant 0 : index
    %163 = vector.load %arg15[%c4, %c0_51] : memref<32x512xf32, #tpu.memory_space<vmem>>, vector<2x512xf32>
    %c26 = arith.constant 26 : index
    %c0_52 = arith.constant 0 : index
    %164 = vector.load %arg16[%c26, %c0_52] : memref<32x512xf32, #tpu.memory_space<vmem>>, vector<2x512xf32>
    %165 = tpu.concatenate %163, %164 in 0 : vector<2x512xf32>, vector<2x512xf32> -> vector<4x512xf32>
    %166 = vector.broadcast %59 : vector<4x1xf32> to vector<4x128xf32>
    %167 = arith.mulf %159, %166 : vector<4x128xf32>
    %168 = vector.broadcast %61 : vector<4x1xf32> to vector<4x128xf32>
    %169 = arith.mulf %159, %168 : vector<4x128xf32>
    %170 = tpu.concatenate %167, %169 in 1 : vector<4x128xf32>, vector<4x128xf32> -> vector<4x256xf32>
    %171 = arith.truncf %170 : vector<4x256xf32> to vector<4x256xbf16>
    %c0_53 = arith.constant 0 : index
    %c0_54 = arith.constant 0 : index
    %172 = vector.load %arg11[%c0_53, %c0_54] : memref<256x512xbf16, #tpu.memory_space<vmem>>, vector<256x512xbf16>
    %cst_55 = arith.constant dense<0.000000e+00> : vector<4x512xf32>
    %173 = tpu.matmul %171, %172, %cst_55 {dimension_numbers = #tpu.dot_dimension_numbers<[1], [0], [0], [1], [0, 0, 1, 1], [], []>} : vector<4x256xbf16>, vector<256x512xbf16>, vector<4x512xf32> -> vector<4x512xf32>
    %174 = arith.addf %165, %173 : vector<4x512xf32>
    %175 = vector.extract_strided_slice %174 {offsets = [0, 0], sizes = [4, 128], strides = [1, 1]} : vector<4x512xf32> to vector<4x128xf32>
    %176 = arith.negf %175 : vector<4x128xf32>
    %177 = math.exp %176 : vector<4x128xf32>
    %cst_56 = arith.constant 1.000000e+00 : f32
    %178 = vector.broadcast %cst_56 : f32 to vector<4x128xf32>
    %179 = arith.addf %178, %177 : vector<4x128xf32>
    %180 = arith.divf %178, %179 : vector<4x128xf32>
    %181 = vector.extract_strided_slice %174 {offsets = [0, 128], sizes = [4, 128], strides = [1, 1]} : vector<4x512xf32> to vector<4x128xf32>
    %182 = arith.negf %181 : vector<4x128xf32>
    %183 = math.exp %182 : vector<4x128xf32>
    %cst_57 = arith.constant 1.000000e+00 : f32
    %184 = vector.broadcast %cst_57 : f32 to vector<4x128xf32>
    %185 = arith.addf %184, %183 : vector<4x128xf32>
    %186 = arith.divf %184, %185 : vector<4x128xf32>
    %187 = vector.extract_strided_slice %174 {offsets = [0, 256], sizes = [4, 128], strides = [1, 1]} : vector<4x512xf32> to vector<4x128xf32>
    %188 = math.tanh %187 : vector<4x128xf32>
    %189 = vector.extract_strided_slice %174 {offsets = [0, 384], sizes = [4, 128], strides = [1, 1]} : vector<4x512xf32> to vector<4x128xf32>
    %190 = arith.negf %189 : vector<4x128xf32>
    %191 = math.exp %190 : vector<4x128xf32>
    %cst_58 = arith.constant 1.000000e+00 : f32
    %192 = vector.broadcast %cst_58 : f32 to vector<4x128xf32>
    %193 = arith.addf %192, %191 : vector<4x128xf32>
    %194 = arith.divf %192, %193 : vector<4x128xf32>
    %195 = arith.mulf %186, %155 : vector<4x128xf32>
    %196 = arith.mulf %180, %188 : vector<4x128xf32>
    %197 = arith.addf %195, %196 : vector<4x128xf32>
    %198 = math.tanh %197 : vector<4x128xf32>
    %199 = arith.mulf %194, %198 : vector<4x128xf32>
    %200 = vector.extract_strided_slice %54 {offsets = [0, 2], sizes = [4, 1], strides = [1, 1]} : vector<4x16xf32> to vector<4x1xf32>
    %201 = arith.subf %197, %155 : vector<4x128xf32>
    %202 = vector.broadcast %200 : vector<4x1xf32> to vector<4x128xf32>
    %203 = arith.mulf %202, %201 : vector<4x128xf32>
    %204 = arith.addf %155, %203 : vector<4x128xf32>
    %205 = arith.subf %199, %159 : vector<4x128xf32>
    %206 = vector.broadcast %200 : vector<4x1xf32> to vector<4x128xf32>
    %207 = arith.mulf %206, %205 : vector<4x128xf32>
    %208 = arith.addf %159, %207 : vector<4x128xf32>
    %209 = vector.broadcast %200 : vector<4x1xf32> to vector<4x128xf32>
    %210 = arith.mulf %209, %199 : vector<4x128xf32>
    %211 = arith.addf %162, %210 : vector<4x128xf32>
    %c6 = arith.constant 6 : index
    %c0_59 = arith.constant 0 : index
    %212 = vector.load %arg15[%c6, %c0_59] : memref<32x512xf32, #tpu.memory_space<vmem>>, vector<2x512xf32>
    %c24 = arith.constant 24 : index
    %c0_60 = arith.constant 0 : index
    %213 = vector.load %arg16[%c24, %c0_60] : memref<32x512xf32, #tpu.memory_space<vmem>>, vector<2x512xf32>
    %214 = tpu.concatenate %212, %213 in 0 : vector<2x512xf32>, vector<2x512xf32> -> vector<4x512xf32>
    %215 = vector.broadcast %59 : vector<4x1xf32> to vector<4x128xf32>
    %216 = arith.mulf %208, %215 : vector<4x128xf32>
    %217 = vector.broadcast %61 : vector<4x1xf32> to vector<4x128xf32>
    %218 = arith.mulf %208, %217 : vector<4x128xf32>
    %219 = tpu.concatenate %216, %218 in 1 : vector<4x128xf32>, vector<4x128xf32> -> vector<4x256xf32>
    %220 = arith.truncf %219 : vector<4x256xf32> to vector<4x256xbf16>
    %c0_61 = arith.constant 0 : index
    %c0_62 = arith.constant 0 : index
    %221 = vector.load %arg11[%c0_61, %c0_62] : memref<256x512xbf16, #tpu.memory_space<vmem>>, vector<256x512xbf16>
    %cst_63 = arith.constant dense<0.000000e+00> : vector<4x512xf32>
    %222 = tpu.matmul %220, %221, %cst_63 {dimension_numbers = #tpu.dot_dimension_numbers<[1], [0], [0], [1], [0, 0, 1, 1], [], []>} : vector<4x256xbf16>, vector<256x512xbf16>, vector<4x512xf32> -> vector<4x512xf32>
    %223 = arith.addf %214, %222 : vector<4x512xf32>
    %224 = vector.extract_strided_slice %223 {offsets = [0, 0], sizes = [4, 128], strides = [1, 1]} : vector<4x512xf32> to vector<4x128xf32>
    %225 = arith.negf %224 : vector<4x128xf32>
    %226 = math.exp %225 : vector<4x128xf32>
    %cst_64 = arith.constant 1.000000e+00 : f32
    %227 = vector.broadcast %cst_64 : f32 to vector<4x128xf32>
    %228 = arith.addf %227, %226 : vector<4x128xf32>
    %229 = arith.divf %227, %228 : vector<4x128xf32>
    %230 = vector.extract_strided_slice %223 {offsets = [0, 128], sizes = [4, 128], strides = [1, 1]} : vector<4x512xf32> to vector<4x128xf32>
    %231 = arith.negf %230 : vector<4x128xf32>
    %232 = math.exp %231 : vector<4x128xf32>
    %cst_65 = arith.constant 1.000000e+00 : f32
    %233 = vector.broadcast %cst_65 : f32 to vector<4x128xf32>
    %234 = arith.addf %233, %232 : vector<4x128xf32>
    %235 = arith.divf %233, %234 : vector<4x128xf32>
    %236 = vector.extract_strided_slice %223 {offsets = [0, 256], sizes = [4, 128], strides = [1, 1]} : vector<4x512xf32> to vector<4x128xf32>
    %237 = math.tanh %236 : vector<4x128xf32>
    %238 = vector.extract_strided_slice %223 {offsets = [0, 384], sizes = [4, 128], strides = [1, 1]} : vector<4x512xf32> to vector<4x128xf32>
    %239 = arith.negf %238 : vector<4x128xf32>
    %240 = math.exp %239 : vector<4x128xf32>
    %cst_66 = arith.constant 1.000000e+00 : f32
    %241 = vector.broadcast %cst_66 : f32 to vector<4x128xf32>
    %242 = arith.addf %241, %240 : vector<4x128xf32>
    %243 = arith.divf %241, %242 : vector<4x128xf32>
    %244 = arith.mulf %235, %204 : vector<4x128xf32>
    %245 = arith.mulf %229, %237 : vector<4x128xf32>
    %246 = arith.addf %244, %245 : vector<4x128xf32>
    %247 = math.tanh %246 : vector<4x128xf32>
    %248 = arith.mulf %243, %247 : vector<4x128xf32>
    %249 = vector.extract_strided_slice %54 {offsets = [0, 3], sizes = [4, 1], strides = [1, 1]} : vector<4x16xf32> to vector<4x1xf32>
    %250 = arith.subf %246, %204 : vector<4x128xf32>
    %251 = vector.broadcast %249 : vector<4x1xf32> to vector<4x128xf32>
    %252 = arith.mulf %251, %250 : vector<4x128xf32>
    %253 = arith.addf %204, %252 : vector<4x128xf32>
    %254 = arith.subf %248, %208 : vector<4x128xf32>
    %255 = vector.broadcast %249 : vector<4x1xf32> to vector<4x128xf32>
    %256 = arith.mulf %255, %254 : vector<4x128xf32>
    %257 = arith.addf %208, %256 : vector<4x128xf32>
    %258 = vector.broadcast %249 : vector<4x1xf32> to vector<4x128xf32>
    %259 = arith.mulf %258, %248 : vector<4x128xf32>
    %260 = arith.addf %211, %259 : vector<4x128xf32>
    %c8 = arith.constant 8 : index
    %c0_67 = arith.constant 0 : index
    %261 = vector.load %arg15[%c8, %c0_67] : memref<32x512xf32, #tpu.memory_space<vmem>>, vector<2x512xf32>
    %c22 = arith.constant 22 : index
    %c0_68 = arith.constant 0 : index
    %262 = vector.load %arg16[%c22, %c0_68] : memref<32x512xf32, #tpu.memory_space<vmem>>, vector<2x512xf32>
    %263 = tpu.concatenate %261, %262 in 0 : vector<2x512xf32>, vector<2x512xf32> -> vector<4x512xf32>
    %264 = vector.broadcast %59 : vector<4x1xf32> to vector<4x128xf32>
    %265 = arith.mulf %257, %264 : vector<4x128xf32>
    %266 = vector.broadcast %61 : vector<4x1xf32> to vector<4x128xf32>
    %267 = arith.mulf %257, %266 : vector<4x128xf32>
    %268 = tpu.concatenate %265, %267 in 1 : vector<4x128xf32>, vector<4x128xf32> -> vector<4x256xf32>
    %269 = arith.truncf %268 : vector<4x256xf32> to vector<4x256xbf16>
    %c0_69 = arith.constant 0 : index
    %c0_70 = arith.constant 0 : index
    %270 = vector.load %arg11[%c0_69, %c0_70] : memref<256x512xbf16, #tpu.memory_space<vmem>>, vector<256x512xbf16>
    %cst_71 = arith.constant dense<0.000000e+00> : vector<4x512xf32>
    %271 = tpu.matmul %269, %270, %cst_71 {dimension_numbers = #tpu.dot_dimension_numbers<[1], [0], [0], [1], [0, 0, 1, 1], [], []>} : vector<4x256xbf16>, vector<256x512xbf16>, vector<4x512xf32> -> vector<4x512xf32>
    %272 = arith.addf %263, %271 : vector<4x512xf32>
    %273 = vector.extract_strided_slice %272 {offsets = [0, 0], sizes = [4, 128], strides = [1, 1]} : vector<4x512xf32> to vector<4x128xf32>
    %274 = arith.negf %273 : vector<4x128xf32>
    %275 = math.exp %274 : vector<4x128xf32>
    %cst_72 = arith.constant 1.000000e+00 : f32
    %276 = vector.broadcast %cst_72 : f32 to vector<4x128xf32>
    %277 = arith.addf %276, %275 : vector<4x128xf32>
    %278 = arith.divf %276, %277 : vector<4x128xf32>
    %279 = vector.extract_strided_slice %272 {offsets = [0, 128], sizes = [4, 128], strides = [1, 1]} : vector<4x512xf32> to vector<4x128xf32>
    %280 = arith.negf %279 : vector<4x128xf32>
    %281 = math.exp %280 : vector<4x128xf32>
    %cst_73 = arith.constant 1.000000e+00 : f32
    %282 = vector.broadcast %cst_73 : f32 to vector<4x128xf32>
    %283 = arith.addf %282, %281 : vector<4x128xf32>
    %284 = arith.divf %282, %283 : vector<4x128xf32>
    %285 = vector.extract_strided_slice %272 {offsets = [0, 256], sizes = [4, 128], strides = [1, 1]} : vector<4x512xf32> to vector<4x128xf32>
    %286 = math.tanh %285 : vector<4x128xf32>
    %287 = vector.extract_strided_slice %272 {offsets = [0, 384], sizes = [4, 128], strides = [1, 1]} : vector<4x512xf32> to vector<4x128xf32>
    %288 = arith.negf %287 : vector<4x128xf32>
    %289 = math.exp %288 : vector<4x128xf32>
    %cst_74 = arith.constant 1.000000e+00 : f32
    %290 = vector.broadcast %cst_74 : f32 to vector<4x128xf32>
    %291 = arith.addf %290, %289 : vector<4x128xf32>
    %292 = arith.divf %290, %291 : vector<4x128xf32>
    %293 = arith.mulf %284, %253 : vector<4x128xf32>
    %294 = arith.mulf %278, %286 : vector<4x128xf32>
    %295 = arith.addf %293, %294 : vector<4x128xf32>
    %296 = math.tanh %295 : vector<4x128xf32>
    %297 = arith.mulf %292, %296 : vector<4x128xf32>
    %298 = vector.extract_strided_slice %54 {offsets = [0, 4], sizes = [4, 1], strides = [1, 1]} : vector<4x16xf32> to vector<4x1xf32>
    %299 = arith.subf %295, %253 : vector<4x128xf32>
    %300 = vector.broadcast %298 : vector<4x1xf32> to vector<4x128xf32>
    %301 = arith.mulf %300, %299 : vector<4x128xf32>
    %302 = arith.addf %253, %301 : vector<4x128xf32>
    %303 = arith.subf %297, %257 : vector<4x128xf32>
    %304 = vector.broadcast %298 : vector<4x1xf32> to vector<4x128xf32>
    %305 = arith.mulf %304, %303 : vector<4x128xf32>
    %306 = arith.addf %257, %305 : vector<4x128xf32>
    %307 = vector.broadcast %298 : vector<4x1xf32> to vector<4x128xf32>
    %308 = arith.mulf %307, %297 : vector<4x128xf32>
    %309 = arith.addf %260, %308 : vector<4x128xf32>
    %c10 = arith.constant 10 : index
    %c0_75 = arith.constant 0 : index
    %310 = vector.load %arg15[%c10, %c0_75] : memref<32x512xf32, #tpu.memory_space<vmem>>, vector<2x512xf32>
    %c20 = arith.constant 20 : index
    %c0_76 = arith.constant 0 : index
    %311 = vector.load %arg16[%c20, %c0_76] : memref<32x512xf32, #tpu.memory_space<vmem>>, vector<2x512xf32>
    %312 = tpu.concatenate %310, %311 in 0 : vector<2x512xf32>, vector<2x512xf32> -> vector<4x512xf32>
    %313 = vector.broadcast %59 : vector<4x1xf32> to vector<4x128xf32>
    %314 = arith.mulf %306, %313 : vector<4x128xf32>
    %315 = vector.broadcast %61 : vector<4x1xf32> to vector<4x128xf32>
    %316 = arith.mulf %306, %315 : vector<4x128xf32>
    %317 = tpu.concatenate %314, %316 in 1 : vector<4x128xf32>, vector<4x128xf32> -> vector<4x256xf32>
    %318 = arith.truncf %317 : vector<4x256xf32> to vector<4x256xbf16>
    %c0_77 = arith.constant 0 : index
    %c0_78 = arith.constant 0 : index
    %319 = vector.load %arg11[%c0_77, %c0_78] : memref<256x512xbf16, #tpu.memory_space<vmem>>, vector<256x512xbf16>
    %cst_79 = arith.constant dense<0.000000e+00> : vector<4x512xf32>
    %320 = tpu.matmul %318, %319, %cst_79 {dimension_numbers = #tpu.dot_dimension_numbers<[1], [0], [0], [1], [0, 0, 1, 1], [], []>} : vector<4x256xbf16>, vector<256x512xbf16>, vector<4x512xf32> -> vector<4x512xf32>
    %321 = arith.addf %312, %320 : vector<4x512xf32>
    %322 = vector.extract_strided_slice %321 {offsets = [0, 0], sizes = [4, 128], strides = [1, 1]} : vector<4x512xf32> to vector<4x128xf32>
    %323 = arith.negf %322 : vector<4x128xf32>
    %324 = math.exp %323 : vector<4x128xf32>
    %cst_80 = arith.constant 1.000000e+00 : f32
    %325 = vector.broadcast %cst_80 : f32 to vector<4x128xf32>
    %326 = arith.addf %325, %324 : vector<4x128xf32>
    %327 = arith.divf %325, %326 : vector<4x128xf32>
    %328 = vector.extract_strided_slice %321 {offsets = [0, 128], sizes = [4, 128], strides = [1, 1]} : vector<4x512xf32> to vector<4x128xf32>
    %329 = arith.negf %328 : vector<4x128xf32>
    %330 = math.exp %329 : vector<4x128xf32>
    %cst_81 = arith.constant 1.000000e+00 : f32
    %331 = vector.broadcast %cst_81 : f32 to vector<4x128xf32>
    %332 = arith.addf %331, %330 : vector<4x128xf32>
    %333 = arith.divf %331, %332 : vector<4x128xf32>
    %334 = vector.extract_strided_slice %321 {offsets = [0, 256], sizes = [4, 128], strides = [1, 1]} : vector<4x512xf32> to vector<4x128xf32>
    %335 = math.tanh %334 : vector<4x128xf32>
    %336 = vector.extract_strided_slice %321 {offsets = [0, 384], sizes = [4, 128], strides = [1, 1]} : vector<4x512xf32> to vector<4x128xf32>
    %337 = arith.negf %336 : vector<4x128xf32>
    %338 = math.exp %337 : vector<4x128xf32>
    %cst_82 = arith.constant 1.000000e+00 : f32
    %339 = vector.broadcast %cst_82 : f32 to vector<4x128xf32>
    %340 = arith.addf %339, %338 : vector<4x128xf32>
    %341 = arith.divf %339, %340 : vector<4x128xf32>
    %342 = arith.mulf %333, %302 : vector<4x128xf32>
    %343 = arith.mulf %327, %335 : vector<4x128xf32>
    %344 = arith.addf %342, %343 : vector<4x128xf32>
    %345 = math.tanh %344 : vector<4x128xf32>
    %346 = arith.mulf %341, %345 : vector<4x128xf32>
    %347 = vector.extract_strided_slice %54 {offsets = [0, 5], sizes = [4, 1], strides = [1, 1]} : vector<4x16xf32> to vector<4x1xf32>
    %348 = arith.subf %344, %302 : vector<4x128xf32>
    %349 = vector.broadcast %347 : vector<4x1xf32> to vector<4x128xf32>
    %350 = arith.mulf %349, %348 : vector<4x128xf32>
    %351 = arith.addf %302, %350 : vector<4x128xf32>
    %352 = arith.subf %346, %306 : vector<4x128xf32>
    %353 = vector.broadcast %347 : vector<4x1xf32> to vector<4x128xf32>
    %354 = arith.mulf %353, %352 : vector<4x128xf32>
    %355 = arith.addf %306, %354 : vector<4x128xf32>
    %356 = vector.broadcast %347 : vector<4x1xf32> to vector<4x128xf32>
    %357 = arith.mulf %356, %346 : vector<4x128xf32>
    %358 = arith.addf %309, %357 : vector<4x128xf32>
    %c12 = arith.constant 12 : index
    %c0_83 = arith.constant 0 : index
    %359 = vector.load %arg15[%c12, %c0_83] : memref<32x512xf32, #tpu.memory_space<vmem>>, vector<2x512xf32>
    %c18 = arith.constant 18 : index
    %c0_84 = arith.constant 0 : index
    %360 = vector.load %arg16[%c18, %c0_84] : memref<32x512xf32, #tpu.memory_space<vmem>>, vector<2x512xf32>
    %361 = tpu.concatenate %359, %360 in 0 : vector<2x512xf32>, vector<2x512xf32> -> vector<4x512xf32>
    %362 = vector.broadcast %59 : vector<4x1xf32> to vector<4x128xf32>
    %363 = arith.mulf %355, %362 : vector<4x128xf32>
    %364 = vector.broadcast %61 : vector<4x1xf32> to vector<4x128xf32>
    %365 = arith.mulf %355, %364 : vector<4x128xf32>
    %366 = tpu.concatenate %363, %365 in 1 : vector<4x128xf32>, vector<4x128xf32> -> vector<4x256xf32>
    %367 = arith.truncf %366 : vector<4x256xf32> to vector<4x256xbf16>
    %c0_85 = arith.constant 0 : index
    %c0_86 = arith.constant 0 : index
    %368 = vector.load %arg11[%c0_85, %c0_86] : memref<256x512xbf16, #tpu.memory_space<vmem>>, vector<256x512xbf16>
    %cst_87 = arith.constant dense<0.000000e+00> : vector<4x512xf32>
    %369 = tpu.matmul %367, %368, %cst_87 {dimension_numbers = #tpu.dot_dimension_numbers<[1], [0], [0], [1], [0, 0, 1, 1], [], []>} : vector<4x256xbf16>, vector<256x512xbf16>, vector<4x512xf32> -> vector<4x512xf32>
    %370 = arith.addf %361, %369 : vector<4x512xf32>
    %371 = vector.extract_strided_slice %370 {offsets = [0, 0], sizes = [4, 128], strides = [1, 1]} : vector<4x512xf32> to vector<4x128xf32>
    %372 = arith.negf %371 : vector<4x128xf32>
    %373 = math.exp %372 : vector<4x128xf32>
    %cst_88 = arith.constant 1.000000e+00 : f32
    %374 = vector.broadcast %cst_88 : f32 to vector<4x128xf32>
    %375 = arith.addf %374, %373 : vector<4x128xf32>
    %376 = arith.divf %374, %375 : vector<4x128xf32>
    %377 = vector.extract_strided_slice %370 {offsets = [0, 128], sizes = [4, 128], strides = [1, 1]} : vector<4x512xf32> to vector<4x128xf32>
    %378 = arith.negf %377 : vector<4x128xf32>
    %379 = math.exp %378 : vector<4x128xf32>
    %cst_89 = arith.constant 1.000000e+00 : f32
    %380 = vector.broadcast %cst_89 : f32 to vector<4x128xf32>
    %381 = arith.addf %380, %379 : vector<4x128xf32>
    %382 = arith.divf %380, %381 : vector<4x128xf32>
    %383 = vector.extract_strided_slice %370 {offsets = [0, 256], sizes = [4, 128], strides = [1, 1]} : vector<4x512xf32> to vector<4x128xf32>
    %384 = math.tanh %383 : vector<4x128xf32>
    %385 = vector.extract_strided_slice %370 {offsets = [0, 384], sizes = [4, 128], strides = [1, 1]} : vector<4x512xf32> to vector<4x128xf32>
    %386 = arith.negf %385 : vector<4x128xf32>
    %387 = math.exp %386 : vector<4x128xf32>
    %cst_90 = arith.constant 1.000000e+00 : f32
    %388 = vector.broadcast %cst_90 : f32 to vector<4x128xf32>
    %389 = arith.addf %388, %387 : vector<4x128xf32>
    %390 = arith.divf %388, %389 : vector<4x128xf32>
    %391 = arith.mulf %382, %351 : vector<4x128xf32>
    %392 = arith.mulf %376, %384 : vector<4x128xf32>
    %393 = arith.addf %391, %392 : vector<4x128xf32>
    %394 = math.tanh %393 : vector<4x128xf32>
    %395 = arith.mulf %390, %394 : vector<4x128xf32>
    %396 = vector.extract_strided_slice %54 {offsets = [0, 6], sizes = [4, 1], strides = [1, 1]} : vector<4x16xf32> to vector<4x1xf32>
    %397 = arith.subf %393, %351 : vector<4x128xf32>
    %398 = vector.broadcast %396 : vector<4x1xf32> to vector<4x128xf32>
    %399 = arith.mulf %398, %397 : vector<4x128xf32>
    %400 = arith.addf %351, %399 : vector<4x128xf32>
    %401 = arith.subf %395, %355 : vector<4x128xf32>
    %402 = vector.broadcast %396 : vector<4x1xf32> to vector<4x128xf32>
    %403 = arith.mulf %402, %401 : vector<4x128xf32>
    %404 = arith.addf %355, %403 : vector<4x128xf32>
    %405 = vector.broadcast %396 : vector<4x1xf32> to vector<4x128xf32>
    %406 = arith.mulf %405, %395 : vector<4x128xf32>
    %407 = arith.addf %358, %406 : vector<4x128xf32>
    %c14 = arith.constant 14 : index
    %c0_91 = arith.constant 0 : index
    %408 = vector.load %arg15[%c14, %c0_91] : memref<32x512xf32, #tpu.memory_space<vmem>>, vector<2x512xf32>
    %c16 = arith.constant 16 : index
    %c0_92 = arith.constant 0 : index
    %409 = vector.load %arg16[%c16, %c0_92] : memref<32x512xf32, #tpu.memory_space<vmem>>, vector<2x512xf32>
    %410 = tpu.concatenate %408, %409 in 0 : vector<2x512xf32>, vector<2x512xf32> -> vector<4x512xf32>
    %411 = vector.broadcast %59 : vector<4x1xf32> to vector<4x128xf32>
    %412 = arith.mulf %404, %411 : vector<4x128xf32>
    %413 = vector.broadcast %61 : vector<4x1xf32> to vector<4x128xf32>
    %414 = arith.mulf %404, %413 : vector<4x128xf32>
    %415 = tpu.concatenate %412, %414 in 1 : vector<4x128xf32>, vector<4x128xf32> -> vector<4x256xf32>
    %416 = arith.truncf %415 : vector<4x256xf32> to vector<4x256xbf16>
    %c0_93 = arith.constant 0 : index
    %c0_94 = arith.constant 0 : index
    %417 = vector.load %arg11[%c0_93, %c0_94] : memref<256x512xbf16, #tpu.memory_space<vmem>>, vector<256x512xbf16>
    %cst_95 = arith.constant dense<0.000000e+00> : vector<4x512xf32>
    %418 = tpu.matmul %416, %417, %cst_95 {dimension_numbers = #tpu.dot_dimension_numbers<[1], [0], [0], [1], [0, 0, 1, 1], [], []>} : vector<4x256xbf16>, vector<256x512xbf16>, vector<4x512xf32> -> vector<4x512xf32>
    %419 = arith.addf %410, %418 : vector<4x512xf32>
    %420 = vector.extract_strided_slice %419 {offsets = [0, 0], sizes = [4, 128], strides = [1, 1]} : vector<4x512xf32> to vector<4x128xf32>
    %421 = arith.negf %420 : vector<4x128xf32>
    %422 = math.exp %421 : vector<4x128xf32>
    %cst_96 = arith.constant 1.000000e+00 : f32
    %423 = vector.broadcast %cst_96 : f32 to vector<4x128xf32>
    %424 = arith.addf %423, %422 : vector<4x128xf32>
    %425 = arith.divf %423, %424 : vector<4x128xf32>
    %426 = vector.extract_strided_slice %419 {offsets = [0, 128], sizes = [4, 128], strides = [1, 1]} : vector<4x512xf32> to vector<4x128xf32>
    %427 = arith.negf %426 : vector<4x128xf32>
    %428 = math.exp %427 : vector<4x128xf32>
    %cst_97 = arith.constant 1.000000e+00 : f32
    %429 = vector.broadcast %cst_97 : f32 to vector<4x128xf32>
    %430 = arith.addf %429, %428 : vector<4x128xf32>
    %431 = arith.divf %429, %430 : vector<4x128xf32>
    %432 = vector.extract_strided_slice %419 {offsets = [0, 256], sizes = [4, 128], strides = [1, 1]} : vector<4x512xf32> to vector<4x128xf32>
    %433 = math.tanh %432 : vector<4x128xf32>
    %434 = vector.extract_strided_slice %419 {offsets = [0, 384], sizes = [4, 128], strides = [1, 1]} : vector<4x512xf32> to vector<4x128xf32>
    %435 = arith.negf %434 : vector<4x128xf32>
    %436 = math.exp %435 : vector<4x128xf32>
    %cst_98 = arith.constant 1.000000e+00 : f32
    %437 = vector.broadcast %cst_98 : f32 to vector<4x128xf32>
    %438 = arith.addf %437, %436 : vector<4x128xf32>
    %439 = arith.divf %437, %438 : vector<4x128xf32>
    %440 = arith.mulf %431, %400 : vector<4x128xf32>
    %441 = arith.mulf %425, %433 : vector<4x128xf32>
    %442 = arith.addf %440, %441 : vector<4x128xf32>
    %443 = math.tanh %442 : vector<4x128xf32>
    %444 = arith.mulf %439, %443 : vector<4x128xf32>
    %445 = vector.extract_strided_slice %54 {offsets = [0, 7], sizes = [4, 1], strides = [1, 1]} : vector<4x16xf32> to vector<4x1xf32>
    %446 = arith.subf %442, %400 : vector<4x128xf32>
    %447 = vector.broadcast %445 : vector<4x1xf32> to vector<4x128xf32>
    %448 = arith.mulf %447, %446 : vector<4x128xf32>
    %449 = arith.addf %400, %448 : vector<4x128xf32>
    %450 = arith.subf %444, %404 : vector<4x128xf32>
    %451 = vector.broadcast %445 : vector<4x1xf32> to vector<4x128xf32>
    %452 = arith.mulf %451, %450 : vector<4x128xf32>
    %453 = arith.addf %404, %452 : vector<4x128xf32>
    %454 = vector.broadcast %445 : vector<4x1xf32> to vector<4x128xf32>
    %455 = arith.mulf %454, %444 : vector<4x128xf32>
    %456 = arith.addf %407, %455 : vector<4x128xf32>
    %c16_99 = arith.constant 16 : index
    %c0_100 = arith.constant 0 : index
    %457 = vector.load %arg15[%c16_99, %c0_100] : memref<32x512xf32, #tpu.memory_space<vmem>>, vector<2x512xf32>
    %c14_101 = arith.constant 14 : index
    %c0_102 = arith.constant 0 : index
    %458 = vector.load %arg16[%c14_101, %c0_102] : memref<32x512xf32, #tpu.memory_space<vmem>>, vector<2x512xf32>
    %459 = tpu.concatenate %457, %458 in 0 : vector<2x512xf32>, vector<2x512xf32> -> vector<4x512xf32>
    %460 = vector.broadcast %59 : vector<4x1xf32> to vector<4x128xf32>
    %461 = arith.mulf %453, %460 : vector<4x128xf32>
    %462 = vector.broadcast %61 : vector<4x1xf32> to vector<4x128xf32>
    %463 = arith.mulf %453, %462 : vector<4x128xf32>
    %464 = tpu.concatenate %461, %463 in 1 : vector<4x128xf32>, vector<4x128xf32> -> vector<4x256xf32>
    %465 = arith.truncf %464 : vector<4x256xf32> to vector<4x256xbf16>
    %c0_103 = arith.constant 0 : index
    %c0_104 = arith.constant 0 : index
    %466 = vector.load %arg11[%c0_103, %c0_104] : memref<256x512xbf16, #tpu.memory_space<vmem>>, vector<256x512xbf16>
    %cst_105 = arith.constant dense<0.000000e+00> : vector<4x512xf32>
    %467 = tpu.matmul %465, %466, %cst_105 {dimension_numbers = #tpu.dot_dimension_numbers<[1], [0], [0], [1], [0, 0, 1, 1], [], []>} : vector<4x256xbf16>, vector<256x512xbf16>, vector<4x512xf32> -> vector<4x512xf32>
    %468 = arith.addf %459, %467 : vector<4x512xf32>
    %469 = vector.extract_strided_slice %468 {offsets = [0, 0], sizes = [4, 128], strides = [1, 1]} : vector<4x512xf32> to vector<4x128xf32>
    %470 = arith.negf %469 : vector<4x128xf32>
    %471 = math.exp %470 : vector<4x128xf32>
    %cst_106 = arith.constant 1.000000e+00 : f32
    %472 = vector.broadcast %cst_106 : f32 to vector<4x128xf32>
    %473 = arith.addf %472, %471 : vector<4x128xf32>
    %474 = arith.divf %472, %473 : vector<4x128xf32>
    %475 = vector.extract_strided_slice %468 {offsets = [0, 128], sizes = [4, 128], strides = [1, 1]} : vector<4x512xf32> to vector<4x128xf32>
    %476 = arith.negf %475 : vector<4x128xf32>
    %477 = math.exp %476 : vector<4x128xf32>
    %cst_107 = arith.constant 1.000000e+00 : f32
    %478 = vector.broadcast %cst_107 : f32 to vector<4x128xf32>
    %479 = arith.addf %478, %477 : vector<4x128xf32>
    %480 = arith.divf %478, %479 : vector<4x128xf32>
    %481 = vector.extract_strided_slice %468 {offsets = [0, 256], sizes = [4, 128], strides = [1, 1]} : vector<4x512xf32> to vector<4x128xf32>
    %482 = math.tanh %481 : vector<4x128xf32>
    %483 = vector.extract_strided_slice %468 {offsets = [0, 384], sizes = [4, 128], strides = [1, 1]} : vector<4x512xf32> to vector<4x128xf32>
    %484 = arith.negf %483 : vector<4x128xf32>
    %485 = math.exp %484 : vector<4x128xf32>
    %cst_108 = arith.constant 1.000000e+00 : f32
    %486 = vector.broadcast %cst_108 : f32 to vector<4x128xf32>
    %487 = arith.addf %486, %485 : vector<4x128xf32>
    %488 = arith.divf %486, %487 : vector<4x128xf32>
    %489 = arith.mulf %480, %449 : vector<4x128xf32>
    %490 = arith.mulf %474, %482 : vector<4x128xf32>
    %491 = arith.addf %489, %490 : vector<4x128xf32>
    %492 = math.tanh %491 : vector<4x128xf32>
    %493 = arith.mulf %488, %492 : vector<4x128xf32>
    %494 = vector.extract_strided_slice %54 {offsets = [0, 8], sizes = [4, 1], strides = [1, 1]} : vector<4x16xf32> to vector<4x1xf32>
    %495 = arith.subf %491, %449 : vector<4x128xf32>
    %496 = vector.broadcast %494 : vector<4x1xf32> to vector<4x128xf32>
    %497 = arith.mulf %496, %495 : vector<4x128xf32>
    %498 = arith.addf %449, %497 : vector<4x128xf32>
    %499 = arith.subf %493, %453 : vector<4x128xf32>
    %500 = vector.broadcast %494 : vector<4x1xf32> to vector<4x128xf32>
    %501 = arith.mulf %500, %499 : vector<4x128xf32>
    %502 = arith.addf %453, %501 : vector<4x128xf32>
    %503 = vector.broadcast %494 : vector<4x1xf32> to vector<4x128xf32>
    %504 = arith.mulf %503, %493 : vector<4x128xf32>
    %505 = arith.addf %456, %504 : vector<4x128xf32>
    %c18_109 = arith.constant 18 : index
    %c0_110 = arith.constant 0 : index
    %506 = vector.load %arg15[%c18_109, %c0_110] : memref<32x512xf32, #tpu.memory_space<vmem>>, vector<2x512xf32>
    %c12_111 = arith.constant 12 : index
    %c0_112 = arith.constant 0 : index
    %507 = vector.load %arg16[%c12_111, %c0_112] : memref<32x512xf32, #tpu.memory_space<vmem>>, vector<2x512xf32>
    %508 = tpu.concatenate %506, %507 in 0 : vector<2x512xf32>, vector<2x512xf32> -> vector<4x512xf32>
    %509 = vector.broadcast %59 : vector<4x1xf32> to vector<4x128xf32>
    %510 = arith.mulf %502, %509 : vector<4x128xf32>
    %511 = vector.broadcast %61 : vector<4x1xf32> to vector<4x128xf32>
    %512 = arith.mulf %502, %511 : vector<4x128xf32>
    %513 = tpu.concatenate %510, %512 in 1 : vector<4x128xf32>, vector<4x128xf32> -> vector<4x256xf32>
    %514 = arith.truncf %513 : vector<4x256xf32> to vector<4x256xbf16>
    %c0_113 = arith.constant 0 : index
    %c0_114 = arith.constant 0 : index
    %515 = vector.load %arg11[%c0_113, %c0_114] : memref<256x512xbf16, #tpu.memory_space<vmem>>, vector<256x512xbf16>
    %cst_115 = arith.constant dense<0.000000e+00> : vector<4x512xf32>
    %516 = tpu.matmul %514, %515, %cst_115 {dimension_numbers = #tpu.dot_dimension_numbers<[1], [0], [0], [1], [0, 0, 1, 1], [], []>} : vector<4x256xbf16>, vector<256x512xbf16>, vector<4x512xf32> -> vector<4x512xf32>
    %517 = arith.addf %508, %516 : vector<4x512xf32>
    %518 = vector.extract_strided_slice %517 {offsets = [0, 0], sizes = [4, 128], strides = [1, 1]} : vector<4x512xf32> to vector<4x128xf32>
    %519 = arith.negf %518 : vector<4x128xf32>
    %520 = math.exp %519 : vector<4x128xf32>
    %cst_116 = arith.constant 1.000000e+00 : f32
    %521 = vector.broadcast %cst_116 : f32 to vector<4x128xf32>
    %522 = arith.addf %521, %520 : vector<4x128xf32>
    %523 = arith.divf %521, %522 : vector<4x128xf32>
    %524 = vector.extract_strided_slice %517 {offsets = [0, 128], sizes = [4, 128], strides = [1, 1]} : vector<4x512xf32> to vector<4x128xf32>
    %525 = arith.negf %524 : vector<4x128xf32>
    %526 = math.exp %525 : vector<4x128xf32>
    %cst_117 = arith.constant 1.000000e+00 : f32
    %527 = vector.broadcast %cst_117 : f32 to vector<4x128xf32>
    %528 = arith.addf %527, %526 : vector<4x128xf32>
    %529 = arith.divf %527, %528 : vector<4x128xf32>
    %530 = vector.extract_strided_slice %517 {offsets = [0, 256], sizes = [4, 128], strides = [1, 1]} : vector<4x512xf32> to vector<4x128xf32>
    %531 = math.tanh %530 : vector<4x128xf32>
    %532 = vector.extract_strided_slice %517 {offsets = [0, 384], sizes = [4, 128], strides = [1, 1]} : vector<4x512xf32> to vector<4x128xf32>
    %533 = arith.negf %532 : vector<4x128xf32>
    %534 = math.exp %533 : vector<4x128xf32>
    %cst_118 = arith.constant 1.000000e+00 : f32
    %535 = vector.broadcast %cst_118 : f32 to vector<4x128xf32>
    %536 = arith.addf %535, %534 : vector<4x128xf32>
    %537 = arith.divf %535, %536 : vector<4x128xf32>
    %538 = arith.mulf %529, %498 : vector<4x128xf32>
    %539 = arith.mulf %523, %531 : vector<4x128xf32>
    %540 = arith.addf %538, %539 : vector<4x128xf32>
    %541 = math.tanh %540 : vector<4x128xf32>
    %542 = arith.mulf %537, %541 : vector<4x128xf32>
    %543 = vector.extract_strided_slice %54 {offsets = [0, 9], sizes = [4, 1], strides = [1, 1]} : vector<4x16xf32> to vector<4x1xf32>
    %544 = arith.subf %540, %498 : vector<4x128xf32>
    %545 = vector.broadcast %543 : vector<4x1xf32> to vector<4x128xf32>
    %546 = arith.mulf %545, %544 : vector<4x128xf32>
    %547 = arith.addf %498, %546 : vector<4x128xf32>
    %548 = arith.subf %542, %502 : vector<4x128xf32>
    %549 = vector.broadcast %543 : vector<4x1xf32> to vector<4x128xf32>
    %550 = arith.mulf %549, %548 : vector<4x128xf32>
    %551 = arith.addf %502, %550 : vector<4x128xf32>
    %552 = vector.broadcast %543 : vector<4x1xf32> to vector<4x128xf32>
    %553 = arith.mulf %552, %542 : vector<4x128xf32>
    %554 = arith.addf %505, %553 : vector<4x128xf32>
    %c20_119 = arith.constant 20 : index
    %c0_120 = arith.constant 0 : index
    %555 = vector.load %arg15[%c20_119, %c0_120] : memref<32x512xf32, #tpu.memory_space<vmem>>, vector<2x512xf32>
    %c10_121 = arith.constant 10 : index
    %c0_122 = arith.constant 0 : index
    %556 = vector.load %arg16[%c10_121, %c0_122] : memref<32x512xf32, #tpu.memory_space<vmem>>, vector<2x512xf32>
    %557 = tpu.concatenate %555, %556 in 0 : vector<2x512xf32>, vector<2x512xf32> -> vector<4x512xf32>
    %558 = vector.broadcast %59 : vector<4x1xf32> to vector<4x128xf32>
    %559 = arith.mulf %551, %558 : vector<4x128xf32>
    %560 = vector.broadcast %61 : vector<4x1xf32> to vector<4x128xf32>
    %561 = arith.mulf %551, %560 : vector<4x128xf32>
    %562 = tpu.concatenate %559, %561 in 1 : vector<4x128xf32>, vector<4x128xf32> -> vector<4x256xf32>
    %563 = arith.truncf %562 : vector<4x256xf32> to vector<4x256xbf16>
    %c0_123 = arith.constant 0 : index
    %c0_124 = arith.constant 0 : index
    %564 = vector.load %arg11[%c0_123, %c0_124] : memref<256x512xbf16, #tpu.memory_space<vmem>>, vector<256x512xbf16>
    %cst_125 = arith.constant dense<0.000000e+00> : vector<4x512xf32>
    %565 = tpu.matmul %563, %564, %cst_125 {dimension_numbers = #tpu.dot_dimension_numbers<[1], [0], [0], [1], [0, 0, 1, 1], [], []>} : vector<4x256xbf16>, vector<256x512xbf16>, vector<4x512xf32> -> vector<4x512xf32>
    %566 = arith.addf %557, %565 : vector<4x512xf32>
    %567 = vector.extract_strided_slice %566 {offsets = [0, 0], sizes = [4, 128], strides = [1, 1]} : vector<4x512xf32> to vector<4x128xf32>
    %568 = arith.negf %567 : vector<4x128xf32>
    %569 = math.exp %568 : vector<4x128xf32>
    %cst_126 = arith.constant 1.000000e+00 : f32
    %570 = vector.broadcast %cst_126 : f32 to vector<4x128xf32>
    %571 = arith.addf %570, %569 : vector<4x128xf32>
    %572 = arith.divf %570, %571 : vector<4x128xf32>
    %573 = vector.extract_strided_slice %566 {offsets = [0, 128], sizes = [4, 128], strides = [1, 1]} : vector<4x512xf32> to vector<4x128xf32>
    %574 = arith.negf %573 : vector<4x128xf32>
    %575 = math.exp %574 : vector<4x128xf32>
    %cst_127 = arith.constant 1.000000e+00 : f32
    %576 = vector.broadcast %cst_127 : f32 to vector<4x128xf32>
    %577 = arith.addf %576, %575 : vector<4x128xf32>
    %578 = arith.divf %576, %577 : vector<4x128xf32>
    %579 = vector.extract_strided_slice %566 {offsets = [0, 256], sizes = [4, 128], strides = [1, 1]} : vector<4x512xf32> to vector<4x128xf32>
    %580 = math.tanh %579 : vector<4x128xf32>
    %581 = vector.extract_strided_slice %566 {offsets = [0, 384], sizes = [4, 128], strides = [1, 1]} : vector<4x512xf32> to vector<4x128xf32>
    %582 = arith.negf %581 : vector<4x128xf32>
    %583 = math.exp %582 : vector<4x128xf32>
    %cst_128 = arith.constant 1.000000e+00 : f32
    %584 = vector.broadcast %cst_128 : f32 to vector<4x128xf32>
    %585 = arith.addf %584, %583 : vector<4x128xf32>
    %586 = arith.divf %584, %585 : vector<4x128xf32>
    %587 = arith.mulf %578, %547 : vector<4x128xf32>
    %588 = arith.mulf %572, %580 : vector<4x128xf32>
    %589 = arith.addf %587, %588 : vector<4x128xf32>
    %590 = math.tanh %589 : vector<4x128xf32>
    %591 = arith.mulf %586, %590 : vector<4x128xf32>
    %592 = vector.extract_strided_slice %54 {offsets = [0, 10], sizes = [4, 1], strides = [1, 1]} : vector<4x16xf32> to vector<4x1xf32>
    %593 = arith.subf %589, %547 : vector<4x128xf32>
    %594 = vector.broadcast %592 : vector<4x1xf32> to vector<4x128xf32>
    %595 = arith.mulf %594, %593 : vector<4x128xf32>
    %596 = arith.addf %547, %595 : vector<4x128xf32>
    %597 = arith.subf %591, %551 : vector<4x128xf32>
    %598 = vector.broadcast %592 : vector<4x1xf32> to vector<4x128xf32>
    %599 = arith.mulf %598, %597 : vector<4x128xf32>
    %600 = arith.addf %551, %599 : vector<4x128xf32>
    %601 = vector.broadcast %592 : vector<4x1xf32> to vector<4x128xf32>
    %602 = arith.mulf %601, %591 : vector<4x128xf32>
    %603 = arith.addf %554, %602 : vector<4x128xf32>
    %c22_129 = arith.constant 22 : index
    %c0_130 = arith.constant 0 : index
    %604 = vector.load %arg15[%c22_129, %c0_130] : memref<32x512xf32, #tpu.memory_space<vmem>>, vector<2x512xf32>
    %c8_131 = arith.constant 8 : index
    %c0_132 = arith.constant 0 : index
    %605 = vector.load %arg16[%c8_131, %c0_132] : memref<32x512xf32, #tpu.memory_space<vmem>>, vector<2x512xf32>
    %606 = tpu.concatenate %604, %605 in 0 : vector<2x512xf32>, vector<2x512xf32> -> vector<4x512xf32>
    %607 = vector.broadcast %59 : vector<4x1xf32> to vector<4x128xf32>
    %608 = arith.mulf %600, %607 : vector<4x128xf32>
    %609 = vector.broadcast %61 : vector<4x1xf32> to vector<4x128xf32>
    %610 = arith.mulf %600, %609 : vector<4x128xf32>
    %611 = tpu.concatenate %608, %610 in 1 : vector<4x128xf32>, vector<4x128xf32> -> vector<4x256xf32>
    %612 = arith.truncf %611 : vector<4x256xf32> to vector<4x256xbf16>
    %c0_133 = arith.constant 0 : index
    %c0_134 = arith.constant 0 : index
    %613 = vector.load %arg11[%c0_133, %c0_134] : memref<256x512xbf16, #tpu.memory_space<vmem>>, vector<256x512xbf16>
    %cst_135 = arith.constant dense<0.000000e+00> : vector<4x512xf32>
    %614 = tpu.matmul %612, %613, %cst_135 {dimension_numbers = #tpu.dot_dimension_numbers<[1], [0], [0], [1], [0, 0, 1, 1], [], []>} : vector<4x256xbf16>, vector<256x512xbf16>, vector<4x512xf32> -> vector<4x512xf32>
    %615 = arith.addf %606, %614 : vector<4x512xf32>
    %616 = vector.extract_strided_slice %615 {offsets = [0, 0], sizes = [4, 128], strides = [1, 1]} : vector<4x512xf32> to vector<4x128xf32>
    %617 = arith.negf %616 : vector<4x128xf32>
    %618 = math.exp %617 : vector<4x128xf32>
    %cst_136 = arith.constant 1.000000e+00 : f32
    %619 = vector.broadcast %cst_136 : f32 to vector<4x128xf32>
    %620 = arith.addf %619, %618 : vector<4x128xf32>
    %621 = arith.divf %619, %620 : vector<4x128xf32>
    %622 = vector.extract_strided_slice %615 {offsets = [0, 128], sizes = [4, 128], strides = [1, 1]} : vector<4x512xf32> to vector<4x128xf32>
    %623 = arith.negf %622 : vector<4x128xf32>
    %624 = math.exp %623 : vector<4x128xf32>
    %cst_137 = arith.constant 1.000000e+00 : f32
    %625 = vector.broadcast %cst_137 : f32 to vector<4x128xf32>
    %626 = arith.addf %625, %624 : vector<4x128xf32>
    %627 = arith.divf %625, %626 : vector<4x128xf32>
    %628 = vector.extract_strided_slice %615 {offsets = [0, 256], sizes = [4, 128], strides = [1, 1]} : vector<4x512xf32> to vector<4x128xf32>
    %629 = math.tanh %628 : vector<4x128xf32>
    %630 = vector.extract_strided_slice %615 {offsets = [0, 384], sizes = [4, 128], strides = [1, 1]} : vector<4x512xf32> to vector<4x128xf32>
    %631 = arith.negf %630 : vector<4x128xf32>
    %632 = math.exp %631 : vector<4x128xf32>
    %cst_138 = arith.constant 1.000000e+00 : f32
    %633 = vector.broadcast %cst_138 : f32 to vector<4x128xf32>
    %634 = arith.addf %633, %632 : vector<4x128xf32>
    %635 = arith.divf %633, %634 : vector<4x128xf32>
    %636 = arith.mulf %627, %596 : vector<4x128xf32>
    %637 = arith.mulf %621, %629 : vector<4x128xf32>
    %638 = arith.addf %636, %637 : vector<4x128xf32>
    %639 = math.tanh %638 : vector<4x128xf32>
    %640 = arith.mulf %635, %639 : vector<4x128xf32>
    %641 = vector.extract_strided_slice %54 {offsets = [0, 11], sizes = [4, 1], strides = [1, 1]} : vector<4x16xf32> to vector<4x1xf32>
    %642 = arith.subf %638, %596 : vector<4x128xf32>
    %643 = vector.broadcast %641 : vector<4x1xf32> to vector<4x128xf32>
    %644 = arith.mulf %643, %642 : vector<4x128xf32>
    %645 = arith.addf %596, %644 : vector<4x128xf32>
    %646 = arith.subf %640, %600 : vector<4x128xf32>
    %647 = vector.broadcast %641 : vector<4x1xf32> to vector<4x128xf32>
    %648 = arith.mulf %647, %646 : vector<4x128xf32>
    %649 = arith.addf %600, %648 : vector<4x128xf32>
    %650 = vector.broadcast %641 : vector<4x1xf32> to vector<4x128xf32>
    %651 = arith.mulf %650, %640 : vector<4x128xf32>
    %652 = arith.addf %603, %651 : vector<4x128xf32>
    %c24_139 = arith.constant 24 : index
    %c0_140 = arith.constant 0 : index
    %653 = vector.load %arg15[%c24_139, %c0_140] : memref<32x512xf32, #tpu.memory_space<vmem>>, vector<2x512xf32>
    %c6_141 = arith.constant 6 : index
    %c0_142 = arith.constant 0 : index
    %654 = vector.load %arg16[%c6_141, %c0_142] : memref<32x512xf32, #tpu.memory_space<vmem>>, vector<2x512xf32>
    %655 = tpu.concatenate %653, %654 in 0 : vector<2x512xf32>, vector<2x512xf32> -> vector<4x512xf32>
    %656 = vector.broadcast %59 : vector<4x1xf32> to vector<4x128xf32>
    %657 = arith.mulf %649, %656 : vector<4x128xf32>
    %658 = vector.broadcast %61 : vector<4x1xf32> to vector<4x128xf32>
    %659 = arith.mulf %649, %658 : vector<4x128xf32>
    %660 = tpu.concatenate %657, %659 in 1 : vector<4x128xf32>, vector<4x128xf32> -> vector<4x256xf32>
    %661 = arith.truncf %660 : vector<4x256xf32> to vector<4x256xbf16>
    %c0_143 = arith.constant 0 : index
    %c0_144 = arith.constant 0 : index
    %662 = vector.load %arg11[%c0_143, %c0_144] : memref<256x512xbf16, #tpu.memory_space<vmem>>, vector<256x512xbf16>
    %cst_145 = arith.constant dense<0.000000e+00> : vector<4x512xf32>
    %663 = tpu.matmul %661, %662, %cst_145 {dimension_numbers = #tpu.dot_dimension_numbers<[1], [0], [0], [1], [0, 0, 1, 1], [], []>} : vector<4x256xbf16>, vector<256x512xbf16>, vector<4x512xf32> -> vector<4x512xf32>
    %664 = arith.addf %655, %663 : vector<4x512xf32>
    %665 = vector.extract_strided_slice %664 {offsets = [0, 0], sizes = [4, 128], strides = [1, 1]} : vector<4x512xf32> to vector<4x128xf32>
    %666 = arith.negf %665 : vector<4x128xf32>
    %667 = math.exp %666 : vector<4x128xf32>
    %cst_146 = arith.constant 1.000000e+00 : f32
    %668 = vector.broadcast %cst_146 : f32 to vector<4x128xf32>
    %669 = arith.addf %668, %667 : vector<4x128xf32>
    %670 = arith.divf %668, %669 : vector<4x128xf32>
    %671 = vector.extract_strided_slice %664 {offsets = [0, 128], sizes = [4, 128], strides = [1, 1]} : vector<4x512xf32> to vector<4x128xf32>
    %672 = arith.negf %671 : vector<4x128xf32>
    %673 = math.exp %672 : vector<4x128xf32>
    %cst_147 = arith.constant 1.000000e+00 : f32
    %674 = vector.broadcast %cst_147 : f32 to vector<4x128xf32>
    %675 = arith.addf %674, %673 : vector<4x128xf32>
    %676 = arith.divf %674, %675 : vector<4x128xf32>
    %677 = vector.extract_strided_slice %664 {offsets = [0, 256], sizes = [4, 128], strides = [1, 1]} : vector<4x512xf32> to vector<4x128xf32>
    %678 = math.tanh %677 : vector<4x128xf32>
    %679 = vector.extract_strided_slice %664 {offsets = [0, 384], sizes = [4, 128], strides = [1, 1]} : vector<4x512xf32> to vector<4x128xf32>
    %680 = arith.negf %679 : vector<4x128xf32>
    %681 = math.exp %680 : vector<4x128xf32>
    %cst_148 = arith.constant 1.000000e+00 : f32
    %682 = vector.broadcast %cst_148 : f32 to vector<4x128xf32>
    %683 = arith.addf %682, %681 : vector<4x128xf32>
    %684 = arith.divf %682, %683 : vector<4x128xf32>
    %685 = arith.mulf %676, %645 : vector<4x128xf32>
    %686 = arith.mulf %670, %678 : vector<4x128xf32>
    %687 = arith.addf %685, %686 : vector<4x128xf32>
    %688 = math.tanh %687 : vector<4x128xf32>
    %689 = arith.mulf %684, %688 : vector<4x128xf32>
    %690 = vector.extract_strided_slice %54 {offsets = [0, 12], sizes = [4, 1], strides = [1, 1]} : vector<4x16xf32> to vector<4x1xf32>
    %691 = arith.subf %687, %645 : vector<4x128xf32>
    %692 = vector.broadcast %690 : vector<4x1xf32> to vector<4x128xf32>
    %693 = arith.mulf %692, %691 : vector<4x128xf32>
    %694 = arith.addf %645, %693 : vector<4x128xf32>
    %695 = arith.subf %689, %649 : vector<4x128xf32>
    %696 = vector.broadcast %690 : vector<4x1xf32> to vector<4x128xf32>
    %697 = arith.mulf %696, %695 : vector<4x128xf32>
    %698 = arith.addf %649, %697 : vector<4x128xf32>
    %699 = vector.broadcast %690 : vector<4x1xf32> to vector<4x128xf32>
    %700 = arith.mulf %699, %689 : vector<4x128xf32>
    %701 = arith.addf %652, %700 : vector<4x128xf32>
    %c26_149 = arith.constant 26 : index
    %c0_150 = arith.constant 0 : index
    %702 = vector.load %arg15[%c26_149, %c0_150] : memref<32x512xf32, #tpu.memory_space<vmem>>, vector<2x512xf32>
    %c4_151 = arith.constant 4 : index
    %c0_152 = arith.constant 0 : index
    %703 = vector.load %arg16[%c4_151, %c0_152] : memref<32x512xf32, #tpu.memory_space<vmem>>, vector<2x512xf32>
    %704 = tpu.concatenate %702, %703 in 0 : vector<2x512xf32>, vector<2x512xf32> -> vector<4x512xf32>
    %705 = vector.broadcast %59 : vector<4x1xf32> to vector<4x128xf32>
    %706 = arith.mulf %698, %705 : vector<4x128xf32>
    %707 = vector.broadcast %61 : vector<4x1xf32> to vector<4x128xf32>
    %708 = arith.mulf %698, %707 : vector<4x128xf32>
    %709 = tpu.concatenate %706, %708 in 1 : vector<4x128xf32>, vector<4x128xf32> -> vector<4x256xf32>
    %710 = arith.truncf %709 : vector<4x256xf32> to vector<4x256xbf16>
    %c0_153 = arith.constant 0 : index
    %c0_154 = arith.constant 0 : index
    %711 = vector.load %arg11[%c0_153, %c0_154] : memref<256x512xbf16, #tpu.memory_space<vmem>>, vector<256x512xbf16>
    %cst_155 = arith.constant dense<0.000000e+00> : vector<4x512xf32>
    %712 = tpu.matmul %710, %711, %cst_155 {dimension_numbers = #tpu.dot_dimension_numbers<[1], [0], [0], [1], [0, 0, 1, 1], [], []>} : vector<4x256xbf16>, vector<256x512xbf16>, vector<4x512xf32> -> vector<4x512xf32>
    %713 = arith.addf %704, %712 : vector<4x512xf32>
    %714 = vector.extract_strided_slice %713 {offsets = [0, 0], sizes = [4, 128], strides = [1, 1]} : vector<4x512xf32> to vector<4x128xf32>
    %715 = arith.negf %714 : vector<4x128xf32>
    %716 = math.exp %715 : vector<4x128xf32>
    %cst_156 = arith.constant 1.000000e+00 : f32
    %717 = vector.broadcast %cst_156 : f32 to vector<4x128xf32>
    %718 = arith.addf %717, %716 : vector<4x128xf32>
    %719 = arith.divf %717, %718 : vector<4x128xf32>
    %720 = vector.extract_strided_slice %713 {offsets = [0, 128], sizes = [4, 128], strides = [1, 1]} : vector<4x512xf32> to vector<4x128xf32>
    %721 = arith.negf %720 : vector<4x128xf32>
    %722 = math.exp %721 : vector<4x128xf32>
    %cst_157 = arith.constant 1.000000e+00 : f32
    %723 = vector.broadcast %cst_157 : f32 to vector<4x128xf32>
    %724 = arith.addf %723, %722 : vector<4x128xf32>
    %725 = arith.divf %723, %724 : vector<4x128xf32>
    %726 = vector.extract_strided_slice %713 {offsets = [0, 256], sizes = [4, 128], strides = [1, 1]} : vector<4x512xf32> to vector<4x128xf32>
    %727 = math.tanh %726 : vector<4x128xf32>
    %728 = vector.extract_strided_slice %713 {offsets = [0, 384], sizes = [4, 128], strides = [1, 1]} : vector<4x512xf32> to vector<4x128xf32>
    %729 = arith.negf %728 : vector<4x128xf32>
    %730 = math.exp %729 : vector<4x128xf32>
    %cst_158 = arith.constant 1.000000e+00 : f32
    %731 = vector.broadcast %cst_158 : f32 to vector<4x128xf32>
    %732 = arith.addf %731, %730 : vector<4x128xf32>
    %733 = arith.divf %731, %732 : vector<4x128xf32>
    %734 = arith.mulf %725, %694 : vector<4x128xf32>
    %735 = arith.mulf %719, %727 : vector<4x128xf32>
    %736 = arith.addf %734, %735 : vector<4x128xf32>
    %737 = math.tanh %736 : vector<4x128xf32>
    %738 = arith.mulf %733, %737 : vector<4x128xf32>
    %739 = vector.extract_strided_slice %54 {offsets = [0, 13], sizes = [4, 1], strides = [1, 1]} : vector<4x16xf32> to vector<4x1xf32>
    %740 = arith.subf %736, %694 : vector<4x128xf32>
    %741 = vector.broadcast %739 : vector<4x1xf32> to vector<4x128xf32>
    %742 = arith.mulf %741, %740 : vector<4x128xf32>
    %743 = arith.addf %694, %742 : vector<4x128xf32>
    %744 = arith.subf %738, %698 : vector<4x128xf32>
    %745 = vector.broadcast %739 : vector<4x1xf32> to vector<4x128xf32>
    %746 = arith.mulf %745, %744 : vector<4x128xf32>
    %747 = arith.addf %698, %746 : vector<4x128xf32>
    %748 = vector.broadcast %739 : vector<4x1xf32> to vector<4x128xf32>
    %749 = arith.mulf %748, %738 : vector<4x128xf32>
    %750 = arith.addf %701, %749 : vector<4x128xf32>
    %c28_159 = arith.constant 28 : index
    %c0_160 = arith.constant 0 : index
    %751 = vector.load %arg15[%c28_159, %c0_160] : memref<32x512xf32, #tpu.memory_space<vmem>>, vector<2x512xf32>
    %c2_161 = arith.constant 2 : index
    %c0_162 = arith.constant 0 : index
    %752 = vector.load %arg16[%c2_161, %c0_162] : memref<32x512xf32, #tpu.memory_space<vmem>>, vector<2x512xf32>
    %753 = tpu.concatenate %751, %752 in 0 : vector<2x512xf32>, vector<2x512xf32> -> vector<4x512xf32>
    %754 = vector.broadcast %59 : vector<4x1xf32> to vector<4x128xf32>
    %755 = arith.mulf %747, %754 : vector<4x128xf32>
    %756 = vector.broadcast %61 : vector<4x1xf32> to vector<4x128xf32>
    %757 = arith.mulf %747, %756 : vector<4x128xf32>
    %758 = tpu.concatenate %755, %757 in 1 : vector<4x128xf32>, vector<4x128xf32> -> vector<4x256xf32>
    %759 = arith.truncf %758 : vector<4x256xf32> to vector<4x256xbf16>
    %c0_163 = arith.constant 0 : index
    %c0_164 = arith.constant 0 : index
    %760 = vector.load %arg11[%c0_163, %c0_164] : memref<256x512xbf16, #tpu.memory_space<vmem>>, vector<256x512xbf16>
    %cst_165 = arith.constant dense<0.000000e+00> : vector<4x512xf32>
    %761 = tpu.matmul %759, %760, %cst_165 {dimension_numbers = #tpu.dot_dimension_numbers<[1], [0], [0], [1], [0, 0, 1, 1], [], []>} : vector<4x256xbf16>, vector<256x512xbf16>, vector<4x512xf32> -> vector<4x512xf32>
    %762 = arith.addf %753, %761 : vector<4x512xf32>
    %763 = vector.extract_strided_slice %762 {offsets = [0, 0], sizes = [4, 128], strides = [1, 1]} : vector<4x512xf32> to vector<4x128xf32>
    %764 = arith.negf %763 : vector<4x128xf32>
    %765 = math.exp %764 : vector<4x128xf32>
    %cst_166 = arith.constant 1.000000e+00 : f32
    %766 = vector.broadcast %cst_166 : f32 to vector<4x128xf32>
    %767 = arith.addf %766, %765 : vector<4x128xf32>
    %768 = arith.divf %766, %767 : vector<4x128xf32>
    %769 = vector.extract_strided_slice %762 {offsets = [0, 128], sizes = [4, 128], strides = [1, 1]} : vector<4x512xf32> to vector<4x128xf32>
    %770 = arith.negf %769 : vector<4x128xf32>
    %771 = math.exp %770 : vector<4x128xf32>
    %cst_167 = arith.constant 1.000000e+00 : f32
    %772 = vector.broadcast %cst_167 : f32 to vector<4x128xf32>
    %773 = arith.addf %772, %771 : vector<4x128xf32>
    %774 = arith.divf %772, %773 : vector<4x128xf32>
    %775 = vector.extract_strided_slice %762 {offsets = [0, 256], sizes = [4, 128], strides = [1, 1]} : vector<4x512xf32> to vector<4x128xf32>
    %776 = math.tanh %775 : vector<4x128xf32>
    %777 = vector.extract_strided_slice %762 {offsets = [0, 384], sizes = [4, 128], strides = [1, 1]} : vector<4x512xf32> to vector<4x128xf32>
    %778 = arith.negf %777 : vector<4x128xf32>
    %779 = math.exp %778 : vector<4x128xf32>
    %cst_168 = arith.constant 1.000000e+00 : f32
    %780 = vector.broadcast %cst_168 : f32 to vector<4x128xf32>
    %781 = arith.addf %780, %779 : vector<4x128xf32>
    %782 = arith.divf %780, %781 : vector<4x128xf32>
    %783 = arith.mulf %774, %743 : vector<4x128xf32>
    %784 = arith.mulf %768, %776 : vector<4x128xf32>
    %785 = arith.addf %783, %784 : vector<4x128xf32>
    %786 = math.tanh %785 : vector<4x128xf32>
    %787 = arith.mulf %782, %786 : vector<4x128xf32>
    %788 = vector.extract_strided_slice %54 {offsets = [0, 14], sizes = [4, 1], strides = [1, 1]} : vector<4x16xf32> to vector<4x1xf32>
    %789 = arith.subf %785, %743 : vector<4x128xf32>
    %790 = vector.broadcast %788 : vector<4x1xf32> to vector<4x128xf32>
    %791 = arith.mulf %790, %789 : vector<4x128xf32>
    %792 = arith.addf %743, %791 : vector<4x128xf32>
    %793 = arith.subf %787, %747 : vector<4x128xf32>
    %794 = vector.broadcast %788 : vector<4x1xf32> to vector<4x128xf32>
    %795 = arith.mulf %794, %793 : vector<4x128xf32>
    %796 = arith.addf %747, %795 : vector<4x128xf32>
    %797 = vector.broadcast %788 : vector<4x1xf32> to vector<4x128xf32>
    %798 = arith.mulf %797, %787 : vector<4x128xf32>
    %799 = arith.addf %750, %798 : vector<4x128xf32>
    %c30_169 = arith.constant 30 : index
    %c0_170 = arith.constant 0 : index
    %800 = vector.load %arg15[%c30_169, %c0_170] : memref<32x512xf32, #tpu.memory_space<vmem>>, vector<2x512xf32>
    %c0_171 = arith.constant 0 : index
    %c0_172 = arith.constant 0 : index
    %801 = vector.load %arg16[%c0_171, %c0_172] : memref<32x512xf32, #tpu.memory_space<vmem>>, vector<2x512xf32>
    %802 = tpu.concatenate %800, %801 in 0 : vector<2x512xf32>, vector<2x512xf32> -> vector<4x512xf32>
    %803 = vector.broadcast %59 : vector<4x1xf32> to vector<4x128xf32>
    %804 = arith.mulf %796, %803 : vector<4x128xf32>
    %805 = vector.broadcast %61 : vector<4x1xf32> to vector<4x128xf32>
    %806 = arith.mulf %796, %805 : vector<4x128xf32>
    %807 = tpu.concatenate %804, %806 in 1 : vector<4x128xf32>, vector<4x128xf32> -> vector<4x256xf32>
    %808 = arith.truncf %807 : vector<4x256xf32> to vector<4x256xbf16>
    %c0_173 = arith.constant 0 : index
    %c0_174 = arith.constant 0 : index
    %809 = vector.load %arg11[%c0_173, %c0_174] : memref<256x512xbf16, #tpu.memory_space<vmem>>, vector<256x512xbf16>
    %cst_175 = arith.constant dense<0.000000e+00> : vector<4x512xf32>
    %810 = tpu.matmul %808, %809, %cst_175 {dimension_numbers = #tpu.dot_dimension_numbers<[1], [0], [0], [1], [0, 0, 1, 1], [], []>} : vector<4x256xbf16>, vector<256x512xbf16>, vector<4x512xf32> -> vector<4x512xf32>
    %811 = arith.addf %802, %810 : vector<4x512xf32>
    %812 = vector.extract_strided_slice %811 {offsets = [0, 0], sizes = [4, 128], strides = [1, 1]} : vector<4x512xf32> to vector<4x128xf32>
    %813 = arith.negf %812 : vector<4x128xf32>
    %814 = math.exp %813 : vector<4x128xf32>
    %cst_176 = arith.constant 1.000000e+00 : f32
    %815 = vector.broadcast %cst_176 : f32 to vector<4x128xf32>
    %816 = arith.addf %815, %814 : vector<4x128xf32>
    %817 = arith.divf %815, %816 : vector<4x128xf32>
    %818 = vector.extract_strided_slice %811 {offsets = [0, 128], sizes = [4, 128], strides = [1, 1]} : vector<4x512xf32> to vector<4x128xf32>
    %819 = arith.negf %818 : vector<4x128xf32>
    %820 = math.exp %819 : vector<4x128xf32>
    %cst_177 = arith.constant 1.000000e+00 : f32
    %821 = vector.broadcast %cst_177 : f32 to vector<4x128xf32>
    %822 = arith.addf %821, %820 : vector<4x128xf32>
    %823 = arith.divf %821, %822 : vector<4x128xf32>
    %824 = vector.extract_strided_slice %811 {offsets = [0, 256], sizes = [4, 128], strides = [1, 1]} : vector<4x512xf32> to vector<4x128xf32>
    %825 = math.tanh %824 : vector<4x128xf32>
    %826 = vector.extract_strided_slice %811 {offsets = [0, 384], sizes = [4, 128], strides = [1, 1]} : vector<4x512xf32> to vector<4x128xf32>
    %827 = arith.negf %826 : vector<4x128xf32>
    %828 = math.exp %827 : vector<4x128xf32>
    %cst_178 = arith.constant 1.000000e+00 : f32
    %829 = vector.broadcast %cst_178 : f32 to vector<4x128xf32>
    %830 = arith.addf %829, %828 : vector<4x128xf32>
    %831 = arith.divf %829, %830 : vector<4x128xf32>
    %832 = arith.mulf %823, %792 : vector<4x128xf32>
    %833 = arith.mulf %817, %825 : vector<4x128xf32>
    %834 = arith.addf %832, %833 : vector<4x128xf32>
    %835 = math.tanh %834 : vector<4x128xf32>
    %836 = arith.mulf %831, %835 : vector<4x128xf32>
    %837 = vector.extract_strided_slice %54 {offsets = [0, 15], sizes = [4, 1], strides = [1, 1]} : vector<4x16xf32> to vector<4x1xf32>
    %838 = vector.broadcast %837 : vector<4x1xf32> to vector<4x128xf32>
    %839 = arith.mulf %838, %836 : vector<4x128xf32>
    %840 = arith.addf %799, %839 : vector<4x128xf32>
    %841 = arith.sitofp %42 : vector<2x1xi32> to vector<2x1xf32>
    %cst_179 = arith.constant 1.000000e+00 : f32
    %842 = vector.broadcast %cst_179 : f32 to vector<2x1xf32>
    %843 = arith.maximumf %841, %842 : vector<2x1xf32>
    %cst_180 = arith.constant 1.000000e+00 : f32
    %844 = vector.broadcast %cst_180 : f32 to vector<2x1xf32>
    %845 = arith.divf %844, %843 : vector<2x1xf32>
    %846 = vector.extract_strided_slice %840 {offsets = [0, 0], sizes = [2, 128], strides = [1, 1]} : vector<4x128xf32> to vector<2x128xf32>
    %847 = vector.extract_strided_slice %840 {offsets = [2, 0], sizes = [2, 128], strides = [1, 1]} : vector<4x128xf32> to vector<2x128xf32>
    %848 = tpu.concatenate %846, %847 in 1 : vector<2x128xf32>, vector<2x128xf32> -> vector<2x256xf32>
    %849 = vector.broadcast %845 : vector<2x1xf32> to vector<2x256xf32>
    %850 = arith.mulf %848, %849 : vector<2x256xf32>
    %851 = arith.truncf %850 : vector<2x256xf32> to vector<2x256xbf16>
    %c0_181 = arith.constant 0 : index
    %c0_182 = arith.constant 0 : index
    %852 = vector.load %arg12[%c0_181, %c0_182] : memref<256x8xbf16, #tpu.memory_space<vmem>>, vector<256x8xbf16>
    %cst_183 = arith.constant dense<0.000000e+00> : vector<2x8xf32>
    %853 = tpu.matmul %851, %852, %cst_183 {dimension_numbers = #tpu.dot_dimension_numbers<[1], [0], [0], [1], [0, 0, 1, 1], [], []>} : vector<2x256xbf16>, vector<256x8xbf16>, vector<2x8xf32> -> vector<2x8xf32>
    %c0_184 = arith.constant 0 : index
    %c0_185 = arith.constant 0 : index
    %854 = vector.load %arg13[%c0_184, %c0_185] : memref<1x8xf32, #tpu.memory_space<vmem>>, vector<1x8xf32>
    %855 = vector.broadcast %854 : vector<1x8xf32> to vector<2x8xf32>
    %856 = arith.addf %853, %855 : vector<2x8xf32>
    %c0_186 = arith.constant 0 : index
    %c0_187 = arith.constant 0 : index
    %857 = vector.load %arg14[%c0_186, %c0_187] : memref<2x8xf32, #tpu.memory_space<vmem>>, vector<2x8xf32>
    tpu.vector_store %arg14[%c0_186, %c0_187], %856 {strides = array<i32>} : memref<2x8xf32, #tpu.memory_space<vmem>>, vector<2x8xf32>,
    return
  }
  func.func @transform_0(%arg0: i32) -> (i32, i32) {
    %c0_i32 = arith.constant 0 : i32
    %c0_i32_0 = arith.constant 0 : i32
    %c0_i32_1 = arith.constant 0 : i32
    return %c0_i32, %c0_i32_0 : i32, i32
  }
  func.func @transform_1(%arg0: i32) -> (i32, i32) {
    %c0_i32 = arith.constant 0 : i32
    %c0_i32_0 = arith.constant 0 : i32
    %c0_i32_1 = arith.constant 0 : i32
    return %c0_i32, %c0_i32_0 : i32, i32
  }
  func.func @transform_2(%arg0: i32) -> (i32, i32) {
    %c0_i32 = arith.constant 0 : i32
    %c0_i32_0 = arith.constant 0 : i32
    %c0_i32_1 = arith.constant 0 : i32
    return %c0_i32, %c0_i32_0 : i32, i32
  }
  func.func @transform_3(%arg0: i32) -> (i32, i32) {
    %c0_i32 = arith.constant 0 : i32
    %c0_i32_0 = arith.constant 0 : i32
    %c0_i32_1 = arith.constant 0 : i32
    return %c0_i32, %c0_i32_0 : i32, i32
  }
  func.func @transform_4(%arg0: i32) -> (i32, i32) {
    %c0_i32 = arith.constant 0 : i32
    %c0_i32_0 = arith.constant 0 : i32
    %c0_i32_1 = arith.constant 0 : i32
    return %c0_i32, %c0_i32_0 : i32, i32
  }
  func.func @transform_5(%arg0: i32) -> (i32, i32) {
    %c0_i32 = arith.constant 0 : i32
    %c0_i32_0 = arith.constant 0 : i32
    %c0_i32_1 = arith.constant 0 : i32
    return %c0_i32, %c0_i32_0 : i32, i32
  }
  func.func @transform_6(%arg0: i32) -> (i32, i32) {
    %c0_i32 = arith.constant 0 : i32
    %c0_i32_0 = arith.constant 0 : i32
    %c0_i32_1 = arith.constant 0 : i32
    return %c0_i32, %c0_i32_0 : i32, i32
  }
  func.func @transform_7(%arg0: i32) -> (i32, i32) {
    %c0_i32 = arith.constant 0 : i32
    %c0_i32_0 = arith.constant 0 : i32
    %c0_i32_1 = arith.constant 0 : i32
    return %c0_i32, %c0_i32_0 : i32, i32
  }
  func.func @transform_8(%arg0: i32) -> (i32, i32) {
    %c0_i32 = arith.constant 0 : i32
    %c0_i32_0 = arith.constant 0 : i32
    %c0_i32_1 = arith.constant 0 : i32
    return %c0_i32, %c0_i32_0 : i32, i32
  }
  func.func @transform_9(%arg0: i32) -> (i32, i32) {
    %c0_i32 = arith.constant 0 : i32
    %c0_i32_0 = arith.constant 0 : i32
    %c0_i32_1 = arith.constant 0 : i32
    return %c0_i32, %c0_i32_0 : i32, i32
  }
  func.func @transform_10(%arg0: i32) -> (i32, i32) {
    %c0_i32 = arith.constant 0 : i32
    %c0_i32_0 = arith.constant 0 : i32
    %c0_i32_1 = arith.constant 0 : i32
    return %c0_i32, %c0_i32_0 : i32, i32
  }
  func.func @transform_11(%arg0: i32) -> (i32, i32) {
    %c0_i32 = arith.constant 0 : i32
    %c0_i32_0 = arith.constant 0 : i32
    %c0_i32_1 = arith.constant 0 : i32
    return %c0_i32, %c0_i32_0 : i32, i32
  }
  func.func @transform_12(%arg0: i32) -> (i32, i32) {
    %c0_i32 = arith.constant 0 : i32
    %c0_i32_0 = arith.constant 0 : i32
    %c0_i32_1 = arith.constant 0 : i32
    return %c0_i32, %c0_i32_0 : i32, i32
  }
  func.func @transform_13(%arg0: i32) -> (i32, i32) {
    %c0_i32 = arith.constant 0 : i32
    %c0_i32_0 = arith.constant 0 : i32
    %c0_i32_1 = arith.constant 0 : i32
    return %c0_i32, %c0_i32_0 : i32, i32
  }
}

</mosaic_0001>

<llo_original>
// kernel: tpu_custom_call.1
$region0: #{tpu_custom_call.1}
  #allocation0 [shape = 'u32[]', space=smem, size = 0x4, offset = 0x4, fixed_abs, tag = 'smem constant byte address 0x4 - core index']
  #allocation1 [shape = 'u32[144,128]{1,0:T(1,128)}', space=vmem, size = 0x12000, scoped, tag = 'internal scratch']
  #allocation2 [shape = 'f32[32,512]{1,0:T(8,128)}', space=vmem, size = 0x10000, scoped, tag = 'scratch operand']
  #allocation3 [shape = 'f32[32,512]{1,0:T(8,128)}', space=vmem, size = 0x10000, scoped, tag = 'scratch operand']
  %s0 = inlined_call_operand.vmem [shape: s32[2,1], index: 0, kind: input, shape index: {}]
  %s1 = inlined_call_operand.vmem [shape: f32[32,128], index: 1, kind: input, shape index: {}]
  %s2 = inlined_call_operand.hbm [shape: bf16[384,128], index: 2, kind: input, shape index: {}]
  %s3 = inlined_call_operand.vmem [shape: f32[1,128], index: 3, kind: input, shape index: {}]
  %s4 = inlined_call_operand.hbm [shape: bf16[384,128], index: 4, kind: input, shape index: {}]
  %s5 = inlined_call_operand.vmem [shape: f32[1,128], index: 5, kind: input, shape index: {}]
  %s6 = inlined_call_operand.hbm [shape: bf16[128,512], index: 6, kind: input, shape index: {}]
  %s7 = inlined_call_operand.vmem [shape: f32[1,512], index: 7, kind: input, shape index: {}]
  %s8 = inlined_call_operand.hbm [shape: bf16[128,512], index: 8, kind: input, shape index: {}]
  %s9 = inlined_call_operand.vmem [shape: f32[1,512], index: 9, kind: input, shape index: {}]
  %s10 = inlined_call_operand.hbm [shape: bf16[256,512], index: 10, kind: input, shape index: {}]
  %s11 = inlined_call_operand.vmem [shape: bf16[256,8], index: 11, kind: input, shape index: {}]
  %s12 = inlined_call_operand.vmem [shape: f32[1,8], index: 12, kind: input, shape index: {}]
  %s13 = inlined_call_operand.hbm [shape: f32[2,8], index: 13, kind: output, shape index: {}]
  %s14 = sld [smem:[#allocation0]]
  $region82: #{tpu_custom_call.1} parent=0
    _
  %s16 = ssub.s32 1, %s14
  %s17 = scalar_select 0, %s16, %s14
  $region1: #{tpu_custom_call.1} parent=0
    #allocation4 [shape = 'u8[98304]{0}', space=vmem, size = 0x18000, scoped, tag = 'input window, operand 2, single buffered']
    #allocation5 [shape = 's32[1]{0}', space=sflag, size = 0x4, scoped, tag = 'scoped memory for tpu_custom_call.1']
    #allocation6 [shape = 's32[1]{0}', space=sflag, size = 0x4, scoped, tag = 'scoped memory for tpu_custom_call.1']
    #allocation7 [shape = 'u8[98304]{0}', space=vmem, size = 0x18000, scoped, tag = 'input window, operand 4, single buffered']
    #allocation8 [shape = 's32[1]{0}', space=sflag, size = 0x4, scoped, tag = 'scoped memory for tpu_custom_call.1']
    #allocation9 [shape = 'u8[131072]{0}', space=vmem, size = 0x20000, scoped, tag = 'input window, operand 6, single buffered']
    #allocation10 [shape = 'u8[131072]{0}', space=vmem, size = 0x20000, scoped, tag = 'input window, operand 8, single buffered']
    #allocation11 [shape = 's32[1]{0}', space=sflag, size = 0x4, scoped, tag = 'scoped memory for tpu_custom_call.1']
    #allocation12 [shape = 'u8[262144]{0}', space=vmem, size = 0x40000, scoped, tag = 'input window, operand 10, single buffered']
    #allocation13 [shape = 'u8[1024]{0}', space=vmem, size = 0x400, scoped, tag = 'output window, operand 0, single buffered']
    %18 = vsyncpa [#allocation5], 0
    %19 = vsyncpa [#allocation8], 0
    %20 = vsyncpa [#allocation11], 0
    %21 = vsyncpa [#allocation6], 0
    // Predicated region
    $region2: #{tpu_custom_call.1} parent=1 // pred_check
      _
    $region3: #{tpu_custom_call.1} parent=1 // pred_check_branch
      %23 = sbr.rel (0) target = $region5
    $region4: #{tpu_custom_call.1} parent=1 // pred_region
      _
    $region5: #{tpu_custom_call.1} parent=1 // pred_fallthru
      _
    // Predicated region
    $region6: #{tpu_custom_call.1} parent=1 // pred_check
      _
    $region7: #{tpu_custom_call.1} parent=1 // pred_check_branch
      %25 = sbr.rel (0) target = $region9
    $region8: #{tpu_custom_call.1} parent=1 // pred_region
      _
    $region9: #{tpu_custom_call.1} parent=1 // pred_fallthru
      _
    // Predicated region
    $region10: #{tpu_custom_call.1} parent=1 // pred_check
      _
    $region11: #{tpu_custom_call.1} parent=1 // pred_check_branch
      %27 = sbr.rel (0) target = $region13
    $region12: #{tpu_custom_call.1} parent=1 // pred_region
      %s29 = ssub.s32 3072, 3072
      %30 = vsyncadd [#allocation5], %s29
      %s31 = sshll.u32 [#allocation4], 4
      %s32 = int_to_ptr.vmem [resolvable:$true] %s31
      %37 = dma.hbm_to_vmem [thread:$0]  %s2, 3072, %s32, [#allocation5], 64, 64, 4
    $region13: #{tpu_custom_call.1} parent=1 // pred_fallthru
      _
    // Predicated region
    $region14: #{tpu_custom_call.1} parent=1 // pred_check
      _
    $region15: #{tpu_custom_call.1} parent=1 // pred_check_branch
      %39 = sbr.rel (0) target = $region17
    $region16: #{tpu_custom_call.1} parent=1 // pred_region
      _
    $region17: #{tpu_custom_call.1} parent=1 // pred_fallthru
      _
    // Predicated region
    $region18: #{tpu_custom_call.1} parent=1 // pred_check
      _
    $region19: #{tpu_custom_call.1} parent=1 // pred_check_branch
      %41 = sbr.rel (0) target = $region21
    $region20: #{tpu_custom_call.1} parent=1 // pred_region
      %s43 = ssub.s32 3072, 3072
      %44 = vsyncadd [#allocation8], %s43
      %s45 = sshll.u32 [#allocation7], 4
      %s46 = int_to_ptr.vmem [resolvable:$true] %s45
      %51 = dma.hbm_to_vmem [thread:$0]  %s4, 3072, %s46, [#allocation8], 64, 64, 4
    $region21: #{tpu_custom_call.1} parent=1 // pred_fallthru
      _
    // Predicated region
    $region22: #{tpu_custom_call.1} parent=1 // pred_check
      _
    $region23: #{tpu_custom_call.1} parent=1 // pred_check_branch
      %53 = sbr.rel (0) target = $region25
    $region24: #{tpu_custom_call.1} parent=1 // pred_region
      _
    $region25: #{tpu_custom_call.1} parent=1 // pred_fallthru
      _
    // Predicated region
    $region26: #{tpu_custom_call.1} parent=1 // pred_check
      _
    $region27: #{tpu_custom_call.1} parent=1 // pred_check_branch
      %55 = sbr.rel (0) target = $region29
    $region28: #{tpu_custom_call.1} parent=1 // pred_region
      %s57 = ssub.s32 4096, 4096
      %58 = vsyncadd [#allocation8], %s57
      %s59 = sshll.u32 [#allocation9], 4
      %s60 = int_to_ptr.vmem [resolvable:$true] %s59
      %65 = dma.hbm_to_vmem [thread:$0]  %s6, 4096, %s60, [#allocation8], 256, 256, 16
    $region29: #{tpu_custom_call.1} parent=1 // pred_fallthru
      _
    // Predicated region
    $region30: #{tpu_custom_call.1} parent=1 // pred_check
      _
    $region31: #{tpu_custom_call.1} parent=1 // pred_check_branch
      %67 = sbr.rel (0) target = $region33
    $region32: #{tpu_custom_call.1} parent=1 // pred_region
      _
    $region33: #{tpu_custom_call.1} parent=1 // pred_fallthru
      _
    // Predicated region
    $region34: #{tpu_custom_call.1} parent=1 // pred_check
      _
    $region35: #{tpu_custom_call.1} parent=1 // pred_check_branch
      %69 = sbr.rel (0) target = $region37
    $region36: #{tpu_custom_call.1} parent=1 // pred_region
      %s71 = ssub.s32 4096, 4096
      %72 = vsyncadd [#allocation11], %s71
      %s73 = sshll.u32 [#allocation10], 4
      %s74 = int_to_ptr.vmem [resolvable:$true] %s73
      %79 = dma.hbm_to_vmem [thread:$0]  %s8, 4096, %s74, [#allocation11], 256, 256, 16
    $region37: #{tpu_custom_call.1} parent=1 // pred_fallthru
      _
    // Predicated region
    $region38: #{tpu_custom_call.1} parent=1 // pred_check
      _
    $region39: #{tpu_custom_call.1} parent=1 // pred_check_branch
      %81 = sbr.rel (0) target = $region41
    $region40: #{tpu_custom_call.1} parent=1 // pred_region
      _
    $region41: #{tpu_custom_call.1} parent=1 // pred_fallthru
      _
    // Predicated region
    $region42: #{tpu_custom_call.1} parent=1 // pred_check
      _
    $region43: #{tpu_custom_call.1} parent=1 // pred_check_branch
      %83 = sbr.rel (0) target = $region45
    $region44: #{tpu_custom_call.1} parent=1 // pred_region
      %s85 = ssub.s32 8192, 8192
      %86 = vsyncadd [#allocation11], %s85
      %s87 = sshll.u32 [#allocation12], 4
      %s88 = int_to_ptr.vmem [resolvable:$true] %s87
      %93 = dma.hbm_to_vmem [thread:$0]  %s10, 8192, %s88, [#allocation11], 256, 256, 16
    $region45: #{tpu_custom_call.1} parent=1 // pred_fallthru
      _
    // Predicated region
    $region46: #{tpu_custom_call.1} parent=1 // pred_check
      _
    $region47: #{tpu_custom_call.1} parent=1 // pred_check_branch
      %95 = sbr.rel (0) target = $region49
    $region48: #{tpu_custom_call.1} parent=1 // pred_region
      _
    $region49: #{tpu_custom_call.1} parent=1 // pred_fallthru
      _
    // Predicated region
    $region50: #{tpu_custom_call.1} parent=1 // pred_check
      _
    $region51: #{tpu_custom_call.1} parent=1 // pred_check_branch
      %97 = sbr.rel (0) target = $region53
    $region52: #{tpu_custom_call.1} parent=1 // pred_region
      _
    $region53: #{tpu_custom_call.1} parent=1 // pred_fallthru
      _
    // Predicated region
    $region54: #{tpu_custom_call.1} parent=1 // pred_check
      _
    $region55: #{tpu_custom_call.1} parent=1 // pred_check_branch
      %99 = sbr.rel (0) target = $region57
    $region56: #{tpu_custom_call.1} parent=1 // pred_region
      %100 = dma.done [#allocation5], 3072
    $region57: #{tpu_custom_call.1} parent=1 // pred_fallthru
      _
    // Predicated region
    $region58: #{tpu_custom_call.1} parent=1 // pred_check
      _
    $region59: #{tpu_custom_call.1} parent=1 // pred_check_branch
      %102 = sbr.rel (0) target = $region61
    $region60: #{tpu_custom_call.1} parent=1 // pred_region
      %103 = dma.done [#allocation8], 3072
    $region61: #{tpu_custom_call.1} parent=1 // pred_fallthru
      _
    // Predicated region
    $region62: #{tpu_custom_call.1} parent=1 // pred_check
      _
    $region63: #{tpu_custom_call.1} parent=1 // pred_check_branch
      %105 = sbr.rel (0) target = $region65
    $region64: #{tpu_custom_call.1} parent=1 // pred_region
      %106 = dma.done [#allocation8], 4096
    $region65: #{tpu_custom_call.1} parent=1 // pred_fallthru
      _
    // Predicated region
    $region66: #{tpu_custom_call.1} parent=1 // pred_check
      _
    $region67: #{tpu_custom_call.1} parent=1 // pred_check_branch
      %108 = sbr.rel (0) target = $region69
    $region68: #{tpu_custom_call.1} parent=1 // pred_region
      %109 = dma.done [#allocation11], 4096
    $region69: #{tpu_custom_call.1} parent=1 // pred_fallthru
      _
    // Predicated region
    $region70: #{tpu_custom_call.1} parent=1 // pred_check
      _
    $region71: #{tpu_custom_call.1} parent=1 // pred_check_branch
      %111 = sbr.rel (0) target = $region73
    $region72: #{tpu_custom_call.1} parent=1 // pred_region
      %112 = dma.done [#allocation11], 8192
    $region73: #{tpu_custom_call.1} parent=1 // pred_fallthru
      _
    %v114 = vld [vmem:[%s1] sm:$0xff]
    %v115 = vld [vmem:[%s1 + $0x8] sm:$0xff]
    %v116 = vld [vmem:[%s1 + $0x10] sm:$0xff]
    %v117 = vld [vmem:[%s1 + $0x18] sm:$0xff]
    %vm122 = vcmask 1041408
    %v123 = vrot.slane %v114, 6
    %v124 = vrot.slane %v115, 6
    %v125 = vsel %vm122, %v123, %v124
    %v126 = vrot.slane %v116, 6
    %v127 = vsel %vm122, %v124, %v126
    %v128 = vrot.slane %v117, 6
    %v129 = vsel %vm122, %v126, %v128
    %v134 = vsel %vm122, 0.0, %v123
    %vm135 = vcmask 1045504
    %v136 = vrot.slane %v114, 2
    %v137 = vrot.slane %v115, 2
    %v138 = vsel %vm135, %v136, %v137
    %v139 = vrot.slane %v116, 2
    %v140 = vsel %vm135, %v137, %v139
    %v141 = vrot.slane %v117, 2
    %v142 = vsel %vm135, %v139, %v141
    %v147 = vsel %vm135, %v141, 0.0
    %v148 = vpack.c.bf16 %v125, %v134
    %v149 = vpack.c.bf16 %v115, %v114
    %v150 = vpack.c.bf16 %v140, %v138
    %v151 = vpack.c.bf16 %v129, %v127
    %v152 = vpack.c.bf16 %v117, %v116
    %v153 = vpack.c.bf16 %v147, %v142
    %v154 = vld [vmem:[#allocation4] sm:$0xf]
    %v155 = vld [vmem:[#allocation4 + $0x4] sm:$0xf]
    %v156 = vld [vmem:[#allocation4 + $0x8] sm:$0xf]
    %v157 = vld [vmem:[#allocation4 + $0xc] sm:$0xf]
    %v158 = vld [vmem:[#allocation4 + $0x10] sm:$0xf]
    %v159 = vld [vmem:[#allocation4 + $0x14] sm:$0xf]
    %v160 = vld [vmem:[#allocation4 + $0x18] sm:$0xf]
    %v161 = vld [vmem:[#allocation4 + $0x1c] sm:$0xf]
    %v162 = vld [vmem:[#allocation4 + $0x20] sm:$0xf]
    %v163 = vld [vmem:[#allocation4 + $0x24] sm:$0xf]
    %v164 = vld [vmem:[#allocation4 + $0x28] sm:$0xf]
    %v165 = vld [vmem:[#allocation4 + $0x2c] sm:$0xf]
    %v166 = vld [vmem:[#allocation4 + $0x30] sm:$0xf]
    %v167 = vld [vmem:[#allocation4 + $0x34] sm:$0xf]
    %v168 = vld [vmem:[#allocation4 + $0x38] sm:$0xf]
    %v169 = vld [vmem:[#allocation4 + $0x3c] sm:$0xf]
    %v170 = vld [vmem:[#allocation4 + $0x40] sm:$0xf]
    %v171 = vld [vmem:[#allocation4 + $0x44] sm:$0xf]
    %v172 = vld [vmem:[#allocation4 + $0x48] sm:$0xf]
    %v173 = vld [vmem:[#allocation4 + $0x4c] sm:$0xf]
    %v174 = vld [vmem:[#allocation4 + $0x50] sm:$0xf]
    %v175 = vld [vmem:[#allocation4 + $0x54] sm:$0xf]
    %v176 = vld [vmem:[#allocation4 + $0x58] sm:$0xf]
    %v177 = vld [vmem:[#allocation4 + $0x5c] sm:$0xf]
    %v178 = vld [vmem:[#allocation4 + $0x60] sm:$0xf]
    %v179 = vld [vmem:[#allocation4 + $0x64] sm:$0xf]
    %v180 = vld [vmem:[#allocation4 + $0x68] sm:$0xf]
    %v181 = vld [vmem:[#allocation4 + $0x6c] sm:$0xf]
    %v182 = vld [vmem:[#allocation4 + $0x70] sm:$0xf]
    %v183 = vld [vmem:[#allocation4 + $0x74] sm:$0xf]
    %v184 = vld [vmem:[#allocation4 + $0x78] sm:$0xf]
    %v185 = vld [vmem:[#allocation4 + $0x7c] sm:$0xf]
    %v186 = vld [vmem:[#allocation4 + $0x80] sm:$0xf]
    %v187 = vld [vmem:[#allocation4 + $0x84] sm:$0xf]
    %v188 = vld [vmem:[#allocation4 + $0x88] sm:$0xf]
    %v189 = vld [vmem:[#allocation4 + $0x8c] sm:$0xf]
    %v190 = vld [vmem:[#allocation4 + $0x90] sm:$0xf]
    %v191 = vld [vmem:[#allocation4 + $0x94] sm:$0xf]
    %v192 = vld [vmem:[#allocation4 + $0x98] sm:$0xf]
    %v193 = vld [vmem:[#allocation4 + $0x9c] sm:$0xf]
    %v194 = vld [vmem:[#allocation4 + $0xa0] sm:$0xf]
    %v195 = vld [vmem:[#allocation4 + $0xa4] sm:$0xf]
    %v196 = vld [vmem:[#allocation4 + $0xa8] sm:$0xf]
    %v197 = vld [vmem:[#allocation4 + $0xac] sm:$0xf]
    %v198 = vld [vmem:[#allocation4 + $0xb0] sm:$0xf]
    %v199 = vld [vmem:[#allocation4 + $0xb4] sm:$0xf]
    %v200 = vld [vmem:[#allocation4 + $0xb8] sm:$0xf]
    %v201 = vld [vmem:[#allocation4 + $0xbc] sm:$0xf]
    %v202 = vld [vmem:[%s3] sm:$0x1]
    %v204 = vlaneseq
    %v205 = vshrl.u32 %v204, 7
    %v206 = vsub.s32 0, %v205
    %v207 = vrot.slane %v202, %v206
    %v257 = vunpack.c.l.b16 %v154
    %v258 = vunpack.c.l.b16 %v155
    %v259 = vunpack.c.l.b16 %v156
    %v260 = vunpack.c.l.b16 %v157
    %v261 = vunpack.c.l.b16 %v158
    %v262 = vunpack.c.l.b16 %v159
    %v263 = vunpack.c.l.b16 %v160
    %v264 = vunpack.c.l.b16 %v161
    %v265 = vunpack.c.l.b16 %v162
    %v266 = vunpack.c.l.b16 %v163
    %v267 = vunpack.c.l.b16 %v164
    %v268 = vunpack.c.l.b16 %v165
    %v269 = vunpack.c.l.b16 %v166
    %v270 = vunpack.c.l.b16 %v167
    %v271 = vunpack.c.l.b16 %v168
    %v272 = vunpack.c.l.b16 %v169
    %v273 = vunpack.c.l.b16 %v170
    %v274 = vunpack.c.l.b16 %v171
    %v275 = vunpack.c.l.b16 %v172
    %v276 = vunpack.c.l.b16 %v173
    %v277 = vunpack.c.l.b16 %v174
    %v278 = vunpack.c.l.b16 %v175
    %v279 = vunpack.c.l.b16 %v176
    %v280 = vunpack.c.l.b16 %v177
    %v281 = vunpack.c.l.b16 %v178
    %v282 = vunpack.c.l.b16 %v179
    %v283 = vunpack.c.l.b16 %v180
    %v284 = vunpack.c.l.b16 %v181
    %v285 = vunpack.c.l.b16 %v182
    %v286 = vunpack.c.l.b16 %v183
    %v287 = vunpack.c.l.b16 %v184
    %v288 = vunpack.c.l.b16 %v185
    %v289 = vunpack.c.l.b16 %v186
    %v290 = vunpack.c.l.b16 %v187
    %v291 = vunpack.c.l.b16 %v188
    %v292 = vunpack.c.l.b16 %v189
    %v293 = vunpack.c.l.b16 %v190
    %v294 = vunpack.c.l.b16 %v191
    %v295 = vunpack.c.l.b16 %v192
    %v296 = vunpack.c.l.b16 %v193
    %v297 = vunpack.c.l.b16 %v194
    %v298 = vunpack.c.l.b16 %v195
    %v299 = vunpack.c.l.b16 %v196
    %v300 = vunpack.c.l.b16 %v197
    %v301 = vunpack.c.l.b16 %v198
    %v302 = vunpack.c.l.b16 %v199
    %v303 = vunpack.c.l.b16 %v200
    %v304 = vunpack.c.l.b16 %v201
    %v305 = vpack.c.b16 %v258, %v257
    %v306 = vpack.c.b16 %v260, %v259
    %v307 = vpack.c.b16 %v262, %v261
    %v308 = vpack.c.b16 %v264, %v263
    %v309 = vpack.c.b16 %v266, %v265
    %v310 = vpack.c.b16 %v268, %v267
    %v311 = vpack.c.b16 %v270, %v269
    %v312 = vpack.c.b16 %v272, %v271
    %v313 = vpack.c.b16 %v274, %v273
    %v314 = vpack.c.b16 %v276, %v275
    %v315 = vpack.c.b16 %v278, %v277
    %v316 = vpack.c.b16 %v280, %v279
    %v317 = vpack.c.b16 %v282, %v281
    %v318 = vpack.c.b16 %v284, %v283
    %v319 = vpack.c.b16 %v286, %v285
    %v320 = vpack.c.b16 %v288, %v287
    %v321 = vpack.c.b16 %v290, %v289
    %v322 = vpack.c.b16 %v292, %v291
    %v323 = vpack.c.b16 %v294, %v293
    %v324 = vpack.c.b16 %v296, %v295
    %v325 = vpack.c.b16 %v298, %v297
    %v326 = vpack.c.b16 %v300, %v299
    %v327 = vpack.c.b16 %v302, %v301
    %v328 = vpack.c.b16 %v304, %v303
    %353 = vmatprep.subr.bf16.mxu0 0
    %354 = vmatpush1.bf16.msra.mxu0 %v312
    %355 = vmatprep.subr.bf16.mxu0 0
    %356 = vmatpush1.bf16.msra.mxu0 %v311
    %357 = vmatprep.subr.bf16.mxu0 0
    %358 = vmatpush1.bf16.msra.mxu0 %v310
    %359 = vmatprep.subr.bf16.mxu0 0
    %360 = vmatpush1.bf16.msra.mxu0 %v309
    %361 = vmatprep.subr.bf16.mxu0 0
    %362 = vmatpush1.bf16.msra.mxu0 %v308
    %363 = vmatprep.subr.bf16.mxu0 0
    %364 = vmatpush1.bf16.msra.mxu0 %v307
    %365 = vmatprep.subr.bf16.mxu0 0
    %366 = vmatpush1.bf16.msra.mxu0 %v306
    %367 = vmatprep.subr.bf16.mxu0 0
    %368 = vmatpush1.bf16.msra.mxu0 %v305
    %369 = vmatprep.subr.bf16.mxu0 0
    %370 = vmatpush2.bf16.msra.mxu0 %v320
    %371 = vmatprep.subr.bf16.mxu0 0
    %372 = vmatpush2.bf16.msra.mxu0 %v319
    %373 = vmatprep.subr.bf16.mxu0 0
    %374 = vmatpush2.bf16.msra.mxu0 %v318
    %375 = vmatprep.subr.bf16.mxu0 0
    %376 = vmatpush2.bf16.msra.mxu0 %v317
    %377 = vmatprep.subr.bf16.mxu0 0
    %378 = vmatpush2.bf16.msra.mxu0 %v316
    %379 = vmatprep.subr.bf16.mxu0 0
    %380 = vmatpush2.bf16.msra.mxu0 %v315
    %381 = vmatprep.subr.bf16.mxu0 0
    %382 = vmatpush2.bf16.msra.mxu0 %v314
    %383 = vmatprep.subr.bf16.mxu0 0
    %384 = vmatpush2.bf16.msra.mxu0 %v313
    %385 = vmatprep.mubr.bf16.mxu0 %v149
    %386 = vmatmul.mubr.bf16.gmra.mxu0 %v148
    %v387 = vpop.f32.mrf.mxu0
    %v388 = vadd.f32 %v207, %v387
    %v389 = vpop.f32.mrf.mxu0
    %v390 = vpop.f32.mrf.mxu0
    %v391 = vadd.f32 %v207, %v390
    %v392 = vpop.f32.mrf.mxu0
    %393 = vmatprep.mubr.bf16.mxu0 %v152
    %394 = vmatmul.mubr.bf16.gmra.mxu0 %v151
    %v395 = vpop.f32.mrf.mxu0
    %v396 = vadd.f32 %v207, %v395
    %v397 = vpop.f32.mrf.mxu0
    %v398 = vpop.f32.mrf.mxu0
    %v399 = vadd.f32 %v207, %v398
    %v400 = vpop.f32.mrf.mxu0
    %401 = vdwg.mxu0
    %402 = vmatprep.subr.bf16.mxu0 0
    %403 = vmatpush1.bf16.msra.mxu0 %v328
    %404 = vmatprep.subr.bf16.mxu0 0
    %405 = vmatpush1.bf16.msra.mxu0 %v327
    %406 = vmatprep.subr.bf16.mxu0 0
    %407 = vmatpush1.bf16.msra.mxu0 %v326
    %408 = vmatprep.subr.bf16.mxu0 0
    %409 = vmatpush1.bf16.msra.mxu0 %v325
    %410 = vmatprep.subr.bf16.mxu0 0
    %411 = vmatpush1.bf16.msra.mxu0 %v324
    %412 = vmatprep.subr.bf16.mxu0 0
    %413 = vmatpush1.bf16.msra.mxu0 %v323
    %414 = vmatprep.subr.bf16.mxu0 0
    %415 = vmatpush1.bf16.msra.mxu0 %v322
    %416 = vmatprep.subr.bf16.mxu0 0
    %417 = vmatpush1.bf16.msra.mxu0 %v321
    %418 = vmatprep.subr.bf16.mxu0 0
    %419 = vmatpush2.bf16.msra.mxu0 0
    %420 = vmatprep.subr.bf16.mxu0 0
    %421 = vmatpush2.bf16.msra.mxu0 0
    %422 = vmatprep.subr.bf16.mxu0 0
    %423 = vmatpush2.bf16.msra.mxu0 0
    %424 = vmatprep.subr.bf16.mxu0 0
    %425 = vmatpush2.bf16.msra.mxu0 0
    %426 = vmatprep.subr.bf16.mxu0 0
    %427 = vmatpush2.bf16.msra.mxu0 0
    %428 = vmatprep.subr.bf16.mxu0 0
    %429 = vmatpush2.bf16.msra.mxu0 0
    %430 = vmatprep.subr.bf16.mxu0 0
    %431 = vmatpush2.bf16.msra.mxu0 0
    %432 = vmatprep.subr.bf16.mxu0 0
    %433 = vmatpush2.bf16.msra.mxu0 0
    %434 = vmatprep.mubr.bf16.mxu0 0
    %435 = vmatmul.mubr.bf16.gmra.mxu0 %v150
    %v436 = vpop.f32.mrf.mxu0
    %v437 = vadd.f32 %v388, %v436
    %v438 = vpop.f32.mrf.mxu0
    %v439 = vpop.f32.mrf.mxu0
    %v440 = vadd.f32 %v391, %v439
    %v441 = vpop.f32.mrf.mxu0
    %442 = vmatprep.mubr.bf16.mxu0 0
    %443 = vmatmul.mubr.bf16.gmra.mxu0 %v153
    %v444 = vpop.f32.mrf.mxu0
    %v445 = vadd.f32 %v396, %v444
    %v446 = vpop.f32.mrf.mxu0
    %v447 = vpop.f32.mrf.mxu0
    %v448 = vadd.f32 %v399, %v447
    %v449 = vpop.f32.mrf.mxu0
    %450 = vdwg.mxu0
    %v451 = vmax.f32 %v437, 0.0
    %v452 = vmax.f32 %v440, 0.0
    %v453 = vmax.f32 %v445, 0.0
    %v454 = vmax.f32 %v448, 0.0
    %v459 = vrot.slane %v451, 6
    %v460 = vrot.slane %v452, 6
    %v461 = vsel %vm122, %v459, %v460
    %v462 = vrot.slane %v453, 6
    %v463 = vsel %vm122, %v460, %v462
    %v464 = vrot.slane %v454, 6
    %v465 = vsel %vm122, %v462, %v464
    %v470 = vsel %vm122, 0.0, %v459
    %v471 = vrot.slane %v451, 2
    %v472 = vrot.slane %v452, 2
    %v473 = vsel %vm135, %v471, %v472
    %v474 = vrot.slane %v453, 2
    %v475 = vsel %vm135, %v472, %v474
    %v476 = vrot.slane %v454, 2
    %v477 = vsel %vm135, %v474, %v476
    %v482 = vsel %vm135, %v476, 0.0
    %v483 = vpack.c.bf16 %v461, %v470
    %v484 = vpack.c.bf16 %v452, %v451
    %v485 = vpack.c.bf16 %v475, %v473
    %v486 = vpack.c.bf16 %v465, %v463
    %v487 = vpack.c.bf16 %v454, %v453
    %v488 = vpack.c.bf16 %v482, %v477
    %v489 = vld [vmem:[#allocation7] sm:$0xf]
    %v490 = vld [vmem:[#allocation7 + $0x4] sm:$0xf]
    %v491 = vld [vmem:[#allocation7 + $0x8] sm:$0xf]
    %v492 = vld [vmem:[#allocation7 + $0xc] sm:$0xf]
    %v493 = vld [vmem:[#allocation7 + $0x10] sm:$0xf]
    %v494 = vld [vmem:[#allocation7 + $0x14] sm:$0xf]
    %v495 = vld [vmem:[#allocation7 + $0x18] sm:$0xf]
    %v496 = vld [vmem:[#allocation7 + $0x1c] sm:$0xf]
    %v497 = vld [vmem:[#allocation7 + $0x20] sm:$0xf]
    %v498 = vld [vmem:[#allocation7 + $0x24] sm:$0xf]
    %v499 = vld [vmem:[#allocation7 + $0x28] sm:$0xf]
    %v500 = vld [vmem:[#allocation7 + $0x2c] sm:$0xf]
    %v501 = vld [vmem:[#allocation7 + $0x30] sm:$0xf]
    %v502 = vld [vmem:[#allocation7 + $0x34] sm:$0xf]
    %v503 = vld [vmem:[#allocation7 + $0x38] sm:$0xf]
    %v504 = vld [vmem:[#allocation7 + $0x3c] sm:$0xf]
    %v505 = vld [vmem:[#allocation7 + $0x40] sm:$0xf]
    %v506 = vld [vmem:[#allocation7 + $0x44] sm:$0xf]
    %v507 = vld [vmem:[#allocation7 + $0x48] sm:$0xf]
    %v508 = vld [vmem:[#allocation7 + $0x4c] sm:$0xf]
    %v509 = vld [vmem:[#allocation7 + $0x50] sm:$0xf]
    %v510 = vld [vmem:[#allocation7 + $0x54] sm:$0xf]
    %v511 = vld [vmem:[#allocation7 + $0x58] sm:$0xf]
    %v512 = vld [vmem:[#allocation7 + $0x5c] sm:$0xf]
    %v513 = vld [vmem:[#allocation7 + $0x60] sm:$0xf]
    %v514 = vld [vmem:[#allocation7 + $0x64] sm:$0xf]
    %v515 = vld [vmem:[#allocation7 + $0x68] sm:$0xf]
    %v516 = vld [vmem:[#allocation7 + $0x6c] sm:$0xf]
    %v517 = vld [vmem:[#allocation7 + $0x70] sm:$0xf]
    %v518 = vld [vmem:[#allocation7 + $0x74] sm:$0xf]
    %v519 = vld [vmem:[#allocation7 + $0x78] sm:$0xf]
    %v520 = vld [vmem:[#allocation7 + $0x7c] sm:$0xf]
    %v521 = vld [vmem:[#allocation7 + $0x80] sm:$0xf]
    %v522 = vld [vmem:[#allocation7 + $0x84] sm:$0xf]
    %v523 = vld [vmem:[#allocation7 + $0x88] sm:$0xf]
    %v524 = vld [vmem:[#allocation7 + $0x8c] sm:$0xf]
    %v525 = vld [vmem:[#allocation7 + $0x90] sm:$0xf]
    %v526 = vld [vmem:[#allocation7 + $0x94] sm:$0xf]
    %v527 = vld [vmem:[#allocation7 + $0x98] sm:$0xf]
    %v528 = vld [vmem:[#allocation7 + $0x9c] sm:$0xf]
    %v529 = vld [vmem:[#allocation7 + $0xa0] sm:$0xf]
    %v530 = vld [vmem:[#allocation7 + $0xa4] sm:$0xf]
    %v531 = vld [vmem:[#allocation7 + $0xa8] sm:$0xf]
    %v532 = vld [vmem:[#allocation7 + $0xac] sm:$0xf]
    %v533 = vld [vmem:[#allocation7 + $0xb0] sm:$0xf]
    %v534 = vld [vmem:[#allocation7 + $0xb4] sm:$0xf]
    %v535 = vld [vmem:[#allocation7 + $0xb8] sm:$0xf]
    %v536 = vld [vmem:[#allocation7 + $0xbc] sm:$0xf]
    %v537 = vld [vmem:[%s5] sm:$0x1]
    %v539 = vlaneseq
    %v540 = vshrl.u32 %v539, 7
    %v541 = vsub.s32 0, %v540
    %v542 = vrot.slane %v537, %v541
    %v592 = vunpack.c.l.b16 %v489
    %v593 = vunpack.c.l.b16 %v490
    %v594 = vunpack.c.l.b16 %v491
    %v595 = vunpack.c.l.b16 %v492
    %v596 = vunpack.c.l.b16 %v493
    %v597 = vunpack.c.l.b16 %v494
    %v598 = vunpack.c.l.b16 %v495
    %v599 = vunpack.c.l.b16 %v496
    %v600 = vunpack.c.l.b16 %v497
    %v601 = vunpack.c.l.b16 %v498
    %v602 = vunpack.c.l.b16 %v499
    %v603 = vunpack.c.l.b16 %v500
    %v604 = vunpack.c.l.b16 %v501
    %v605 = vunpack.c.l.b16 %v502
    %v606 = vunpack.c.l.b16 %v503
    %v607 = vunpack.c.l.b16 %v504
    %v608 = vunpack.c.l.b16 %v505
    %v609 = vunpack.c.l.b16 %v506
    %v610 = vunpack.c.l.b16 %v507
    %v611 = vunpack.c.l.b16 %v508
    %v612 = vunpack.c.l.b16 %v509
    %v613 = vunpack.c.l.b16 %v510
    %v614 = vunpack.c.l.b16 %v511
    %v615 = vunpack.c.l.b16 %v512
    %v616 = vunpack.c.l.b16 %v513
    %v617 = vunpack.c.l.b16 %v514
    %v618 = vunpack.c.l.b16 %v515
    %v619 = vunpack.c.l.b16 %v516
    %v620 = vunpack.c.l.b16 %v517
    %v621 = vunpack.c.l.b16 %v518
    %v622 = vunpack.c.l.b16 %v519
    %v623 = vunpack.c.l.b16 %v520
    %v624 = vunpack.c.l.b16 %v521
    %v625 = vunpack.c.l.b16 %v522
    %v626 = vunpack.c.l.b16 %v523
    %v627 = vunpack.c.l.b16 %v524
    %v628 = vunpack.c.l.b16 %v525
    %v629 = vunpack.c.l.b16 %v526
    %v630 = vunpack.c.l.b16 %v527
    %v631 = vunpack.c.l.b16 %v528
    %v632 = vunpack.c.l.b16 %v529
    %v633 = vunpack.c.l.b16 %v530
    %v634 = vunpack.c.l.b16 %v531
    %v635 = vunpack.c.l.b16 %v532
    %v636 = vunpack.c.l.b16 %v533
    %v637 = vunpack.c.l.b16 %v534
    %v638 = vunpack.c.l.b16 %v535
    %v639 = vunpack.c.l.b16 %v536
    %v640 = vpack.c.b16 %v593, %v592
    %v641 = vpack.c.b16 %v595, %v594
    %v642 = vpack.c.b16 %v597, %v596
    %v643 = vpack.c.b16 %v599, %v598
    %v644 = vpack.c.b16 %v601, %v600
    %v645 = vpack.c.b16 %v603, %v602
    %v646 = vpack.c.b16 %v605, %v604
    %v647 = vpack.c.b16 %v607, %v606
    %v648 = vpack.c.b16 %v609, %v608
    %v649 = vpack.c.b16 %v611, %v610
    %v650 = vpack.c.b16 %v613, %v612
    %v651 = vpack.c.b16 %v615, %v614
    %v652 = vpack.c.b16 %v617, %v616
    %v653 = vpack.c.b16 %v619, %v618
    %v654 = vpack.c.b16 %v621, %v620
    %v655 = vpack.c.b16 %v623, %v622
    %v656 = vpack.c.b16 %v625, %v624
    %v657 = vpack.c.b16 %v627, %v626
    %v658 = vpack.c.b16 %v629, %v628
    %v659 = vpack.c.b16 %v631, %v630
    %v660 = vpack.c.b16 %v633, %v632
    %v661 = vpack.c.b16 %v635, %v634
    %v662 = vpack.c.b16 %v637, %v636
    %v663 = vpack.c.b16 %v639, %v638
    %688 = vmatprep.subr.bf16.mxu0 0
    %689 = vmatpush1.bf16.msra.mxu0 %v647
    %690 = vmatprep.subr.bf16.mxu0 0
    %691 = vmatpush1.bf16.msra.mxu0 %v646
    %692 = vmatprep.subr.bf16.mxu0 0
    %693 = vmatpush1.bf16.msra.mxu0 %v645
    %694 = vmatprep.subr.bf16.mxu0 0
    %695 = vmatpush1.bf16.msra.mxu0 %v644
    %696 = vmatprep.subr.bf16.mxu0 0
    %697 = vmatpush1.bf16.msra.mxu0 %v643
    %698 = vmatprep.subr.bf16.mxu0 0
    %699 = vmatpush1.bf16.msra.mxu0 %v642
    %700 = vmatprep.subr.bf16.mxu0 0
    %701 = vmatpush1.bf16.msra.mxu0 %v641
    %702 = vmatprep.subr.bf16.mxu0 0
    %703 = vmatpush1.bf16.msra.mxu0 %v640
    %704 = vmatprep.subr.bf16.mxu0 0
    %705 = vmatpush2.bf16.msra.mxu0 %v655
    %706 = vmatprep.subr.bf16.mxu0 0
    %707 = vmatpush2.bf16.msra.mxu0 %v654
    %708 = vmatprep.subr.bf16.mxu0 0
    %709 = vmatpush2.bf16.msra.mxu0 %v653
    %710 = vmatprep.subr.bf16.mxu0 0
    %711 = vmatpush2.bf16.msra.mxu0 %v652
    %712 = vmatprep.subr.bf16.mxu0 0
    %713 = vmatpush2.bf16.msra.mxu0 %v651
    %714 = vmatprep.subr.bf16.mxu0 0
    %715 = vmatpush2.bf16.msra.mxu0 %v650
    %716 = vmatprep.subr.bf16.mxu0 0
    %717 = vmatpush2.bf16.msra.mxu0 %v649
    %718 = vmatprep.subr.bf16.mxu0 0
    %719 = vmatpush2.bf16.msra.mxu0 %v648
    %720 = vmatprep.mubr.bf16.mxu0 %v484
    %721 = vmatmul.mubr.bf16.gmra.mxu0 %v483
    %v722 = vpop.f32.mrf.mxu0
    %v723 = vadd.f32 %v542, %v722
    %v724 = vpop.f32.mrf.mxu0
    %v725 = vpop.f32.mrf.mxu0
    %v726 = vadd.f32 %v542, %v725
    %v727 = vpop.f32.mrf.mxu0
    %728 = vmatprep.mubr.bf16.mxu0 %v487
    %729 = vmatmul.mubr.bf16.gmra.mxu0 %v486
    %v730 = vpop.f32.mrf.mxu0
    %v731 = vadd.f32 %v542, %v730
    %v732 = vpop.f32.mrf.mxu0
    %v733 = vpop.f32.mrf.mxu0
    %v734 = vadd.f32 %v542, %v733
    %v735 = vpop.f32.mrf.mxu0
    %736 = vdwg.mxu0
    %737 = vmatprep.subr.bf16.mxu0 0
    %738 = vmatpush1.bf16.msra.mxu0 %v663
    %739 = vmatprep.subr.bf16.mxu0 0
    %740 = vmatpush1.bf16.msra.mxu0 %v662
    %741 = vmatprep.subr.bf16.mxu0 0
    %742 = vmatpush1.bf16.msra.mxu0 %v661
    %743 = vmatprep.subr.bf16.mxu0 0
    %744 = vmatpush1.bf16.msra.mxu0 %v660
    %745 = vmatprep.subr.bf16.mxu0 0
    %746 = vmatpush1.bf16.msra.mxu0 %v659
    %747 = vmatprep.subr.bf16.mxu0 0
    %748 = vmatpush1.bf16.msra.mxu0 %v658
    %749 = vmatprep.subr.bf16.mxu0 0
    %750 = vmatpush1.bf16.msra.mxu0 %v657
    %751 = vmatprep.subr.bf16.mxu0 0
    %752 = vmatpush1.bf16.msra.mxu0 %v656
    %753 = vmatprep.subr.bf16.mxu0 0
    %754 = vmatpush2.bf16.msra.mxu0 0
    %755 = vmatprep.subr.bf16.mxu0 0
    %756 = vmatpush2.bf16.msra.mxu0 0
    %757 = vmatprep.subr.bf16.mxu0 0
    %758 = vmatpush2.bf16.msra.mxu0 0
    %759 = vmatprep.subr.bf16.mxu0 0
    %760 = vmatpush2.bf16.msra.mxu0 0
    %761 = vmatprep.subr.bf16.mxu0 0
    %762 = vmatpush2.bf16.msra.mxu0 0
    %763 = vmatprep.subr.bf16.mxu0 0
    %764 = vmatpush2.bf16.msra.mxu0 0
    %765 = vmatprep.subr.bf16.mxu0 0
    %766 = vmatpush2.bf16.msra.mxu0 0
    %767 = vmatprep.subr.bf16.mxu0 0
    %768 = vmatpush2.bf16.msra.mxu0 0
    %769 = vmatprep.mubr.bf16.mxu0 0
    %770 = vmatmul.mubr.bf16.gmra.mxu0 %v485
    %v771 = vpop.f32.mrf.mxu0
    %v772 = vadd.f32 %v723, %v771
    %v773 = vpop.f32.mrf.mxu0
    %v774 = vpop.f32.mrf.mxu0
    %v775 = vadd.f32 %v726, %v774
    %v776 = vpop.f32.mrf.mxu0
    %777 = vmatprep.mubr.bf16.mxu0 0
    %778 = vmatmul.mubr.bf16.gmra.mxu0 %v488
    %v779 = vpop.f32.mrf.mxu0
    %v780 = vadd.f32 %v731, %v779
    %v781 = vpop.f32.mrf.mxu0
    %v782 = vpop.f32.mrf.mxu0
    %v783 = vadd.f32 %v734, %v782
    %v784 = vpop.f32.mrf.mxu0
    %785 = vdwg.mxu0
    %v786 = vmax.f32 %v772, 0.0
    %v787 = vmax.f32 %v775, 0.0
    %v788 = vmax.f32 %v780, 0.0
    %v789 = vmax.f32 %v783, 0.0
    %v790 = vpack.c.bf16 %v787, %v786
    %v791 = vpack.c.bf16 %v789, %v788
    %v792 = vld [vmem:[#allocation9] sm:$0xff]
    %v793 = vld [vmem:[#allocation9 + $0x8] sm:$0xff]
    %v794 = vld [vmem:[#allocation9 + $0x10] sm:$0xff]
    %v795 = vld [vmem:[#allocation9 + $0x18] sm:$0xff]
    %v796 = vld [vmem:[#allocation9 + $0x20] sm:$0xff]
    %v797 = vld [vmem:[#allocation9 + $0x28] sm:$0xff]
    %v798 = vld [vmem:[#allocation9 + $0x30] sm:$0xff]
    %v799 = vld [vmem:[#allocation9 + $0x38] sm:$0xff]
    %v800 = vld [vmem:[#allocation9 + $0x40] sm:$0xff]
    %v801 = vld [vmem:[#allocation9 + $0x48] sm:$0xff]
    %v802 = vld [vmem:[#allocation9 + $0x50] sm:$0xff]
    %v803 = vld [vmem:[#allocation9 + $0x58] sm:$0xff]
    %v804 = vld [vmem:[#allocation9 + $0x60] sm:$0xff]
    %v805 = vld [vmem:[#allocation9 + $0x68] sm:$0xff]
    %v806 = vld [vmem:[#allocation9 + $0x70] sm:$0xff]
    %v807 = vld [vmem:[#allocation9 + $0x78] sm:$0xff]
    %v808 = vld [vmem:[#allocation9 + $0x80] sm:$0xff]
    %v809 = vld [vmem:[#allocation9 + $0x88] sm:$0xff]
    %v810 = vld [vmem:[#allocation9 + $0x90] sm:$0xff]
    %v811 = vld [vmem:[#allocation9 + $0x98] sm:$0xff]
    %v812 = vld [vmem:[#allocation9 + $0xa0] sm:$0xff]
    %v813 = vld [vmem:[#allocation9 + $0xa8] sm:$0xff]
    %v814 = vld [vmem:[#allocation9 + $0xb0] sm:$0xff]
    %v815 = vld [vmem:[#allocation9 + $0xb8] sm:$0xff]
    %v816 = vld [vmem:[#allocation9 + $0xc0] sm:$0xff]
    %v817 = vld [vmem:[#allocation9 + $0xc8] sm:$0xff]
    %v818 = vld [vmem:[#allocation9 + $0xd0] sm:$0xff]
    %v819 = vld [vmem:[#allocation9 + $0xd8] sm:$0xff]
    %v820 = vld [vmem:[#allocation9 + $0xe0] sm:$0xff]
    %v821 = vld [vmem:[#allocation9 + $0xe8] sm:$0xff]
    %v822 = vld [vmem:[#allocation9 + $0xf0] sm:$0xff]
    %v823 = vld [vmem:[#allocation9 + $0xf8] sm:$0xff]
    %v824 = vld [vmem:[%s7] sm:$0xf]
    %v826 = vlaneseq
    %v827 = vshrl.u32 %v826, 7
    %v828 = vsub.s32 0, %v827
    %v829 = vrot.slane %v824, %v828
    %v830 = vlaneseq
    %v831 = vshrl.u32 %v830, 7
    %v832 = vsub.s32 1, %v831
    %v833 = vrot.slane %v824, %v832
    %v834 = vlaneseq
    %v835 = vshrl.u32 %v834, 7
    %v836 = vsub.s32 2, %v835
    %v837 = vrot.slane %v824, %v836
    %v838 = vlaneseq
    %v839 = vshrl.u32 %v838, 7
    %v840 = vsub.s32 3, %v839
    %v841 = vrot.slane %v824, %v840
    %v878 = vunpack.c.l.b16 %v792
    %v879 = vunpack.c.h.b16 %v792
    %v880 = vunpack.c.l.b16 %v793
    %v881 = vunpack.c.h.b16 %v793
    %v882 = vunpack.c.l.b16 %v794
    %v883 = vunpack.c.h.b16 %v794
    %v884 = vunpack.c.l.b16 %v795
    %v885 = vunpack.c.h.b16 %v795
    %v886 = vunpack.c.l.b16 %v796
    %v887 = vunpack.c.h.b16 %v796
    %v888 = vunpack.c.l.b16 %v797
    %v889 = vunpack.c.h.b16 %v797
    %v890 = vunpack.c.l.b16 %v798
    %v891 = vunpack.c.h.b16 %v798
    %v892 = vunpack.c.l.b16 %v799
    %v893 = vunpack.c.h.b16 %v799
    %v894 = vunpack.c.l.b16 %v800
    %v895 = vunpack.c.h.b16 %v800
    %v896 = vunpack.c.l.b16 %v801
    %v897 = vunpack.c.h.b16 %v801
    %v898 = vunpack.c.l.b16 %v802
    %v899 = vunpack.c.h.b16 %v802
    %v900 = vunpack.c.l.b16 %v803
    %v901 = vunpack.c.h.b16 %v803
    %v902 = vunpack.c.l.b16 %v804
    %v903 = vunpack.c.h.b16 %v804
    %v904 = vunpack.c.l.b16 %v805
    %v905 = vunpack.c.h.b16 %v805
    %v906 = vunpack.c.l.b16 %v806
    %v907 = vunpack.c.h.b16 %v806
    %v908 = vunpack.c.l.b16 %v807
    %v909 = vunpack.c.h.b16 %v807
    %v910 = vunpack.c.l.b16 %v808
    %v911 = vunpack.c.h.b16 %v808
    %v912 = vunpack.c.l.b16 %v809
    %v913 = vunpack.c.h.b16 %v809
    %v914 = vunpack.c.l.b16 %v810
    %v915 = vunpack.c.h.b16 %v810
    %v916 = vunpack.c.l.b16 %v811
    %v917 = vunpack.c.h.b16 %v811
    %v918 = vunpack.c.l.b16 %v812
    %v919 = vunpack.c.h.b16 %v812
    %v920 = vunpack.c.l.b16 %v813
    %v921 = vunpack.c.h.b16 %v813
    %v922 = vunpack.c.l.b16 %v814
    %v923 = vunpack.c.h.b16 %v814
    %v924 = vunpack.c.l.b16 %v815
    %v925 = vunpack.c.h.b16 %v815
    %v926 = vunpack.c.l.b16 %v816
    %v927 = vunpack.c.h.b16 %v816
    %v928 = vunpack.c.l.b16 %v817
    %v929 = vunpack.c.h.b16 %v817
    %v930 = vunpack.c.l.b16 %v818
    %v931 = vunpack.c.h.b16 %v818
    %v932 = vunpack.c.l.b16 %v819
    %v933 = vunpack.c.h.b16 %v819
    %v934 = vunpack.c.l.b16 %v820
    %v935 = vunpack.c.h.b16 %v820
    %v936 = vunpack.c.l.b16 %v821
    %v937 = vunpack.c.h.b16 %v821
    %v938 = vunpack.c.l.b16 %v822
    %v939 = vunpack.c.h.b16 %v822
    %v940 = vunpack.c.l.b16 %v823
    %v941 = vunpack.c.h.b16 %v823
    %v942 = vpack.c.b16 %v882, %v878
    %v943 = vpack.c.b16 %v883, %v879
    %v944 = vpack.c.b16 %v884, %v880
    %v945 = vpack.c.b16 %v885, %v881
    %v946 = vpack.c.b16 %v890, %v886
    %v947 = vpack.c.b16 %v891, %v887
    %v948 = vpack.c.b16 %v892, %v888
    %v949 = vpack.c.b16 %v893, %v889
    %v950 = vpack.c.b16 %v898, %v894
    %v951 = vpack.c.b16 %v899, %v895
    %v952 = vpack.c.b16 %v900, %v896
    %v953 = vpack.c.b16 %v901, %v897
    %v954 = vpack.c.b16 %v906, %v902
    %v955 = vpack.c.b16 %v907, %v903
    %v956 = vpack.c.b16 %v908, %v904
    %v957 = vpack.c.b16 %v909, %v905
    %v958 = vpack.c.b16 %v914, %v910
    %v959 = vpack.c.b16 %v915, %v911
    %v960 = vpack.c.b16 %v916, %v912
    %v961 = vpack.c.b16 %v917, %v913
    %v962 = vpack.c.b16 %v922, %v918
    %v963 = vpack.c.b16 %v923, %v919
    %v964 = vpack.c.b16 %v924, %v920
    %v965 = vpack.c.b16 %v925, %v921
    %v966 = vpack.c.b16 %v930, %v926
    %v967 = vpack.c.b16 %v931, %v927
    %v968 = vpack.c.b16 %v932, %v928
    %v969 = vpack.c.b16 %v933, %v929
    %v970 = vpack.c.b16 %v938, %v934
    %v971 = vpack.c.b16 %v939, %v935
    %v972 = vpack.c.b16 %v940, %v936
    %v973 = vpack.c.b16 %v941, %v937
    %1006 = vmatprep.subr.bf16.mxu0 %v971
    %1007 = vmatpush1.bf16.msra.mxu0 %v970
    %1008 = vmatprep.subr.bf16.mxu0 %v967
    %1009 = vmatpush1.bf16.msra.mxu0 %v966
    %1010 = vmatprep.subr.bf16.mxu0 %v963
    %1011 = vmatpush1.bf16.msra.mxu0 %v962
    %1012 = vmatprep.subr.bf16.mxu0 %v959
    %1013 = vmatpush1.bf16.msra.mxu0 %v958
    %1014 = vmatprep.subr.bf16.mxu0 %v955
    %1015 = vmatpush1.bf16.msra.mxu0 %v954
    %1016 = vmatprep.subr.bf16.mxu0 %v951
    %1017 = vmatpush1.bf16.msra.mxu0 %v950
    %1018 = vmatprep.subr.bf16.mxu0 %v947
    %1019 = vmatpush1.bf16.msra.mxu0 %v946
    %1020 = vmatprep.subr.bf16.mxu0 %v943
    %1021 = vmatpush1.bf16.msra.mxu0 %v942
    %1022 = vmatprep.subr.bf16.mxu0 0
    %1023 = vmatpush2.bf16.msra.mxu0 0
    %1024 = vmatprep.subr.bf16.mxu0 0
    %1025 = vmatpush2.bf16.msra.mxu0 0
    %1026 = vmatprep.subr.bf16.mxu0 0
    %1027 = vmatpush2.bf16.msra.mxu0 0
    %1028 = vmatprep.subr.bf16.mxu0 0
    %1029 = vmatpush2.bf16.msra.mxu0 0
    %1030 = vmatprep.subr.bf16.mxu0 0
    %1031 = vmatpush2.bf16.msra.mxu0 0
    %1032 = vmatprep.subr.bf16.mxu0 0
    %1033 = vmatpush2.bf16.msra.mxu0 0
    %1034 = vmatprep.subr.bf16.mxu0 0
    %1035 = vmatpush2.bf16.msra.mxu0 0
    %1036 = vmatprep.subr.bf16.mxu0 0
    %1037 = vmatpush2.bf16.msra.mxu0 0
    %1038 = vmatprep.mubr.bf16.mxu0 0
    %1039 = vmatmul.mubr.bf16.gmra.mxu0 %v790
    %v1040 = vpop.f32.mrf.mxu0
    %v1041 = vadd.f32 %v829, %v1040
    %v1042 = vpop.f32.mrf.mxu0
    %v1043 = vadd.f32 %v833, %v1042
    %v1044 = vpop.f32.mrf.mxu0
    %v1045 = vadd.f32 %v829, %v1044
    %v1046 = vpop.f32.mrf.mxu0
    %v1047 = vadd.f32 %v833, %v1046
    %1048 = vmatprep.mubr.bf16.mxu0 0
    %1049 = vmatmul.mubr.bf16.gmra.mxu0 %v791
    %v1050 = vpop.f32.mrf.mxu0
    %v1051 = vadd.f32 %v829, %v1050
    %v1052 = vpop.f32.mrf.mxu0
    %v1053 = vadd.f32 %v833, %v1052
    %v1054 = vpop.f32.mrf.mxu0
    %v1055 = vadd.f32 %v829, %v1054
    %v1056 = vpop.f32.mrf.mxu0
    %v1057 = vadd.f32 %v833, %v1056
    %1058 = vdwg.mxu0
    %1059 = vmatprep.subr.bf16.mxu0 %v973
    %1060 = vmatpush1.bf16.msra.mxu0 %v972
    %1061 = vmatprep.subr.bf16.mxu0 %v969
    %1062 = vmatpush1.bf16.msra.mxu0 %v968
    %1063 = vmatprep.subr.bf16.mxu0 %v965
    %1064 = vmatpush1.bf16.msra.mxu0 %v964
    %1065 = vmatprep.subr.bf16.mxu0 %v961
    %1066 = vmatpush1.bf16.msra.mxu0 %v960
    %1067 = vmatprep.subr.bf16.mxu0 %v957
    %1068 = vmatpush1.bf16.msra.mxu0 %v956
    %1069 = vmatprep.subr.bf16.mxu0 %v953
    %1070 = vmatpush1.bf16.msra.mxu0 %v952
    %1071 = vmatprep.subr.bf16.mxu0 %v949
    %1072 = vmatpush1.bf16.msra.mxu0 %v948
    %1073 = vmatprep.subr.bf16.mxu0 %v945
    %1074 = vmatpush1.bf16.msra.mxu0 %v944
    %1075 = vmatprep.subr.bf16.mxu0 0
    %1076 = vmatpush2.bf16.msra.mxu0 0
    %1077 = vmatprep.subr.bf16.mxu0 0
    %1078 = vmatpush2.bf16.msra.mxu0 0
    %1079 = vmatprep.subr.bf16.mxu0 0
    %1080 = vmatpush2.bf16.msra.mxu0 0
    %1081 = vmatprep.subr.bf16.mxu0 0
    %1082 = vmatpush2.bf16.msra.mxu0 0
    %1083 = vmatprep.subr.bf16.mxu0 0
    %1084 = vmatpush2.bf16.msra.mxu0 0
    %1085 = vmatprep.subr.bf16.mxu0 0
    %1086 = vmatpush2.bf16.msra.mxu0 0
    %1087 = vmatprep.subr.bf16.mxu0 0
    %1088 = vmatpush2.bf16.msra.mxu0 0
    %1089 = vmatprep.subr.bf16.mxu0 0
    %1090 = vmatpush2.bf16.msra.mxu0 0
    %1091 = vmatprep.mubr.bf16.mxu0 0
    %1092 = vmatmul.mubr.bf16.gmra.mxu0 %v790
    %v1093 = vpop.f32.mrf.mxu0
    %v1094 = vadd.f32 %v837, %v1093
    %v1095 = vpop.f32.mrf.mxu0
    %v1096 = vadd.f32 %v841, %v1095
    %v1097 = vpop.f32.mrf.mxu0
    %v1098 = vadd.f32 %v837, %v1097
    %v1099 = vpop.f32.mrf.mxu0
    %v1100 = vadd.f32 %v841, %v1099
    %1101 = vmatprep.mubr.bf16.mxu0 0
    %1102 = vmatmul.mubr.bf16.gmra.mxu0 %v791
    %v1103 = vpop.f32.mrf.mxu0
    %v1104 = vadd.f32 %v837, %v1103
    %v1105 = vpop.f32.mrf.mxu0
    %v1106 = vadd.f32 %v841, %v1105
    %v1107 = vpop.f32.mrf.mxu0
    %v1108 = vadd.f32 %v837, %v1107
    %v1109 = vpop.f32.mrf.mxu0
    %v1110 = vadd.f32 %v841, %v1109
    %1111 = vdwg.mxu0
    %1112 = vst [vmem:[#allocation2] sm:$0xff] %v1041
    %1113 = vst [vmem:[#allocation2 + $0x8] sm:$0xff] %v1043
    %1114 = vst [vmem:[#allocation2 + $0x10] sm:$0xff] %v1094
    %1115 = vst [vmem:[#allocation2 + $0x18] sm:$0xff] %v1096
    %1116 = vst [vmem:[#allocation2 + $0x20] sm:$0xff] %v1045
    %1117 = vst [vmem:[#allocation2 + $0x28] sm:$0xff] %v1047
    %1118 = vst [vmem:[#allocation2 + $0x30] sm:$0xff] %v1098
    %1119 = vst [vmem:[#allocation2 + $0x38] sm:$0xff] %v1100
    %1120 = vst [vmem:[#allocation2 + $0x40] sm:$0xff] %v1051
    %1121 = vst [vmem:[#allocation2 + $0x48] sm:$0xff] %v1053
    %1122 = vst [vmem:[#allocation2 + $0x50] sm:$0xff] %v1104
    %1123 = vst [vmem:[#allocation2 + $0x58] sm:$0xff] %v1106
    %1124 = vst [vmem:[#allocation2 + $0x60] sm:$0xff] %v1055
    %1125 = vst [vmem:[#allocation2 + $0x68] sm:$0xff] %v1057
    %1126 = vst [vmem:[#allocation2 + $0x70] sm:$0xff] %v1108
    %1127 = vst [vmem:[#allocation2 + $0x78] sm:$0xff] %v1110
    %v1128 = vld [vmem:[#allocation10] sm:$0xff]
    %v1129 = vld [vmem:[#allocation10 + $0x8] sm:$0xff]
    %v1130 = vld [vmem:[#allocation10 + $0x10] sm:$0xff]
    %v1131 = vld [vmem:[#allocation10 + $0x18] sm:$0xff]
    %v1132 = vld [vmem:[#allocation10 + $0x20] sm:$0xff]
    %v1133 = vld [vmem:[#allocation10 + $0x28] sm:$0xff]
    %v1134 = vld [vmem:[#allocation10 + $0x30] sm:$0xff]
    %v1135 = vld [vmem:[#allocation10 + $0x38] sm:$0xff]
    %v1136 = vld [vmem:[#allocation10 + $0x40] sm:$0xff]
    %v1137 = vld [vmem:[#allocation10 + $0x48] sm:$0xff]
    %v1138 = vld [vmem:[#allocation10 + $0x50] sm:$0xff]
    %v1139 = vld [vmem:[#allocation10 + $0x58] sm:$0xff]
    %v1140 = vld [vmem:[#allocation10 + $0x60] sm:$0xff]
    %v1141 = vld [vmem:[#allocation10 + $0x68] sm:$0xff]
    %v1142 = vld [vmem:[#allocation10 + $0x70] sm:$0xff]
    %v1143 = vld [vmem:[#allocation10 + $0x78] sm:$0xff]
    %v1144 = vld [vmem:[#allocation10 + $0x80] sm:$0xff]
    %v1145 = vld [vmem:[#allocation10 + $0x88] sm:$0xff]
    %v1146 = vld [vmem:[#allocation10 + $0x90] sm:$0xff]
    %v1147 = vld [vmem:[#allocation10 + $0x98] sm:$0xff]
    %v1148 = vld [vmem:[#allocation10 + $0xa0] sm:$0xff]
    %v1149 = vld [vmem:[#allocation10 + $0xa8] sm:$0xff]
    %v1150 = vld [vmem:[#allocation10 + $0xb0] sm:$0xff]
    %v1151 = vld [vmem:[#allocation10 + $0xb8] sm:$0xff]
    %v1152 = vld [vmem:[#allocation10 + $0xc0] sm:$0xff]
    %v1153 = vld [vmem:[#allocation10 + $0xc8] sm:$0xff]
    %v1154 = vld [vmem:[#allocation10 + $0xd0] sm:$0xff]
    %v1155 = vld [vmem:[#allocation10 + $0xd8] sm:$0xff]
    %v1156 = vld [vmem:[#allocation10 + $0xe0] sm:$0xff]
    %v1157 = vld [vmem:[#allocation10 + $0xe8] sm:$0xff]
    %v1158 = vld [vmem:[#allocation10 + $0xf0] sm:$0xff]
    %v1159 = vld [vmem:[#allocation10 + $0xf8] sm:$0xff]
    %v1160 = vld [vmem:[%s9] sm:$0xf]
    %v1162 = vlaneseq
    %v1163 = vshrl.u32 %v1162, 7
    %v1164 = vsub.s32 0, %v1163
    %v1165 = vrot.slane %v1160, %v1164
    %v1166 = vlaneseq
    %v1167 = vshrl.u32 %v1166, 7
    %v1168 = vsub.s32 1, %v1167
    %v1169 = vrot.slane %v1160, %v1168
    %v1170 = vlaneseq
    %v1171 = vshrl.u32 %v1170, 7
    %v1172 = vsub.s32 2, %v1171
    %v1173 = vrot.slane %v1160, %v1172
    %v1174 = vlaneseq
    %v1175 = vshrl.u32 %v1174, 7
    %v1176 = vsub.s32 3, %v1175
    %v1177 = vrot.slane %v1160, %v1176
    %v1214 = vunpack.c.l.b16 %v1128
    %v1215 = vunpack.c.h.b16 %v1128
    %v1216 = vunpack.c.l.b16 %v1129
    %v1217 = vunpack.c.h.b16 %v1129
    %v1218 = vunpack.c.l.b16 %v1130
    %v1219 = vunpack.c.h.b16 %v1130
    %v1220 = vunpack.c.l.b16 %v1131
    %v1221 = vunpack.c.h.b16 %v1131
    %v1222 = vunpack.c.l.b16 %v1132
    %v1223 = vunpack.c.h.b16 %v1132
    %v1224 = vunpack.c.l.b16 %v1133
    %v1225 = vunpack.c.h.b16 %v1133
    %v1226 = vunpack.c.l.b16 %v1134
    %v1227 = vunpack.c.h.b16 %v1134
    %v1228 = vunpack.c.l.b16 %v1135
    %v1229 = vunpack.c.h.b16 %v1135
    %v1230 = vunpack.c.l.b16 %v1136
    %v1231 = vunpack.c.h.b16 %v1136
    %v1232 = vunpack.c.l.b16 %v1137
    %v1233 = vunpack.c.h.b16 %v1137
    %v1234 = vunpack.c.l.b16 %v1138
    %v1235 = vunpack.c.h.b16 %v1138
    %v1236 = vunpack.c.l.b16 %v1139
    %v1237 = vunpack.c.h.b16 %v1139
    %v1238 = vunpack.c.l.b16 %v1140
    %v1239 = vunpack.c.h.b16 %v1140
    %v1240 = vunpack.c.l.b16 %v1141
    %v1241 = vunpack.c.h.b16 %v1141
    %v1242 = vunpack.c.l.b16 %v1142
    %v1243 = vunpack.c.h.b16 %v1142
    %v1244 = vunpack.c.l.b16 %v1143
    %v1245 = vunpack.c.h.b16 %v1143
    %v1246 = vunpack.c.l.b16 %v1144
    %v1247 = vunpack.c.h.b16 %v1144
    %v1248 = vunpack.c.l.b16 %v1145
    %v1249 = vunpack.c.h.b16 %v1145
    %v1250 = vunpack.c.l.b16 %v1146
    %v1251 = vunpack.c.h.b16 %v1146
    %v1252 = vunpack.c.l.b16 %v1147
    %v1253 = vunpack.c.h.b16 %v1147
    %v1254 = vunpack.c.l.b16 %v1148
    %v1255 = vunpack.c.h.b16 %v1148
    %v1256 = vunpack.c.l.b16 %v1149
    %v1257 = vunpack.c.h.b16 %v1149
    %v1258 = vunpack.c.l.b16 %v1150
    %v1259 = vunpack.c.h.b16 %v1150
    %v1260 = vunpack.c.l.b16 %v1151
    %v1261 = vunpack.c.h.b16 %v1151
    %v1262 = vunpack.c.l.b16 %v1152
    %v1263 = vunpack.c.h.b16 %v1152
    %v1264 = vunpack.c.l.b16 %v1153
    %v1265 = vunpack.c.h.b16 %v1153
    %v1266 = vunpack.c.l.b16 %v1154
    %v1267 = vunpack.c.h.b16 %v1154
    %v1268 = vunpack.c.l.b16 %v1155
    %v1269 = vunpack.c.h.b16 %v1155
    %v1270 = vunpack.c.l.b16 %v1156
    %v1271 = vunpack.c.h.b16 %v1156
    %v1272 = vunpack.c.l.b16 %v1157
    %v1273 = vunpack.c.h.b16 %v1157
    %v1274 = vunpack.c.l.b16 %v1158
    %v1275 = vunpack.c.h.b16 %v1158
    %v1276 = vunpack.c.l.b16 %v1159
    %v1277 = vunpack.c.h.b16 %v1159
    %v1278 = vpack.c.b16 %v1218, %v1214
    %v1279 = vpack.c.b16 %v1219, %v1215
    %v1280 = vpack.c.b16 %v1220, %v1216
    %v1281 = vpack.c.b16 %v1221, %v1217
    %v1282 = vpack.c.b16 %v1226, %v1222
    %v1283 = vpack.c.b16 %v1227, %v1223
    %v1284 = vpack.c.b16 %v1228, %v1224
    %v1285 = vpack.c.b16 %v1229, %v1225
    %v1286 = vpack.c.b16 %v1234, %v1230
    %v1287 = vpack.c.b16 %v1235, %v1231
    %v1288 = vpack.c.b16 %v1236, %v1232
    %v1289 = vpack.c.b16 %v1237, %v1233
    %v1290 = vpack.c.b16 %v1242, %v1238
    %v1291 = vpack.c.b16 %v1243, %v1239
    %v1292 = vpack.c.b16 %v1244, %v1240
    %v1293 = vpack.c.b16 %v1245, %v1241
    %v1294 = vpack.c.b16 %v1250, %v1246
    %v1295 = vpack.c.b16 %v1251, %v1247
    %v1296 = vpack.c.b16 %v1252, %v1248
    %v1297 = vpack.c.b16 %v1253, %v1249
    %v1298 = vpack.c.b16 %v1258, %v1254
    %v1299 = vpack.c.b16 %v1259, %v1255
    %v1300 = vpack.c.b16 %v1260, %v1256
    %v1301 = vpack.c.b16 %v1261, %v1257
    %v1302 = vpack.c.b16 %v1266, %v1262
    %v1303 = vpack.c.b16 %v1267, %v1263
    %v1304 = vpack.c.b16 %v1268, %v1264
    %v1305 = vpack.c.b16 %v1269, %v1265
    %v1306 = vpack.c.b16 %v1274, %v1270
    %v1307 = vpack.c.b16 %v1275, %v1271
    %v1308 = vpack.c.b16 %v1276, %v1272
    %v1309 = vpack.c.b16 %v1277, %v1273
    %1342 = vmatprep.subr.bf16.mxu0 %v1307
    %1343 = vmatpush1.bf16.msra.mxu0 %v1306
    %1344 = vmatprep.subr.bf16.mxu0 %v1303
    %1345 = vmatpush1.bf16.msra.mxu0 %v1302
    %1346 = vmatprep.subr.bf16.mxu0 %v1299
    %1347 = vmatpush1.bf16.msra.mxu0 %v1298
    %1348 = vmatprep.subr.bf16.mxu0 %v1295
    %1349 = vmatpush1.bf16.msra.mxu0 %v1294
    %1350 = vmatprep.subr.bf16.mxu0 %v1291
    %1351 = vmatpush1.bf16.msra.mxu0 %v1290
    %1352 = vmatprep.subr.bf16.mxu0 %v1287
    %1353 = vmatpush1.bf16.msra.mxu0 %v1286
    %1354 = vmatprep.subr.bf16.mxu0 %v1283
    %1355 = vmatpush1.bf16.msra.mxu0 %v1282
    %1356 = vmatprep.subr.bf16.mxu0 %v1279
    %1357 = vmatpush1.bf16.msra.mxu0 %v1278
    %1358 = vmatprep.subr.bf16.mxu0 0
    %1359 = vmatpush2.bf16.msra.mxu0 0
    %1360 = vmatprep.subr.bf16.mxu0 0
    %1361 = vmatpush2.bf16.msra.mxu0 0
    %1362 = vmatprep.subr.bf16.mxu0 0
    %1363 = vmatpush2.bf16.msra.mxu0 0
    %1364 = vmatprep.subr.bf16.mxu0 0
    %1365 = vmatpush2.bf16.msra.mxu0 0
    %1366 = vmatprep.subr.bf16.mxu0 0
    %1367 = vmatpush2.bf16.msra.mxu0 0
    %1368 = vmatprep.subr.bf16.mxu0 0
    %1369 = vmatpush2.bf16.msra.mxu0 0
    %1370 = vmatprep.subr.bf16.mxu0 0
    %1371 = vmatpush2.bf16.msra.mxu0 0
    %1372 = vmatprep.subr.bf16.mxu0 0
    %1373 = vmatpush2.bf16.msra.mxu0 0
    %1374 = vmatprep.mubr.bf16.mxu0 0
    %1375 = vmatmul.mubr.bf16.gmra.mxu0 %v790
    %v1376 = vpop.f32.mrf.mxu0
    %v1377 = vadd.f32 %v1165, %v1376
    %v1378 = vpop.f32.mrf.mxu0
    %v1379 = vadd.f32 %v1169, %v1378
    %v1380 = vpop.f32.mrf.mxu0
    %v1381 = vadd.f32 %v1165, %v1380
    %v1382 = vpop.f32.mrf.mxu0
    %v1383 = vadd.f32 %v1169, %v1382
    %1384 = vmatprep.mubr.bf16.mxu0 0
    %1385 = vmatmul.mubr.bf16.gmra.mxu0 %v791
    %v1386 = vpop.f32.mrf.mxu0
    %v1387 = vadd.f32 %v1165, %v1386
    %v1388 = vpop.f32.mrf.mxu0
    %v1389 = vadd.f32 %v1169, %v1388
    %v1390 = vpop.f32.mrf.mxu0
    %v1391 = vadd.f32 %v1165, %v1390
    %v1392 = vpop.f32.mrf.mxu0
    %v1393 = vadd.f32 %v1169, %v1392
    %1394 = vdwg.mxu0
    %1395 = vmatprep.subr.bf16.mxu0 %v1309
    %1396 = vmatpush1.bf16.msra.mxu0 %v1308
    %1397 = vmatprep.subr.bf16.mxu0 %v1305
    %1398 = vmatpush1.bf16.msra.mxu0 %v1304
    %1399 = vmatprep.subr.bf16.mxu0 %v1301
    %1400 = vmatpush1.bf16.msra.mxu0 %v1300
    %1401 = vmatprep.subr.bf16.mxu0 %v1297
    %1402 = vmatpush1.bf16.msra.mxu0 %v1296
    %1403 = vmatprep.subr.bf16.mxu0 %v1293
    %1404 = vmatpush1.bf16.msra.mxu0 %v1292
    %1405 = vmatprep.subr.bf16.mxu0 %v1289
    %1406 = vmatpush1.bf16.msra.mxu0 %v1288
    %1407 = vmatprep.subr.bf16.mxu0 %v1285
    %1408 = vmatpush1.bf16.msra.mxu0 %v1284
    %1409 = vmatprep.subr.bf16.mxu0 %v1281
    %1410 = vmatpush1.bf16.msra.mxu0 %v1280
    %1411 = vmatprep.subr.bf16.mxu0 0
    %1412 = vmatpush2.bf16.msra.mxu0 0
    %1413 = vmatprep.subr.bf16.mxu0 0
    %1414 = vmatpush2.bf16.msra.mxu0 0
    %1415 = vmatprep.subr.bf16.mxu0 0
    %1416 = vmatpush2.bf16.msra.mxu0 0
    %1417 = vmatprep.subr.bf16.mxu0 0
    %1418 = vmatpush2.bf16.msra.mxu0 0
    %1419 = vmatprep.subr.bf16.mxu0 0
    %1420 = vmatpush2.bf16.msra.mxu0 0
    %1421 = vmatprep.subr.bf16.mxu0 0
    %1422 = vmatpush2.bf16.msra.mxu0 0
    %1423 = vmatprep.subr.bf16.mxu0 0
    %1424 = vmatpush2.bf16.msra.mxu0 0
    %1425 = vmatprep.subr.bf16.mxu0 0
    %1426 = vmatpush2.bf16.msra.mxu0 0
    %1427 = vmatprep.mubr.bf16.mxu0 0
    %1428 = vmatmul.mubr.bf16.gmra.mxu0 %v790
    %v1429 = vpop.f32.mrf.mxu0
    %v1430 = vadd.f32 %v1173, %v1429
    %v1431 = vpop.f32.mrf.mxu0
    %v1432 = vadd.f32 %v1177, %v1431
    %v1433 = vpop.f32.mrf.mxu0
    %v1434 = vadd.f32 %v1173, %v1433
    %v1435 = vpop.f32.mrf.mxu0
    %v1436 = vadd.f32 %v1177, %v1435
    %1437 = vmatprep.mubr.bf16.mxu0 0
    %1438 = vmatmul.mubr.bf16.gmra.mxu0 %v791
    %v1439 = vpop.f32.mrf.mxu0
    %v1440 = vadd.f32 %v1173, %v1439
    %v1441 = vpop.f32.mrf.mxu0
    %v1442 = vadd.f32 %v1177, %v1441
    %v1443 = vpop.f32.mrf.mxu0
    %v1444 = vadd.f32 %v1173, %v1443
    %v1445 = vpop.f32.mrf.mxu0
    %v1446 = vadd.f32 %v1177, %v1445
    %1447 = vdwg.mxu0
    %1448 = vst [vmem:[#allocation3] sm:$0xff] %v1377
    %1449 = vst [vmem:[#allocation3 + $0x8] sm:$0xff] %v1379
    %1450 = vst [vmem:[#allocation3 + $0x10] sm:$0xff] %v1430
    %1451 = vst [vmem:[#allocation3 + $0x18] sm:$0xff] %v1432
    %1452 = vst [vmem:[#allocation3 + $0x20] sm:$0xff] %v1381
    %1453 = vst [vmem:[#allocation3 + $0x28] sm:$0xff] %v1383
    %1454 = vst [vmem:[#allocation3 + $0x30] sm:$0xff] %v1434
    %1455 = vst [vmem:[#allocation3 + $0x38] sm:$0xff] %v1436
    %1456 = vst [vmem:[#allocation3 + $0x40] sm:$0xff] %v1387
    %1457 = vst [vmem:[#allocation3 + $0x48] sm:$0xff] %v1389
    %1458 = vst [vmem:[#allocation3 + $0x50] sm:$0xff] %v1440
    %1459 = vst [vmem:[#allocation3 + $0x58] sm:$0xff] %v1442
    %1460 = vst [vmem:[#allocation3 + $0x60] sm:$0xff] %v1391
    %1461 = vst [vmem:[#allocation3 + $0x68] sm:$0xff] %v1393
    %1462 = vst [vmem:[#allocation3 + $0x70] sm:$0xff] %v1444
    %1463 = vst [vmem:[#allocation3 + $0x78] sm:$0xff] %v1446
    %v1464 = vld [vmem:[%s0] sm:$0x3]
    %v1465 = vlaneseq
    %v1466 = vand.u32 %v1465, 127
    %1467 = vset.pattern.permute.xlu0 0
    %1468 = vperm.xlu0 %1467, %v1464
    %v1469 = vpop.permute.xlu0 %1468
    %vm1470 = vcmp.lt.s32.totalorder %v1466, %v1469
    %v1471 = vsel %vm1470, 1, 0
    %v1472 = vcvt.s32.f32 %v1471
    %v1473 = vsub.s32 16, %v1464
    %1474 = vset.pattern.permute.xlu0 0
    %1475 = vperm.xlu0 %1474, %v1473
    %v1476 = vpop.permute.xlu0 %1475
    %vm1477 = vcmp.ge.s32.totalorder %v1466, %v1476
    %v1478 = vsel %vm1477, 1, 0
    %v1479 = vcvt.s32.f32 %v1478
    %v1481 = vrot.slane %v1479, 6
    %v1483 = vsel %vm122, %v1472, %v1481
    %v1484 = vlaneseq
    %v1485 = vshrl.u32 %v1484, 7
    %vm1486 = vcmp.lt.s32.totalorder %v1485, 2
    %v1487 = vsel %vm1486, 1, 0
    %v1488 = vcvt.s32.f32 %v1487
    %v1489 = vsub.f32 1.0, %v1488
    %v1490 = vld [vmem:[#allocation2] sm:$0x3]
    %v1491 = vld [vmem:[#allocation2 + $0x8] sm:$0x3]
    %v1492 = vld [vmem:[#allocation2 + $0x10] sm:$0x3]
    %v1493 = vld [vmem:[#allocation2 + $0x18] sm:$0x3]
    %v1494 = vld [vmem:[#allocation3 + $0x60] sm:$0xc0]
    %v1495 = vld [vmem:[#allocation3 + $0x68] sm:$0xc0]
    %v1496 = vld [vmem:[#allocation3 + $0x70] sm:$0xc0]
    %v1497 = vld [vmem:[#allocation3 + $0x78] sm:$0xc0]
    %v1502 = vrot.slane %v1494, 4
    %v1503 = vrot.slane %v1495, 4
    %v1504 = vrot.slane %v1496, 4
    %v1505 = vrot.slane %v1497, 4
    %v1510 = vsel %vm122, %v1490, %v1502
    %v1511 = vsel %vm122, %v1491, %v1503
    %v1512 = vsel %vm122, %v1492, %v1504
    %v1513 = vsel %vm122, %v1493, %v1505
    %v1514 = vmul.f32 %v1488, 0.0
    %v1515 = vmul.f32 %v1489, 0.0
    %v1516 = vpack.c.bf16 %v1514, %v1514
    %v1517 = vpack.c.bf16 %v1515, %v1515
    %v1518 = vld [vmem:[#allocation12] sm:$0xff]
    %v1519 = vld [vmem:[#allocation12 + $0x8] sm:$0xff]
    %v1520 = vld [vmem:[#allocation12 + $0x10] sm:$0xff]
    %v1521 = vld [vmem:[#allocation12 + $0x18] sm:$0xff]
    %v1522 = vld [vmem:[#allocation12 + $0x20] sm:$0xff]
    %v1523 = vld [vmem:[#allocation12 + $0x28] sm:$0xff]
    %v1524 = vld [vmem:[#allocation12 + $0x30] sm:$0xff]
    %v1525 = vld [vmem:[#allocation12 + $0x38] sm:$0xff]
    %v1526 = vld [vmem:[#allocation12 + $0x40] sm:$0xff]
    %v1527 = vld [vmem:[#allocation12 + $0x48] sm:$0xff]
    %v1528 = vld [vmem:[#allocation12 + $0x50] sm:$0xff]
    %v1529 = vld [vmem:[#allocation12 + $0x58] sm:$0xff]
    %v1530 = vld [vmem:[#allocation12 + $0x60] sm:$0xff]
    %v1531 = vld [vmem:[#allocation12 + $0x68] sm:$0xff]
    %v1532 = vld [vmem:[#allocation12 + $0x70] sm:$0xff]
    %v1533 = vld [vmem:[#allocation12 + $0x78] sm:$0xff]
    %v1534 = vld [vmem:[#allocation12 + $0x80] sm:$0xff]
    %v1535 = vld [vmem:[#allocation12 + $0x88] sm:$0xff]
    %v1536 = vld [vmem:[#allocation12 + $0x90] sm:$0xff]
    %v1537 = vld [vmem:[#allocation12 + $0x98] sm:$0xff]
    %v1538 = vld [vmem:[#allocation12 + $0xa0] sm:$0xff]
    %v1539 = vld [vmem:[#allocation12 + $0xa8] sm:$0xff]
    %v1540 = vld [vmem:[#allocation12 + $0xb0] sm:$0xff]
    %v1541 = vld [vmem:[#allocation12 + $0xb8] sm:$0xff]
    %v1542 = vld [vmem:[#allocation12 + $0xc0] sm:$0xff]
    %v1543 = vld [vmem:[#allocation12 + $0xc8] sm:$0xff]
    %v1544 = vld [vmem:[#allocation12 + $0xd0] sm:$0xff]
    %v1545 = vld [vmem:[#allocation12 + $0xd8] sm:$0xff]
    %v1546 = vld [vmem:[#allocation12 + $0xe0] sm:$0xff]
    %v1547 = vld [vmem:[#allocation12 + $0xe8] sm:$0xff]
    %v1548 = vld [vmem:[#allocation12 + $0xf0] sm:$0xff]
    %v1549 = vld [vmem:[#allocation12 + $0xf8] sm:$0xff]
    %v1550 = vld [vmem:[#allocation12 + $0x100] sm:$0xff]
    %v1551 = vld [vmem:[#allocation12 + $0x108] sm:$0xff]
    %v1552 = vld [vmem:[#allocation12 + $0x110] sm:$0xff]
    %v1553 = vld [vmem:[#allocation12 + $0x118] sm:$0xff]
    %v1554 = vld [vmem:[#allocation12 + $0x120] sm:$0xff]
    %v1555 = vld [vmem:[#allocation12 + $0x128] sm:$0xff]
    %v1556 = vld [vmem:[#allocation12 + $0x130] sm:$0xff]
    %v1557 = vld [vmem:[#allocation12 + $0x138] sm:$0xff]
    %v1558 = vld [vmem:[#allocation12 + $0x140] sm:$0xff]
    %v1559 = vld [vmem:[#allocation12 + $0x148] sm:$0xff]
    %v1560 = vld [vmem:[#allocation12 + $0x150] sm:$0xff]
    %v1561 = vld [vmem:[#allocation12 + $0x158] sm:$0xff]
    %v1562 = vld [vmem:[#allocation12 + $0x160] sm:$0xff]
    %v1563 = vld [vmem:[#allocation12 + $0x168] sm:$0xff]
    %v1564 = vld [vmem:[#allocation12 + $0x170] sm:$0xff]
    %v1565 = vld [vmem:[#allocation12 + $0x178] sm:$0xff]
    %v1566 = vld [vmem:[#allocation12 + $0x180] sm:$0xff]
    %v1567 = vld [vmem:[#allocation12 + $0x188] sm:$0xff]
    %v1568 = vld [vmem:[#allocation12 + $0x190] sm:$0xff]
    %v1569 = vld [vmem:[#allocation12 + $0x198] sm:$0xff]
    %v1570 = vld [vmem:[#allocation12 + $0x1a0] sm:$0xff]
    %v1571 = vld [vmem:[#allocation12 + $0x1a8] sm:$0xff]
    %v1572 = vld [vmem:[#allocation12 + $0x1b0] sm:$0xff]
    %v1573 = vld [vmem:[#allocation12 + $0x1b8] sm:$0xff]
    %v1574 = vld [vmem:[#allocation12 + $0x1c0] sm:$0xff]
    %v1575 = vld [vmem:[#allocation12 + $0x1c8] sm:$0xff]
    %v1576 = vld [vmem:[#allocation12 + $0x1d0] sm:$0xff]
    %v1577 = vld [vmem:[#allocation12 + $0x1d8] sm:$0xff]
    %v1578 = vld [vmem:[#allocation12 + $0x1e0] sm:$0xff]
    %v1579 = vld [vmem:[#allocation12 + $0x1e8] sm:$0xff]
    %v1580 = vld [vmem:[#allocation12 + $0x1f0] sm:$0xff]
    %v1581 = vld [vmem:[#allocation12 + $0x1f8] sm:$0xff]
    %v1646 = vunpack.c.l.b16 %v1518
    %v1647 = vunpack.c.h.b16 %v1518
    %v1648 = vunpack.c.l.b16 %v1519
    %v1649 = vunpack.c.h.b16 %v1519
    %v1650 = vunpack.c.l.b16 %v1520
    %v1651 = vunpack.c.h.b16 %v1520
    %v1652 = vunpack.c.l.b16 %v1521
    %v1653 = vunpack.c.h.b16 %v1521
    %v1654 = vunpack.c.l.b16 %v1522
    %v1655 = vunpack.c.h.b16 %v1522
    %v1656 = vunpack.c.l.b16 %v1523
    %v1657 = vunpack.c.h.b16 %v1523
    %v1658 = vunpack.c.l.b16 %v1524
    %v1659 = vunpack.c.h.b16 %v1524
    %v1660 = vunpack.c.l.b16 %v1525
    %v1661 = vunpack.c.h.b16 %v1525
    %v1662 = vunpack.c.l.b16 %v1526
    %v1663 = vunpack.c.h.b16 %v1526
    %v1664 = vunpack.c.l.b16 %v1527
    %v1665 = vunpack.c.h.b16 %v1527
    %v1666 = vunpack.c.l.b16 %v1528
    %v1667 = vunpack.c.h.b16 %v1528
    %v1668 = vunpack.c.l.b16 %v1529
    %v1669 = vunpack.c.h.b16 %v1529
    %v1670 = vunpack.c.l.b16 %v1530
    %v1671 = vunpack.c.h.b16 %v1530
    %v1672 = vunpack.c.l.b16 %v1531
    %v1673 = vunpack.c.h.b16 %v1531
    %v1674 = vunpack.c.l.b16 %v1532
    %v1675 = vunpack.c.h.b16 %v1532
    %v1676 = vunpack.c.l.b16 %v1533
    %v1677 = vunpack.c.h.b16 %v1533
    %v1678 = vunpack.c.l.b16 %v1534
    %v1679 = vunpack.c.h.b16 %v1534
    %v1680 = vunpack.c.l.b16 %v1535
    %v1681 = vunpack.c.h.b16 %v1535
    %v1682 = vunpack.c.l.b16 %v1536
    %v1683 = vunpack.c.h.b16 %v1536
    %v1684 = vunpack.c.l.b16 %v1537
    %v1685 = vunpack.c.h.b16 %v1537
    %v1686 = vunpack.c.l.b16 %v1538
    %v1687 = vunpack.c.h.b16 %v1538
    %v1688 = vunpack.c.l.b16 %v1539
    %v1689 = vunpack.c.h.b16 %v1539
    %v1690 = vunpack.c.l.b16 %v1540
    %v1691 = vunpack.c.h.b16 %v1540
    %v1692 = vunpack.c.l.b16 %v1541
    %v1693 = vunpack.c.h.b16 %v1541
    %v1694 = vunpack.c.l.b16 %v1542
    %v1695 = vunpack.c.h.b16 %v1542
    %v1696 = vunpack.c.l.b16 %v1543
    %v1697 = vunpack.c.h.b16 %v1543
    %v1698 = vunpack.c.l.b16 %v1544
    %v1699 = vunpack.c.h.b16 %v1544
    %v1700 = vunpack.c.l.b16 %v1545
    %v1701 = vunpack.c.h.b16 %v1545
    %v1702 = vunpack.c.l.b16 %v1546
    %v1703 = vunpack.c.h.b16 %v1546
    %v1704 = vunpack.c.l.b16 %v1547
    %v1705 = vunpack.c.h.b16 %v1547
    %v1706 = vunpack.c.l.b16 %v1548
    %v1707 = vunpack.c.h.b16 %v1548
    %v1708 = vunpack.c.l.b16 %v1549
    %v1709 = vunpack.c.h.b16 %v1549
    %v1710 = vunpack.c.l.b16 %v1550
    %v1711 = vunpack.c.h.b16 %v1550
    %v1712 = vunpack.c.l.b16 %v1551
    %v1713 = vunpack.c.h.b16 %v1551
    %v1714 = vunpack.c.l.b16 %v1552
    %v1715 = vunpack.c.h.b16 %v1552
    %v1716 = vunpack.c.l.b16 %v1553
    %v1717 = vunpack.c.h.b16 %v1553
    %v1718 = vunpack.c.l.b16 %v1554
    %v1719 = vunpack.c.h.b16 %v1554
    %v1720 = vunpack.c.l.b16 %v1555
    %v1721 = vunpack.c.h.b16 %v1555
    %v1722 = vunpack.c.l.b16 %v1556
    %v1723 = vunpack.c.h.b16 %v1556
    %v1724 = vunpack.c.l.b16 %v1557
    %v1725 = vunpack.c.h.b16 %v1557
    %v1726 = vunpack.c.l.b16 %v1558
    %v1727 = vunpack.c.h.b16 %v1558
    %v1728 = vunpack.c.l.b16 %v1559
    %v1729 = vunpack.c.h.b16 %v1559
    %v1730 = vunpack.c.l.b16 %v1560
    %v1731 = vunpack.c.h.b16 %v1560
    %v1732 = vunpack.c.l.b16 %v1561
    %v1733 = vunpack.c.h.b16 %v1561
    %v1734 = vunpack.c.l.b16 %v1562
    %v1735 = vunpack.c.h.b16 %v1562
    %v1736 = vunpack.c.l.b16 %v1563
    %v1737 = vunpack.c.h.b16 %v1563
    %v1738 = vunpack.c.l.b16 %v1564
    %v1739 = vunpack.c.h.b16 %v1564
    %v1740 = vunpack.c.l.b16 %v1565
    %v1741 = vunpack.c.h.b16 %v1565
    %v1742 = vunpack.c.l.b16 %v1566
    %v1743 = vunpack.c.h.b16 %v1566
    %v1744 = vunpack.c.l.b16 %v1567
    %v1745 = vunpack.c.h.b16 %v1567
    %v1746 = vunpack.c.l.b16 %v1568
    %v1747 = vunpack.c.h.b16 %v1568
    %v1748 = vunpack.c.l.b16 %v1569
    %v1749 = vunpack.c.h.b16 %v1569
    %v1750 = vunpack.c.l.b16 %v1570
    %v1751 = vunpack.c.h.b16 %v1570
    %v1752 = vunpack.c.l.b16 %v1571
    %v1753 = vunpack.c.h.b16 %v1571
    %v1754 = vunpack.c.l.b16 %v1572
    %v1755 = vunpack.c.h.b16 %v1572
    %v1756 = vunpack.c.l.b16 %v1573
    %v1757 = vunpack.c.h.b16 %v1573
    %v1758 = vunpack.c.l.b16 %v1574
    %v1759 = vunpack.c.h.b16 %v1574
    %v1760 = vunpack.c.l.b16 %v1575
    %v1761 = vunpack.c.h.b16 %v1575
    %v1762 = vunpack.c.l.b16 %v1576
    %v1763 = vunpack.c.h.b16 %v1576
    %v1764 = vunpack.c.l.b16 %v1577
    %v1765 = vunpack.c.h.b16 %v1577
    %v1766 = vunpack.c.l.b16 %v1578
    %v1767 = vunpack.c.h.b16 %v1578
    %v1768 = vunpack.c.l.b16 %v1579
    %v1769 = vunpack.c.h.b16 %v1579
    %v1770 = vunpack.c.l.b16 %v1580
    %v1771 = vunpack.c.h.b16 %v1580
    %v1772 = vunpack.c.l.b16 %v1581
    %v1773 = vunpack.c.h.b16 %v1581
    %v1774 = vpack.c.b16 %v1650, %v1646
    %v1775 = vpack.c.b16 %v1651, %v1647
    %v1776 = vpack.c.b16 %v1652, %v1648
    %v1777 = vpack.c.b16 %v1653, %v1649
    %v1778 = vpack.c.b16 %v1658, %v1654
    %v1779 = vpack.c.b16 %v1659, %v1655
    %v1780 = vpack.c.b16 %v1660, %v1656
    %v1781 = vpack.c.b16 %v1661, %v1657
    %v1782 = vpack.c.b16 %v1666, %v1662
    %v1783 = vpack.c.b16 %v1667, %v1663
    %v1784 = vpack.c.b16 %v1668, %v1664
    %v1785 = vpack.c.b16 %v1669, %v1665
    %v1786 = vpack.c.b16 %v1674, %v1670
    %v1787 = vpack.c.b16 %v1675, %v1671
    %v1788 = vpack.c.b16 %v1676, %v1672
    %v1789 = vpack.c.b16 %v1677, %v1673
    %v1790 = vpack.c.b16 %v1682, %v1678
    %v1791 = vpack.c.b16 %v1683, %v1679
    %v1792 = vpack.c.b16 %v1684, %v1680
    %v1793 = vpack.c.b16 %v1685, %v1681
    %v1794 = vpack.c.b16 %v1690, %v1686
    %v1795 = vpack.c.b16 %v1691, %v1687
    %v1796 = vpack.c.b16 %v1692, %v1688
    %v1797 = vpack.c.b16 %v1693, %v1689
    %v1798 = vpack.c.b16 %v1698, %v1694
    %v1799 = vpack.c.b16 %v1699, %v1695
    %v1800 = vpack.c.b16 %v1700, %v1696
    %v1801 = vpack.c.b16 %v1701, %v1697
    %v1802 = vpack.c.b16 %v1706, %v1702
    %v1803 = vpack.c.b16 %v1707, %v1703
    %v1804 = vpack.c.b16 %v1708, %v1704
    %v1805 = vpack.c.b16 %v1709, %v1705
    %v1806 = vpack.c.b16 %v1714, %v1710
    %v1807 = vpack.c.b16 %v1715, %v1711
    %v1808 = vpack.c.b16 %v1716, %v1712
    %v1809 = vpack.c.b16 %v1717, %v1713
    %v1810 = vpack.c.b16 %v1722, %v1718
    %v1811 = vpack.c.b16 %v1723, %v1719
    %v1812 = vpack.c.b16 %v1724, %v1720
    %v1813 = vpack.c.b16 %v1725, %v1721
    %v1814 = vpack.c.b16 %v1730, %v1726
    %v1815 = vpack.c.b16 %v1731, %v1727
    %v1816 = vpack.c.b16 %v1732, %v1728
    %v1817 = vpack.c.b16 %v1733, %v1729
    %v1818 = vpack.c.b16 %v1738, %v1734
    %v1819 = vpack.c.b16 %v1739, %v1735
    %v1820 = vpack.c.b16 %v1740, %v1736
    %v1821 = vpack.c.b16 %v1741, %v1737
    %v1822 = vpack.c.b16 %v1746, %v1742
    %v1823 = vpack.c.b16 %v1747, %v1743
    %v1824 = vpack.c.b16 %v1748, %v1744
    %v1825 = vpack.c.b16 %v1749, %v1745
    %v1826 = vpack.c.b16 %v1754, %v1750
    %v1827 = vpack.c.b16 %v1755, %v1751
    %v1828 = vpack.c.b16 %v1756, %v1752
    %v1829 = vpack.c.b16 %v1757, %v1753
    %v1830 = vpack.c.b16 %v1762, %v1758
    %v1831 = vpack.c.b16 %v1763, %v1759
    %v1832 = vpack.c.b16 %v1764, %v1760
    %v1833 = vpack.c.b16 %v1765, %v1761
    %v1834 = vpack.c.b16 %v1770, %v1766
    %v1835 = vpack.c.b16 %v1771, %v1767
    %v1836 = vpack.c.b16 %v1772, %v1768
    %v1837 = vpack.c.b16 %v1773, %v1769
    %1902 = vmatprep.subr.bf16.mxu0 %v1803
    %1903 = vmatpush1.bf16.msra.mxu0 %v1802
    %1904 = vmatprep.subr.bf16.mxu0 %v1799
    %1905 = vmatpush1.bf16.msra.mxu0 %v1798
    %1906 = vmatprep.subr.bf16.mxu0 %v1795
    %1907 = vmatpush1.bf16.msra.mxu0 %v1794
    %1908 = vmatprep.subr.bf16.mxu0 %v1791
    %1909 = vmatpush1.bf16.msra.mxu0 %v1790
    %1910 = vmatprep.subr.bf16.mxu0 %v1787
    %1911 = vmatpush1.bf16.msra.mxu0 %v1786
    %1912 = vmatprep.subr.bf16.mxu0 %v1783
    %1913 = vmatpush1.bf16.msra.mxu0 %v1782
    %1914 = vmatprep.subr.bf16.mxu0 %v1779
    %1915 = vmatpush1.bf16.msra.mxu0 %v1778
    %1916 = vmatprep.subr.bf16.mxu0 %v1775
    %1917 = vmatpush1.bf16.msra.mxu0 %v1774
    %1918 = vmatprep.subr.bf16.mxu0 %v1835
    %1919 = vmatpush2.bf16.msra.mxu0 %v1834
    %1920 = vmatprep.subr.bf16.mxu0 %v1831
    %1921 = vmatpush2.bf16.msra.mxu0 %v1830
    %1922 = vmatprep.subr.bf16.mxu0 %v1827
    %1923 = vmatpush2.bf16.msra.mxu0 %v1826
    %1924 = vmatprep.subr.bf16.mxu0 %v1823
    %1925 = vmatpush2.bf16.msra.mxu0 %v1822
    %1926 = vmatprep.subr.bf16.mxu0 %v1819
    %1927 = vmatpush2.bf16.msra.mxu0 %v1818
    %1928 = vmatprep.subr.bf16.mxu0 %v1815
    %1929 = vmatpush2.bf16.msra.mxu0 %v1814
    %1930 = vmatprep.subr.bf16.mxu0 %v1811
    %1931 = vmatpush2.bf16.msra.mxu0 %v1810
    %1932 = vmatprep.subr.bf16.mxu0 %v1807
    %1933 = vmatpush2.bf16.msra.mxu0 %v1806
    %1934 = vmatprep.mubr.bf16.mxu0 %v1517
    %1935 = vmatmul.mubr.bf16.gmra.mxu0 %v1516
    %v1936 = vpop.f32.mrf.mxu0
    %v1937 = vadd.f32 0.0, %v1936
    %v1938 = vpop.f32.mrf.mxu0
    %v1939 = vadd.f32 0.0, %v1938
    %v1940 = vpop.f32.mrf.mxu0
    %v1941 = vpop.f32.mrf.mxu0
    %1942 = vdwg.mxu0
    %1943 = vmatprep.subr.bf16.mxu0 %v1805
    %1944 = vmatpush1.bf16.msra.mxu0 %v1804
    %1945 = vmatprep.subr.bf16.mxu0 %v1801
    %1946 = vmatpush1.bf16.msra.mxu0 %v1800
    %1947 = vmatprep.subr.bf16.mxu0 %v1797
    %1948 = vmatpush1.bf16.msra.mxu0 %v1796
    %1949 = vmatprep.subr.bf16.mxu0 %v1793
    %1950 = vmatpush1.bf16.msra.mxu0 %v1792
    %1951 = vmatprep.subr.bf16.mxu0 %v1789
    %1952 = vmatpush1.bf16.msra.mxu0 %v1788
    %1953 = vmatprep.subr.bf16.mxu0 %v1785
    %1954 = vmatpush1.bf16.msra.mxu0 %v1784
    %1955 = vmatprep.subr.bf16.mxu0 %v1781
    %1956 = vmatpush1.bf16.msra.mxu0 %v1780
    %1957 = vmatprep.subr.bf16.mxu0 %v1777
    %1958 = vmatpush1.bf16.msra.mxu0 %v1776
    %1959 = vmatprep.subr.bf16.mxu0 %v1837
    %1960 = vmatpush2.bf16.msra.mxu0 %v1836
    %1961 = vmatprep.subr.bf16.mxu0 %v1833
    %1962 = vmatpush2.bf16.msra.mxu0 %v1832
    %1963 = vmatprep.subr.bf16.mxu0 %v1829
    %1964 = vmatpush2.bf16.msra.mxu0 %v1828
    %1965 = vmatprep.subr.bf16.mxu0 %v1825
    %1966 = vmatpush2.bf16.msra.mxu0 %v1824
    %1967 = vmatprep.subr.bf16.mxu0 %v1821
    %1968 = vmatpush2.bf16.msra.mxu0 %v1820
    %1969 = vmatprep.subr.bf16.mxu0 %v1817
    %1970 = vmatpush2.bf16.msra.mxu0 %v1816
    %1971 = vmatprep.subr.bf16.mxu0 %v1813
    %1972 = vmatpush2.bf16.msra.mxu0 %v1812
    %1973 = vmatprep.subr.bf16.mxu0 %v1809
    %1974 = vmatpush2.bf16.msra.mxu0 %v1808
    %1975 = vmatprep.mubr.bf16.mxu0 %v1517
    %1976 = vmatmul.mubr.bf16.gmra.mxu0 %v1516
    %v1977 = vpop.f32.mrf.mxu0
    %v1978 = vadd.f32 0.0, %v1977
    %v1979 = vpop.f32.mrf.mxu0
    %v1980 = vadd.f32 0.0, %v1979
    %v1981 = vpop.f32.mrf.mxu0
    %v1982 = vpop.f32.mrf.mxu0
    %1983 = vdwg.mxu0
    %v1984 = vadd.f32 %v1510, %v1937
    %v1985 = vadd.f32 %v1511, %v1939
    %v1986 = vadd.f32 %v1512, %v1978
    %v1987 = vadd.f32 %v1513, %v1980
    %v1988 = vxor.u32 %v1984, 2147483648
    %v1989 = vmul.f32 %v1988, 1.442695
    %v1990 = vpow.pop %v1989
    %v1991 = vadd.f32 %v1990, 1.0
    %v1992 = vrcp.pop %v1991
    %v1993 = vmul.f32 1.0, %v1992
    %v1994 = vxor.u32 %v1985, 2147483648
    %v1995 = vmul.f32 %v1994, 1.442695
    %v1996 = vpow.pop %v1995
    %v1997 = vadd.f32 %v1996, 1.0
    %v1998 = vrcp.pop %v1997
    %v1999 = vmul.f32 1.0, %v1998
    %v2000 = vtanh.pop %v1986
    %v2001 = vxor.u32 %v1987, 2147483648
    %v2002 = vmul.f32 %v2001, 1.442695
    %v2003 = vpow.pop %v2002
    %v2004 = vadd.f32 %v2003, 1.0
    %v2005 = vrcp.pop %v2004
    %v2006 = vmul.f32 1.0, %v2005
    %v2007 = vmul.f32 %v1999, 0.0
    %v2008 = vmul.f32 %v1993, %v2000
    %v2009 = vadd.f32 %v2007, %v2008
    %v2010 = vtanh.pop %v2009
    %v2011 = vmul.f32 %v2006, %v2010
    %2013 = vset.pattern.permute.xlu0 0
    %2014 = vperm.xlu0 %2013, %v1483
    %v2015 = vpop.permute.xlu0 %2014
    %v2017 = vmul.f32 %v2015, %v2009
    %v2018 = vadd.f32 %v2017, 0.0
    %v2019 = vmul.f32 %v2015, %v2011
    %v2020 = vadd.f32 %v2019, 0.0
    %v2021 = vld [vmem:[#allocation2] sm:$0xc]
    %v2022 = vld [vmem:[#allocation2 + $0x8] sm:$0xc]
    %v2023 = vld [vmem:[#allocation2 + $0x10] sm:$0xc]
    %v2024 = vld [vmem:[#allocation2 + $0x18] sm:$0xc]
    %v2025 = vld [vmem:[#allocation3 + $0x60] sm:$0x30]
    %v2026 = vld [vmem:[#allocation3 + $0x68] sm:$0x30]
    %v2027 = vld [vmem:[#allocation3 + $0x70] sm:$0x30]
    %v2028 = vld [vmem:[#allocation3 + $0x78] sm:$0x30]
    %v2033 = vrot.slane %v2021, 2
    %v2034 = vrot.slane %v2022, 2
    %v2035 = vrot.slane %v2023, 2
    %v2036 = vrot.slane %v2024, 2
    %v2045 = vrot.slane %v2025, 2
    %v2046 = vrot.slane %v2026, 2
    %v2047 = vrot.slane %v2027, 2
    %v2048 = vrot.slane %v2028, 2
    %v2053 = vsel %vm122, %v2033, %v2045
    %v2054 = vsel %vm122, %v2034, %v2046
    %v2055 = vsel %vm122, %v2035, %v2047
    %v2056 = vsel %vm122, %v2036, %v2048
    %v2057 = vmul.f32 %v2020, %v1488
    %v2058 = vmul.f32 %v2020, %v1489
    %v2059 = vpack.c.bf16 %v2057, %v2057
    %v2060 = vpack.c.bf16 %v2058, %v2058
    %2061 = vmatprep.subr.bf16.mxu0 %v1803
    %2062 = vmatpush1.bf16.msra.mxu0 %v1802
    %2063 = vmatprep.subr.bf16.mxu0 %v1799
    %2064 = vmatpush1.bf16.msra.mxu0 %v1798
    %2065 = vmatprep.subr.bf16.mxu0 %v1795
    %2066 = vmatpush1.bf16.msra.mxu0 %v1794
    %2067 = vmatprep.subr.bf16.mxu0 %v1791
    %2068 = vmatpush1.bf16.msra.mxu0 %v1790
    %2069 = vmatprep.subr.bf16.mxu0 %v1787
    %2070 = vmatpush1.bf16.msra.mxu0 %v1786
    %2071 = vmatprep.subr.bf16.mxu0 %v1783
    %2072 = vmatpush1.bf16.msra.mxu0 %v1782
    %2073 = vmatprep.subr.bf16.mxu0 %v1779
    %2074 = vmatpush1.bf16.msra.mxu0 %v1778
    %2075 = vmatprep.subr.bf16.mxu0 %v1775
    %2076 = vmatpush1.bf16.msra.mxu0 %v1774
    %2077 = vmatprep.subr.bf16.mxu0 %v1835
    %2078 = vmatpush2.bf16.msra.mxu0 %v1834
    %2079 = vmatprep.subr.bf16.mxu0 %v1831
    %2080 = vmatpush2.bf16.msra.mxu0 %v1830
    %2081 = vmatprep.subr.bf16.mxu0 %v1827
    %2082 = vmatpush2.bf16.msra.mxu0 %v1826
    %2083 = vmatprep.subr.bf16.mxu0 %v1823
    %2084 = vmatpush2.bf16.msra.mxu0 %v1822
    %2085 = vmatprep.subr.bf16.mxu0 %v1819
    %2086 = vmatpush2.bf16.msra.mxu0 %v1818
    %2087 = vmatprep.subr.bf16.mxu0 %v1815
    %2088 = vmatpush2.bf16.msra.mxu0 %v1814
    %2089 = vmatprep.subr.bf16.mxu0 %v1811
    %2090 = vmatpush2.bf16.msra.mxu0 %v1810
    %2091 = vmatprep.subr.bf16.mxu0 %v1807
    %2092 = vmatpush2.bf16.msra.mxu0 %v1806
    %2093 = vmatprep.mubr.bf16.mxu0 %v2060
    %2094 = vmatmul.mubr.bf16.gmra.mxu0 %v2059
    %v2095 = vpop.f32.mrf.mxu0
    %v2096 = vadd.f32 0.0, %v2095
    %v2097 = vpop.f32.mrf.mxu0
    %v2098 = vadd.f32 0.0, %v2097
    %v2099 = vpop.f32.mrf.mxu0
    %v2100 = vpop.f32.mrf.mxu0
    %2101 = vdwg.mxu0
    %2102 = vmatprep.subr.bf16.mxu0 %v1805
    %2103 = vmatpush1.bf16.msra.mxu0 %v1804
    %2104 = vmatprep.subr.bf16.mxu0 %v1801
    %2105 = vmatpush1.bf16.msra.mxu0 %v1800
    %2106 = vmatprep.subr.bf16.mxu0 %v1797
    %2107 = vmatpush1.bf16.msra.mxu0 %v1796
    %2108 = vmatprep.subr.bf16.mxu0 %v1793
    %2109 = vmatpush1.bf16.msra.mxu0 %v1792
    %2110 = vmatprep.subr.bf16.mxu0 %v1789
    %2111 = vmatpush1.bf16.msra.mxu0 %v1788
    %2112 = vmatprep.subr.bf16.mxu0 %v1785
    %2113 = vmatpush1.bf16.msra.mxu0 %v1784
    %2114 = vmatprep.subr.bf16.mxu0 %v1781
    %2115 = vmatpush1.bf16.msra.mxu0 %v1780
    %2116 = vmatprep.subr.bf16.mxu0 %v1777
    %2117 = vmatpush1.bf16.msra.mxu0 %v1776
    %2118 = vmatprep.subr.bf16.mxu0 %v1837
    %2119 = vmatpush2.bf16.msra.mxu0 %v1836
    %2120 = vmatprep.subr.bf16.mxu0 %v1833
    %2121 = vmatpush2.bf16.msra.mxu0 %v1832
    %2122 = vmatprep.subr.bf16.mxu0 %v1829
    %2123 = vmatpush2.bf16.msra.mxu0 %v1828
    %2124 = vmatprep.subr.bf16.mxu0 %v1825
    %2125 = vmatpush2.bf16.msra.mxu0 %v1824
    %2126 = vmatprep.subr.bf16.mxu0 %v1821
    %2127 = vmatpush2.bf16.msra.mxu0 %v1820
    %2128 = vmatprep.subr.bf16.mxu0 %v1817
    %2129 = vmatpush2.bf16.msra.mxu0 %v1816
    %2130 = vmatprep.subr.bf16.mxu0 %v1813
    %2131 = vmatpush2.bf16.msra.mxu0 %v1812
    %2132 = vmatprep.subr.bf16.mxu0 %v1809
    %2133 = vmatpush2.bf16.msra.mxu0 %v1808
    %2134 = vmatprep.mubr.bf16.mxu0 %v2060
    %2135 = vmatmul.mubr.bf16.gmra.mxu0 %v2059
    %v2136 = vpop.f32.mrf.mxu0
    %v2137 = vadd.f32 0.0, %v2136
    %v2138 = vpop.f32.mrf.mxu0
    %v2139 = vadd.f32 0.0, %v2138
    %v2140 = vpop.f32.mrf.mxu0
    %v2141 = vpop.f32.mrf.mxu0
    %2142 = vdwg.mxu0
    %v2143 = vadd.f32 %v2053, %v2096
    %v2144 = vadd.f32 %v2054, %v2098
    %v2145 = vadd.f32 %v2055, %v2137
    %v2146 = vadd.f32 %v2056, %v2139
    %v2147 = vxor.u32 %v2143, 2147483648
    %v2148 = vmul.f32 %v2147, 1.442695
    %v2149 = vpow.pop %v2148
    %v2150 = vadd.f32 %v2149, 1.0
    %v2151 = vrcp.pop %v2150
    %v2152 = vmul.f32 1.0, %v2151
    %v2153 = vxor.u32 %v2144, 2147483648
    %v2154 = vmul.f32 %v2153, 1.442695
    %v2155 = vpow.pop %v2154
    %v2156 = vadd.f32 %v2155, 1.0
    %v2157 = vrcp.pop %v2156
    %v2158 = vmul.f32 1.0, %v2157
    %v2159 = vtanh.pop %v2145
    %v2160 = vxor.u32 %v2146, 2147483648
    %v2161 = vmul.f32 %v2160, 1.442695
    %v2162 = vpow.pop %v2161
    %v2163 = vadd.f32 %v2162, 1.0
    %v2164 = vrcp.pop %v2163
    %v2165 = vmul.f32 1.0, %v2164
    %v2166 = vmul.f32 %v2158, %v2018
    %v2167 = vmul.f32 %v2152, %v2159
    %v2168 = vadd.f32 %v2166, %v2167
    %v2169 = vtanh.pop %v2168
    %v2170 = vmul.f32 %v2165, %v2169
    %v2171 = vsub.f32 %v2168, %v2018
    %2172 = vset.pattern.permute.xlu0 1
    %2173 = vperm.xlu0 %2172, %v1483
    %v2174 = vpop.permute.xlu0 %2173
    %v2176 = vmul.f32 %v2174, %v2171
    %v2177 = vadd.f32 %v2018, %v2176
    %v2178 = vsub.f32 %v2170, %v2020
    %v2179 = vmul.f32 %v2174, %v2178
    %v2180 = vadd.f32 %v2020, %v2179
    %v2181 = vmul.f32 %v2174, %v2170
    %v2182 = vadd.f32 %v2020, %v2181
    %v2183 = vld [vmem:[#allocation2] sm:$0x30]
    %v2184 = vld [vmem:[#allocation2 + $0x8] sm:$0x30]
    %v2185 = vld [vmem:[#allocation2 + $0x10] sm:$0x30]
    %v2186 = vld [vmem:[#allocation2 + $0x18] sm:$0x30]
    %v2187 = vld [vmem:[#allocation3 + $0x60] sm:$0xc]
    %v2188 = vld [vmem:[#allocation3 + $0x68] sm:$0xc]
    %v2189 = vld [vmem:[#allocation3 + $0x70] sm:$0xc]
    %v2190 = vld [vmem:[#allocation3 + $0x78] sm:$0xc]
    %v2195 = vrot.slane %v2183, 4
    %v2196 = vrot.slane %v2184, 4
    %v2197 = vrot.slane %v2185, 4
    %v2198 = vrot.slane %v2186, 4
    %v2203 = vsel %vm122, %v2195, %v2187
    %v2204 = vsel %vm122, %v2196, %v2188
    %v2205 = vsel %vm122, %v2197, %v2189
    %v2206 = vsel %vm122, %v2198, %v2190
    %v2207 = vmul.f32 %v2180, %v1488
    %v2208 = vmul.f32 %v2180, %v1489
    %v2209 = vpack.c.bf16 %v2207, %v2207
    %v2210 = vpack.c.bf16 %v2208, %v2208
    %2211 = vmatprep.subr.bf16.mxu0 %v1803
    %2212 = vmatpush1.bf16.msra.mxu0 %v1802
    %2213 = vmatprep.subr.bf16.mxu0 %v1799
    %2214 = vmatpush1.bf16.msra.mxu0 %v1798
    %2215 = vmatprep.subr.bf16.mxu0 %v1795
    %2216 = vmatpush1.bf16.msra.mxu0 %v1794
    %2217 = vmatprep.subr.bf16.mxu0 %v1791
    %2218 = vmatpush1.bf16.msra.mxu0 %v1790
    %2219 = vmatprep.subr.bf16.mxu0 %v1787
    %2220 = vmatpush1.bf16.msra.mxu0 %v1786
    %2221 = vmatprep.subr.bf16.mxu0 %v1783
    %2222 = vmatpush1.bf16.msra.mxu0 %v1782
    %2223 = vmatprep.subr.bf16.mxu0 %v1779
    %2224 = vmatpush1.bf16.msra.mxu0 %v1778
    %2225 = vmatprep.subr.bf16.mxu0 %v1775
    %2226 = vmatpush1.bf16.msra.mxu0 %v1774
    %2227 = vmatprep.subr.bf16.mxu0 %v1835
    %2228 = vmatpush2.bf16.msra.mxu0 %v1834
    %2229 = vmatprep.subr.bf16.mxu0 %v1831
    %2230 = vmatpush2.bf16.msra.mxu0 %v1830
    %2231 = vmatprep.subr.bf16.mxu0 %v1827
    %2232 = vmatpush2.bf16.msra.mxu0 %v1826
    %2233 = vmatprep.subr.bf16.mxu0 %v1823
    %2234 = vmatpush2.bf16.msra.mxu0 %v1822
    %2235 = vmatprep.subr.bf16.mxu0 %v1819
    %2236 = vmatpush2.bf16.msra.mxu0 %v1818
    %2237 = vmatprep.subr.bf16.mxu0 %v1815
    %2238 = vmatpush2.bf16.msra.mxu0 %v1814
    %2239 = vmatprep.subr.bf16.mxu0 %v1811
    %2240 = vmatpush2.bf16.msra.mxu0 %v1810
    %2241 = vmatprep.subr.bf16.mxu0 %v1807
    %2242 = vmatpush2.bf16.msra.mxu0 %v1806
    %2243 = vmatprep.mubr.bf16.mxu0 %v2210
    %2244 = vmatmul.mubr.bf16.gmra.mxu0 %v2209
    %v2245 = vpop.f32.mrf.mxu0
    %v2246 = vadd.f32 0.0, %v2245
    %v2247 = vpop.f32.mrf.mxu0
    %v2248 = vadd.f32 0.0, %v2247
    %v2249 = vpop.f32.mrf.mxu0
    %v2250 = vpop.f32.mrf.mxu0
    %2251 = vdwg.mxu0
    %2252 = vmatprep.subr.bf16.mxu0 %v1805
    %2253 = vmatpush1.bf16.msra.mxu0 %v1804
    %2254 = vmatprep.subr.bf16.mxu0 %v1801
    %2255 = vmatpush1.bf16.msra.mxu0 %v1800
    %2256 = vmatprep.subr.bf16.mxu0 %v1797
    %2257 = vmatpush1.bf16.msra.mxu0 %v1796
    %2258 = vmatprep.subr.bf16.mxu0 %v1793
    %2259 = vmatpush1.bf16.msra.mxu0 %v1792
    %2260 = vmatprep.subr.bf16.mxu0 %v1789
    %2261 = vmatpush1.bf16.msra.mxu0 %v1788
    %2262 = vmatprep.subr.bf16.mxu0 %v1785
    %2263 = vmatpush1.bf16.msra.mxu0 %v1784
    %2264 = vmatprep.subr.bf16.mxu0 %v1781
    %2265 = vmatpush1.bf16.msra.mxu0 %v1780
    %2266 = vmatprep.subr.bf16.mxu0 %v1777
    %2267 = vmatpush1.bf16.msra.mxu0 %v1776
    %2268 = vmatprep.subr.bf16.mxu0 %v1837
    %2269 = vmatpush2.bf16.msra.mxu0 %v1836
    %2270 = vmatprep.subr.bf16.mxu0 %v1833
    %2271 = vmatpush2.bf16.msra.mxu0 %v1832
    %2272 = vmatprep.subr.bf16.mxu0 %v1829
    %2273 = vmatpush2.bf16.msra.mxu0 %v1828
    %2274 = vmatprep.subr.bf16.mxu0 %v1825
    %2275 = vmatpush2.bf16.msra.mxu0 %v1824
    %2276 = vmatprep.subr.bf16.mxu0 %v1821
    %2277 = vmatpush2.bf16.msra.mxu0 %v1820
    %2278 = vmatprep.subr.bf16.mxu0 %v1817
    %2279 = vmatpush2.bf16.msra.mxu0 %v1816
    %2280 = vmatprep.subr.bf16.mxu0 %v1813
    %2281 = vmatpush2.bf16.msra.mxu0 %v1812
    %2282 = vmatprep.subr.bf16.mxu0 %v1809
    %2283 = vmatpush2.bf16.msra.mxu0 %v1808
    %2284 = vmatprep.mubr.bf16.mxu0 %v2210
    %2285 = vmatmul.mubr.bf16.gmra.mxu0 %v2209
    %v2286 = vpop.f32.mrf.mxu0
    %v2287 = vadd.f32 0.0, %v2286
    %v2288 = vpop.f32.mrf.mxu0
    %v2289 = vadd.f32 0.0, %v2288
    %v2290 = vpop.f32.mrf.mxu0
    %v2291 = vpop.f32.mrf.mxu0
    %2292 = vdwg.mxu0
    %v2293 = vadd.f32 %v2203, %v2246
    %v2294 = vadd.f32 %v2204, %v2248
    %v2295 = vadd.f32 %v2205, %v2287
    %v2296 = vadd.f32 %v2206, %v2289
    %v2297 = vxor.u32 %v2293, 2147483648
    %v2298 = vmul.f32 %v2297, 1.442695
    %v2299 = vpow.pop %v2298
    %v2300 = vadd.f32 %v2299, 1.0
    %v2301 = vrcp.pop %v2300
    %v2302 = vmul.f32 1.0, %v2301
    %v2303 = vxor.u32 %v2294, 2147483648
    %v2304 = vmul.f32 %v2303, 1.442695
    %v2305 = vpow.pop %v2304
    %v2306 = vadd.f32 %v2305, 1.0
    %v2307 = vrcp.pop %v2306
    %v2308 = vmul.f32 1.0, %v2307
    %v2309 = vtanh.pop %v2295
    %v2310 = vxor.u32 %v2296, 2147483648
    %v2311 = vmul.f32 %v2310, 1.442695
    %v2312 = vpow.pop %v2311
    %v2313 = vadd.f32 %v2312, 1.0
    %v2314 = vrcp.pop %v2313
    %v2315 = vmul.f32 1.0, %v2314
    %v2316 = vmul.f32 %v2308, %v2177
    %v2317 = vmul.f32 %v2302, %v2309
    %v2318 = vadd.f32 %v2316, %v2317
    %v2319 = vtanh.pop %v2318
    %v2320 = vmul.f32 %v2315, %v2319
    %v2321 = vsub.f32 %v2318, %v2177
    %2322 = vset.pattern.permute.xlu0 2
    %2323 = vperm.xlu0 %2322, %v1483
    %v2324 = vpop.permute.xlu0 %2323
    %v2326 = vmul.f32 %v2324, %v2321
    %v2327 = vadd.f32 %v2177, %v2326
    %v2328 = vsub.f32 %v2320, %v2180
    %v2329 = vmul.f32 %v2324, %v2328
    %v2330 = vadd.f32 %v2180, %v2329
    %v2331 = vmul.f32 %v2324, %v2320
    %v2332 = vadd.f32 %v2182, %v2331
    %v2333 = vld [vmem:[#allocation2] sm:$0xc0]
    %v2334 = vld [vmem:[#allocation2 + $0x8] sm:$0xc0]
    %v2335 = vld [vmem:[#allocation2 + $0x10] sm:$0xc0]
    %v2336 = vld [vmem:[#allocation2 + $0x18] sm:$0xc0]
    %v2337 = vld [vmem:[#allocation3 + $0x60] sm:$0x3]
    %v2338 = vld [vmem:[#allocation3 + $0x68] sm:$0x3]
    %v2339 = vld [vmem:[#allocation3 + $0x70] sm:$0x3]
    %v2340 = vld [vmem:[#allocation3 + $0x78] sm:$0x3]
    %v2345 = vrot.slane %v2333, 6
    %v2346 = vrot.slane %v2334, 6
    %v2347 = vrot.slane %v2335, 6
    %v2348 = vrot.slane %v2336, 6
    %v2357 = vrot.slane %v2337, 6
    %v2358 = vrot.slane %v2338, 6
    %v2359 = vrot.slane %v2339, 6
    %v2360 = vrot.slane %v2340, 6
    %v2365 = vsel %vm122, %v2345, %v2357
    %v2366 = vsel %vm122, %v2346, %v2358
    %v2367 = vsel %vm122, %v2347, %v2359
    %v2368 = vsel %vm122, %v2348, %v2360
    %v2369 = vmul.f32 %v2330, %v1488
    %v2370 = vmul.f32 %v2330, %v1489
    %v2371 = vpack.c.bf16 %v2369, %v2369
    %v2372 = vpack.c.bf16 %v2370, %v2370
    %2373 = vmatprep.subr.bf16.mxu0 %v1803
    %2374 = vmatpush1.bf16.msra.mxu0 %v1802
    %2375 = vmatprep.subr.bf16.mxu0 %v1799
    %2376 = vmatpush1.bf16.msra.mxu0 %v1798
    %2377 = vmatprep.subr.bf16.mxu0 %v1795
    %2378 = vmatpush1.bf16.msra.mxu0 %v1794
    %2379 = vmatprep.subr.bf16.mxu0 %v1791
    %2380 = vmatpush1.bf16.msra.mxu0 %v1790
    %2381 = vmatprep.subr.bf16.mxu0 %v1787
    %2382 = vmatpush1.bf16.msra.mxu0 %v1786
    %2383 = vmatprep.subr.bf16.mxu0 %v1783
    %2384 = vmatpush1.bf16.msra.mxu0 %v1782
    %2385 = vmatprep.subr.bf16.mxu0 %v1779
    %2386 = vmatpush1.bf16.msra.mxu0 %v1778
    %2387 = vmatprep.subr.bf16.mxu0 %v1775
    %2388 = vmatpush1.bf16.msra.mxu0 %v1774
    %2389 = vmatprep.subr.bf16.mxu0 %v1835
    %2390 = vmatpush2.bf16.msra.mxu0 %v1834
    %2391 = vmatprep.subr.bf16.mxu0 %v1831
    %2392 = vmatpush2.bf16.msra.mxu0 %v1830
    %2393 = vmatprep.subr.bf16.mxu0 %v1827
    %2394 = vmatpush2.bf16.msra.mxu0 %v1826
    %2395 = vmatprep.subr.bf16.mxu0 %v1823
    %2396 = vmatpush2.bf16.msra.mxu0 %v1822
    %2397 = vmatprep.subr.bf16.mxu0 %v1819
    %2398 = vmatpush2.bf16.msra.mxu0 %v1818
    %2399 = vmatprep.subr.bf16.mxu0 %v1815
    %2400 = vmatpush2.bf16.msra.mxu0 %v1814
    %2401 = vmatprep.subr.bf16.mxu0 %v1811
    %2402 = vmatpush2.bf16.msra.mxu0 %v1810
    %2403 = vmatprep.subr.bf16.mxu0 %v1807
    %2404 = vmatpush2.bf16.msra.mxu0 %v1806
    %2405 = vmatprep.mubr.bf16.mxu0 %v2372
    %2406 = vmatmul.mubr.bf16.gmra.mxu0 %v2371
    %v2407 = vpop.f32.mrf.mxu0
    %v2408 = vadd.f32 0.0, %v2407
    %v2409 = vpop.f32.mrf.mxu0
    %v2410 = vadd.f32 0.0, %v2409
    %v2411 = vpop.f32.mrf.mxu0
    %v2412 = vpop.f32.mrf.mxu0
    %2413 = vdwg.mxu0
    %2414 = vmatprep.subr.bf16.mxu0 %v1805
    %2415 = vmatpush1.bf16.msra.mxu0 %v1804
    %2416 = vmatprep.subr.bf16.mxu0 %v1801
    %2417 = vmatpush1.bf16.msra.mxu0 %v1800
    %2418 = vmatprep.subr.bf16.mxu0 %v1797
    %2419 = vmatpush1.bf16.msra.mxu0 %v1796
    %2420 = vmatprep.subr.bf16.mxu0 %v1793
    %2421 = vmatpush1.bf16.msra.mxu0 %v1792
    %2422 = vmatprep.subr.bf16.mxu0 %v1789
    %2423 = vmatpush1.bf16.msra.mxu0 %v1788
    %2424 = vmatprep.subr.bf16.mxu0 %v1785
    %2425 = vmatpush1.bf16.msra.mxu0 %v1784
    %2426 = vmatprep.subr.bf16.mxu0 %v1781
    %2427 = vmatpush1.bf16.msra.mxu0 %v1780
    %2428 = vmatprep.subr.bf16.mxu0 %v1777
    %2429 = vmatpush1.bf16.msra.mxu0 %v1776
    %2430 = vmatprep.subr.bf16.mxu0 %v1837
    %2431 = vmatpush2.bf16.msra.mxu0 %v1836
    %2432 = vmatprep.subr.bf16.mxu0 %v1833
    %2433 = vmatpush2.bf16.msra.mxu0 %v1832
    %2434 = vmatprep.subr.bf16.mxu0 %v1829
    %2435 = vmatpush2.bf16.msra.mxu0 %v1828
    %2436 = vmatprep.subr.bf16.mxu0 %v1825
    %2437 = vmatpush2.bf16.msra.mxu0 %v1824
    %2438 = vmatprep.subr.bf16.mxu0 %v1821
    %2439 = vmatpush2.bf16.msra.mxu0 %v1820
    %2440 = vmatprep.subr.bf16.mxu0 %v1817
    %2441 = vmatpush2.bf16.msra.mxu0 %v1816
    %2442 = vmatprep.subr.bf16.mxu0 %v1813
    %2443 = vmatpush2.bf16.msra.mxu0 %v1812
    %2444 = vmatprep.subr.bf16.mxu0 %v1809
    %2445 = vmatpush2.bf16.msra.mxu0 %v1808
    %2446 = vmatprep.mubr.bf16.mxu0 %v2372
    %2447 = vmatmul.mubr.bf16.gmra.mxu0 %v2371
    %v2448 = vpop.f32.mrf.mxu0
    %v2449 = vadd.f32 0.0, %v2448
    %v2450 = vpop.f32.mrf.mxu0
    %v2451 = vadd.f32 0.0, %v2450
    %v2452 = vpop.f32.mrf.mxu0
    %v2453 = vpop.f32.mrf.mxu0
    %2454 = vdwg.mxu0
    %v2455 = vadd.f32 %v2365, %v2408
    %v2456 = vadd.f32 %v2366, %v2410
    %v2457 = vadd.f32 %v2367, %v2449
    %v2458 = vadd.f32 %v2368, %v2451
    %v2459 = vxor.u32 %v2455, 2147483648
    %v2460 = vmul.f32 %v2459, 1.442695
    %v2461 = vpow.pop %v2460
    %v2462 = vadd.f32 %v2461, 1.0
    %v2463 = vrcp.pop %v2462
    %v2464 = vmul.f32 1.0, %v2463
    %v2465 = vxor.u32 %v2456, 2147483648
    %v2466 = vmul.f32 %v2465, 1.442695
    %v2467 = vpow.pop %v2466
    %v2468 = vadd.f32 %v2467, 1.0
    %v2469 = vrcp.pop %v2468
    %v2470 = vmul.f32 1.0, %v2469
    %v2471 = vtanh.pop %v2457
    %v2472 = vxor.u32 %v2458, 2147483648
    %v2473 = vmul.f32 %v2472, 1.442695
    %v2474 = vpow.pop %v2473
    %v2475 = vadd.f32 %v2474, 1.0
    %v2476 = vrcp.pop %v2475
    %v2477 = vmul.f32 1.0, %v2476
    %v2478 = vmul.f32 %v2470, %v2327
    %v2479 = vmul.f32 %v2464, %v2471
    %v2480 = vadd.f32 %v2478, %v2479
    %v2481 = vtanh.pop %v2480
    %v2482 = vmul.f32 %v2477, %v2481
    %v2483 = vsub.f32 %v2480, %v2327
    %2484 = vset.pattern.permute.xlu0 3
    %2485 = vperm.xlu0 %2484, %v1483
    %v2486 = vpop.permute.xlu0 %2485
    %v2488 = vmul.f32 %v2486, %v2483
    %v2489 = vadd.f32 %v2327, %v2488
    %v2490 = vsub.f32 %v2482, %v2330
    %v2491 = vmul.f32 %v2486, %v2490
    %v2492 = vadd.f32 %v2330, %v2491
    %v2493 = vmul.f32 %v2486, %v2482
    %v2494 = vadd.f32 %v2332, %v2493
    %v2495 = vld [vmem:[#allocation2 + $0x20] sm:$0x3]
    %v2496 = vld [vmem:[#allocation2 + $0x28] sm:$0x3]
    %v2497 = vld [vmem:[#allocation2 + $0x30] sm:$0x3]
    %v2498 = vld [vmem:[#allocation2 + $0x38] sm:$0x3]
    %v2499 = vld [vmem:[#allocation3 + $0x40] sm:$0xc0]
    %v2500 = vld [vmem:[#allocation3 + $0x48] sm:$0xc0]
    %v2501 = vld [vmem:[#allocation3 + $0x50] sm:$0xc0]
    %v2502 = vld [vmem:[#allocation3 + $0x58] sm:$0xc0]
    %v2507 = vrot.slane %v2499, 4
    %v2508 = vrot.slane %v2500, 4
    %v2509 = vrot.slane %v2501, 4
    %v2510 = vrot.slane %v2502, 4
    %v2515 = vsel %vm122, %v2495, %v2507
    %v2516 = vsel %vm122, %v2496, %v2508
    %v2517 = vsel %vm122, %v2497, %v2509
    %v2518 = vsel %vm122, %v2498, %v2510
    %v2519 = vmul.f32 %v2492, %v1488
    %v2520 = vmul.f32 %v2492, %v1489
    %v2521 = vpack.c.bf16 %v2519, %v2519
    %v2522 = vpack.c.bf16 %v2520, %v2520
    %2523 = vmatprep.subr.bf16.mxu0 %v1803
    %2524 = vmatpush1.bf16.msra.mxu0 %v1802
    %2525 = vmatprep.subr.bf16.mxu0 %v1799
    %2526 = vmatpush1.bf16.msra.mxu0 %v1798
    %2527 = vmatprep.subr.bf16.mxu0 %v1795
    %2528 = vmatpush1.bf16.msra.mxu0 %v1794
    %2529 = vmatprep.subr.bf16.mxu0 %v1791
    %2530 = vmatpush1.bf16.msra.mxu0 %v1790
    %2531 = vmatprep.subr.bf16.mxu0 %v1787
    %2532 = vmatpush1.bf16.msra.mxu0 %v1786
    %2533 = vmatprep.subr.bf16.mxu0 %v1783
    %2534 = vmatpush1.bf16.msra.mxu0 %v1782
    %2535 = vmatprep.subr.bf16.mxu0 %v1779
    %2536 = vmatpush1.bf16.msra.mxu0 %v1778
    %2537 = vmatprep.subr.bf16.mxu0 %v1775
    %2538 = vmatpush1.bf16.msra.mxu0 %v1774
    %2539 = vmatprep.subr.bf16.mxu0 %v1835
    %2540 = vmatpush2.bf16.msra.mxu0 %v1834
    %2541 = vmatprep.subr.bf16.mxu0 %v1831
    %2542 = vmatpush2.bf16.msra.mxu0 %v1830
    %2543 = vmatprep.subr.bf16.mxu0 %v1827
    %2544 = vmatpush2.bf16.msra.mxu0 %v1826
    %2545 = vmatprep.subr.bf16.mxu0 %v1823
    %2546 = vmatpush2.bf16.msra.mxu0 %v1822
    %2547 = vmatprep.subr.bf16.mxu0 %v1819
    %2548 = vmatpush2.bf16.msra.mxu0 %v1818
    %2549 = vmatprep.subr.bf16.mxu0 %v1815
    %2550 = vmatpush2.bf16.msra.mxu0 %v1814
    %2551 = vmatprep.subr.bf16.mxu0 %v1811
    %2552 = vmatpush2.bf16.msra.mxu0 %v1810
    %2553 = vmatprep.subr.bf16.mxu0 %v1807
    %2554 = vmatpush2.bf16.msra.mxu0 %v1806
    %2555 = vmatprep.mubr.bf16.mxu0 %v2522
    %2556 = vmatmul.mubr.bf16.gmra.mxu0 %v2521
    %v2557 = vpop.f32.mrf.mxu0
    %v2558 = vadd.f32 0.0, %v2557
    %v2559 = vpop.f32.mrf.mxu0
    %v2560 = vadd.f32 0.0, %v2559
    %v2561 = vpop.f32.mrf.mxu0
    %v2562 = vpop.f32.mrf.mxu0
    %2563 = vdwg.mxu0
    %2564 = vmatprep.subr.bf16.mxu0 %v1805
    %2565 = vmatpush1.bf16.msra.mxu0 %v1804
    %2566 = vmatprep.subr.bf16.mxu0 %v1801
    %2567 = vmatpush1.bf16.msra.mxu0 %v1800
    %2568 = vmatprep.subr.bf16.mxu0 %v1797
    %2569 = vmatpush1.bf16.msra.mxu0 %v1796
    %2570 = vmatprep.subr.bf16.mxu0 %v1793
    %2571 = vmatpush1.bf16.msra.mxu0 %v1792
    %2572 = vmatprep.subr.bf16.mxu0 %v1789
    %2573 = vmatpush1.bf16.msra.mxu0 %v1788
    %2574 = vmatprep.subr.bf16.mxu0 %v1785
    %2575 = vmatpush1.bf16.msra.mxu0 %v1784
    %2576 = vmatprep.subr.bf16.mxu0 %v1781
    %2577 = vmatpush1.bf16.msra.mxu0 %v1780
    %2578 = vmatprep.subr.bf16.mxu0 %v1777
    %2579 = vmatpush1.bf16.msra.mxu0 %v1776
    %2580 = vmatprep.subr.bf16.mxu0 %v1837
    %2581 = vmatpush2.bf16.msra.mxu0 %v1836
    %2582 = vmatprep.subr.bf16.mxu0 %v1833
    %2583 = vmatpush2.bf16.msra.mxu0 %v1832
    %2584 = vmatprep.subr.bf16.mxu0 %v1829
    %2585 = vmatpush2.bf16.msra.mxu0 %v1828
    %2586 = vmatprep.subr.bf16.mxu0 %v1825
    %2587 = vmatpush2.bf16.msra.mxu0 %v1824
    %2588 = vmatprep.subr.bf16.mxu0 %v1821
    %2589 = vmatpush2.bf16.msra.mxu0 %v1820
    %2590 = vmatprep.subr.bf16.mxu0 %v1817
    %2591 = vmatpush2.bf16.msra.mxu0 %v1816
    %2592 = vmatprep.subr.bf16.mxu0 %v1813
    %2593 = vmatpush2.bf16.msra.mxu0 %v1812
    %2594 = vmatprep.subr.bf16.mxu0 %v1809
    %2595 = vmatpush2.bf16.msra.mxu0 %v1808
    %2596 = vmatprep.mubr.bf16.mxu0 %v2522
    %2597 = vmatmul.mubr.bf16.gmra.mxu0 %v2521
    %v2598 = vpop.f32.mrf.mxu0
    %v2599 = vadd.f32 0.0, %v2598
    %v2600 = vpop.f32.mrf.mxu0
    %v2601 = vadd.f32 0.0, %v2600
    %v2602 = vpop.f32.mrf.mxu0
    %v2603 = vpop.f32.mrf.mxu0
    %2604 = vdwg.mxu0
    %v2605 = vadd.f32 %v2515, %v2558
    %v2606 = vadd.f32 %v2516, %v2560
    %v2607 = vadd.f32 %v2517, %v2599
    %v2608 = vadd.f32 %v2518, %v2601
    %v2609 = vxor.u32 %v2605, 2147483648
    %v2610 = vmul.f32 %v2609, 1.442695
    %v2611 = vpow.pop %v2610
    %v2612 = vadd.f32 %v2611, 1.0
    %v2613 = vrcp.pop %v2612
    %v2614 = vmul.f32 1.0, %v2613
    %v2615 = vxor.u32 %v2606, 2147483648
    %v2616 = vmul.f32 %v2615, 1.442695
    %v2617 = vpow.pop %v2616
    %v2618 = vadd.f32 %v2617, 1.0
    %v2619 = vrcp.pop %v2618
    %v2620 = vmul.f32 1.0, %v2619
    %v2621 = vtanh.pop %v2607
    %v2622 = vxor.u32 %v2608, 2147483648
    %v2623 = vmul.f32 %v2622, 1.442695
    %v2624 = vpow.pop %v2623
    %v2625 = vadd.f32 %v2624, 1.0
    %v2626 = vrcp.pop %v2625
    %v2627 = vmul.f32 1.0, %v2626
    %v2628 = vmul.f32 %v2620, %v2489
    %v2629 = vmul.f32 %v2614, %v2621
    %v2630 = vadd.f32 %v2628, %v2629
    %v2631 = vtanh.pop %v2630
    %v2632 = vmul.f32 %v2627, %v2631
    %v2633 = vsub.f32 %v2630, %v2489
    %2634 = vset.pattern.permute.xlu0 4
    %2635 = vperm.xlu0 %2634, %v1483
    %v2636 = vpop.permute.xlu0 %2635
    %v2638 = vmul.f32 %v2636, %v2633
    %v2639 = vadd.f32 %v2489, %v2638
    %v2640 = vsub.f32 %v2632, %v2492
    %v2641 = vmul.f32 %v2636, %v2640
    %v2642 = vadd.f32 %v2492, %v2641
    %v2643 = vmul.f32 %v2636, %v2632
    %v2644 = vadd.f32 %v2494, %v2643
    %v2645 = vld [vmem:[#allocation2 + $0x20] sm:$0xc]
    %v2646 = vld [vmem:[#allocation2 + $0x28] sm:$0xc]
    %v2647 = vld [vmem:[#allocation2 + $0x30] sm:$0xc]
    %v2648 = vld [vmem:[#allocation2 + $0x38] sm:$0xc]
    %v2649 = vld [vmem:[#allocation3 + $0x40] sm:$0x30]
    %v2650 = vld [vmem:[#allocation3 + $0x48] sm:$0x30]
    %v2651 = vld [vmem:[#allocation3 + $0x50] sm:$0x30]
    %v2652 = vld [vmem:[#allocation3 + $0x58] sm:$0x30]
    %v2657 = vrot.slane %v2645, 2
    %v2658 = vrot.slane %v2646, 2
    %v2659 = vrot.slane %v2647, 2
    %v2660 = vrot.slane %v2648, 2
    %v2669 = vrot.slane %v2649, 2
    %v2670 = vrot.slane %v2650, 2
    %v2671 = vrot.slane %v2651, 2
    %v2672 = vrot.slane %v2652, 2
    %v2677 = vsel %vm122, %v2657, %v2669
    %v2678 = vsel %vm122, %v2658, %v2670
    %v2679 = vsel %vm122, %v2659, %v2671
    %v2680 = vsel %vm122, %v2660, %v2672
    %v2681 = vmul.f32 %v2642, %v1488
    %v2682 = vmul.f32 %v2642, %v1489
    %v2683 = vpack.c.bf16 %v2681, %v2681
    %v2684 = vpack.c.bf16 %v2682, %v2682
    %2685 = vmatprep.subr.bf16.mxu0 %v1803
    %2686 = vmatpush1.bf16.msra.mxu0 %v1802
    %2687 = vmatprep.subr.bf16.mxu0 %v1799
    %2688 = vmatpush1.bf16.msra.mxu0 %v1798
    %2689 = vmatprep.subr.bf16.mxu0 %v1795
    %2690 = vmatpush1.bf16.msra.mxu0 %v1794
    %2691 = vmatprep.subr.bf16.mxu0 %v1791
    %2692 = vmatpush1.bf16.msra.mxu0 %v1790
    %2693 = vmatprep.subr.bf16.mxu0 %v1787
    %2694 = vmatpush1.bf16.msra.mxu0 %v1786
    %2695 = vmatprep.subr.bf16.mxu0 %v1783
    %2696 = vmatpush1.bf16.msra.mxu0 %v1782
    %2697 = vmatprep.subr.bf16.mxu0 %v1779
    %2698 = vmatpush1.bf16.msra.mxu0 %v1778
    %2699 = vmatprep.subr.bf16.mxu0 %v1775
    %2700 = vmatpush1.bf16.msra.mxu0 %v1774
    %2701 = vmatprep.subr.bf16.mxu0 %v1835
    %2702 = vmatpush2.bf16.msra.mxu0 %v1834
    %2703 = vmatprep.subr.bf16.mxu0 %v1831
    %2704 = vmatpush2.bf16.msra.mxu0 %v1830
    %2705 = vmatprep.subr.bf16.mxu0 %v1827
    %2706 = vmatpush2.bf16.msra.mxu0 %v1826
    %2707 = vmatprep.subr.bf16.mxu0 %v1823
    %2708 = vmatpush2.bf16.msra.mxu0 %v1822
    %2709 = vmatprep.subr.bf16.mxu0 %v1819
    %2710 = vmatpush2.bf16.msra.mxu0 %v1818
    %2711 = vmatprep.subr.bf16.mxu0 %v1815
    %2712 = vmatpush2.bf16.msra.mxu0 %v1814
    %2713 = vmatprep.subr.bf16.mxu0 %v1811
    %2714 = vmatpush2.bf16.msra.mxu0 %v1810
    %2715 = vmatprep.subr.bf16.mxu0 %v1807
    %2716 = vmatpush2.bf16.msra.mxu0 %v1806
    %2717 = vmatprep.mubr.bf16.mxu0 %v2684
    %2718 = vmatmul.mubr.bf16.gmra.mxu0 %v2683
    %v2719 = vpop.f32.mrf.mxu0
    %v2720 = vadd.f32 0.0, %v2719
    %v2721 = vpop.f32.mrf.mxu0
    %v2722 = vadd.f32 0.0, %v2721
    %v2723 = vpop.f32.mrf.mxu0
    %v2724 = vpop.f32.mrf.mxu0
    %2725 = vdwg.mxu0
    %2726 = vmatprep.subr.bf16.mxu0 %v1805
    %2727 = vmatpush1.bf16.msra.mxu0 %v1804
    %2728 = vmatprep.subr.bf16.mxu0 %v1801
    %2729 = vmatpush1.bf16.msra.mxu0 %v1800
    %2730 = vmatprep.subr.bf16.mxu0 %v1797
    %2731 = vmatpush1.bf16.msra.mxu0 %v1796
    %2732 = vmatprep.subr.bf16.mxu0 %v1793
    %2733 = vmatpush1.bf16.msra.mxu0 %v1792
    %2734 = vmatprep.subr.bf16.mxu0 %v1789
    %2735 = vmatpush1.bf16.msra.mxu0 %v1788
    %2736 = vmatprep.subr.bf16.mxu0 %v1785
    %2737 = vmatpush1.bf16.msra.mxu0 %v1784
    %2738 = vmatprep.subr.bf16.mxu0 %v1781
    %2739 = vmatpush1.bf16.msra.mxu0 %v1780
    %2740 = vmatprep.subr.bf16.mxu0 %v1777
    %2741 = vmatpush1.bf16.msra.mxu0 %v1776
    %2742 = vmatprep.subr.bf16.mxu0 %v1837
    %2743 = vmatpush2.bf16.msra.mxu0 %v1836
    %2744 = vmatprep.subr.bf16.mxu0 %v1833
    %2745 = vmatpush2.bf16.msra.mxu0 %v1832
    %2746 = vmatprep.subr.bf16.mxu0 %v1829
    %2747 = vmatpush2.bf16.msra.mxu0 %v1828
    %2748 = vmatprep.subr.bf16.mxu0 %v1825
    %2749 = vmatpush2.bf16.msra.mxu0 %v1824
    %2750 = vmatprep.subr.bf16.mxu0 %v1821
    %2751 = vmatpush2.bf16.msra.mxu0 %v1820
    %2752 = vmatprep.subr.bf16.mxu0 %v1817
    %2753 = vmatpush2.bf16.msra.mxu0 %v1816
    %2754 = vmatprep.subr.bf16.mxu0 %v1813
    %2755 = vmatpush2.bf16.msra.mxu0 %v1812
    %2756 = vmatprep.subr.bf16.mxu0 %v1809
    %2757 = vmatpush2.bf16.msra.mxu0 %v1808
    %2758 = vmatprep.mubr.bf16.mxu0 %v2684
    %2759 = vmatmul.mubr.bf16.gmra.mxu0 %v2683
    %v2760 = vpop.f32.mrf.mxu0
    %v2761 = vadd.f32 0.0, %v2760
    %v2762 = vpop.f32.mrf.mxu0
    %v2763 = vadd.f32 0.0, %v2762
    %v2764 = vpop.f32.mrf.mxu0
    %v2765 = vpop.f32.mrf.mxu0
    %2766 = vdwg.mxu0
    %v2767 = vadd.f32 %v2677, %v2720
    %v2768 = vadd.f32 %v2678, %v2722
    %v2769 = vadd.f32 %v2679, %v2761
    %v2770 = vadd.f32 %v2680, %v2763
    %v2771 = vxor.u32 %v2767, 2147483648
    %v2772 = vmul.f32 %v2771, 1.442695
    %v2773 = vpow.pop %v2772
    %v2774 = vadd.f32 %v2773, 1.0
    %v2775 = vrcp.pop %v2774
    %v2776 = vmul.f32 1.0, %v2775
    %v2777 = vxor.u32 %v2768, 2147483648
    %v2778 = vmul.f32 %v2777, 1.442695
    %v2779 = vpow.pop %v2778
    %v2780 = vadd.f32 %v2779, 1.0
    %v2781 = vrcp.pop %v2780
    %v2782 = vmul.f32 1.0, %v2781
    %v2783 = vtanh.pop %v2769
    %v2784 = vxor.u32 %v2770, 2147483648
    %v2785 = vmul.f32 %v2784, 1.442695
    %v2786 = vpow.pop %v2785
    %v2787 = vadd.f32 %v2786, 1.0
    %v2788 = vrcp.pop %v2787
    %v2789 = vmul.f32 1.0, %v2788
    %v2790 = vmul.f32 %v2782, %v2639
    %v2791 = vmul.f32 %v2776, %v2783
    %v2792 = vadd.f32 %v2790, %v2791
    %v2793 = vtanh.pop %v2792
    %v2794 = vmul.f32 %v2789, %v2793
    %v2795 = vsub.f32 %v2792, %v2639
    %2796 = vset.pattern.permute.xlu0 5
    %2797 = vperm.xlu0 %2796, %v1483
    %v2798 = vpop.permute.xlu0 %2797
    %v2800 = vmul.f32 %v2798, %v2795
    %v2801 = vadd.f32 %v2639, %v2800
    %v2802 = vsub.f32 %v2794, %v2642
    %v2803 = vmul.f32 %v2798, %v2802
    %v2804 = vadd.f32 %v2642, %v2803
    %v2805 = vmul.f32 %v2798, %v2794
    %v2806 = vadd.f32 %v2644, %v2805
    %v2807 = vld [vmem:[#allocation2 + $0x20] sm:$0x30]
    %v2808 = vld [vmem:[#allocation2 + $0x28] sm:$0x30]
    %v2809 = vld [vmem:[#allocation2 + $0x30] sm:$0x30]
    %v2810 = vld [vmem:[#allocation2 + $0x38] sm:$0x30]
    %v2811 = vld [vmem:[#allocation3 + $0x40] sm:$0xc]
    %v2812 = vld [vmem:[#allocation3 + $0x48] sm:$0xc]
    %v2813 = vld [vmem:[#allocation3 + $0x50] sm:$0xc]
    %v2814 = vld [vmem:[#allocation3 + $0x58] sm:$0xc]
    %v2819 = vrot.slane %v2807, 4
    %v2820 = vrot.slane %v2808, 4
    %v2821 = vrot.slane %v2809, 4
    %v2822 = vrot.slane %v2810, 4
    %v2827 = vsel %vm122, %v2819, %v2811
    %v2828 = vsel %vm122, %v2820, %v2812
    %v2829 = vsel %vm122, %v2821, %v2813
    %v2830 = vsel %vm122, %v2822, %v2814
    %v2831 = vmul.f32 %v2804, %v1488
    %v2832 = vmul.f32 %v2804, %v1489
    %v2833 = vpack.c.bf16 %v2831, %v2831
    %v2834 = vpack.c.bf16 %v2832, %v2832
    %2835 = vmatprep.subr.bf16.mxu0 %v1803
    %2836 = vmatpush1.bf16.msra.mxu0 %v1802
    %2837 = vmatprep.subr.bf16.mxu0 %v1799
    %2838 = vmatpush1.bf16.msra.mxu0 %v1798
    %2839 = vmatprep.subr.bf16.mxu0 %v1795
    %2840 = vmatpush1.bf16.msra.mxu0 %v1794
    %2841 = vmatprep.subr.bf16.mxu0 %v1791
    %2842 = vmatpush1.bf16.msra.mxu0 %v1790
    %2843 = vmatprep.subr.bf16.mxu0 %v1787
    %2844 = vmatpush1.bf16.msra.mxu0 %v1786
    %2845 = vmatprep.subr.bf16.mxu0 %v1783
    %2846 = vmatpush1.bf16.msra.mxu0 %v1782
    %2847 = vmatprep.subr.bf16.mxu0 %v1779
    %2848 = vmatpush1.bf16.msra.mxu0 %v1778
    %2849 = vmatprep.subr.bf16.mxu0 %v1775
    %2850 = vmatpush1.bf16.msra.mxu0 %v1774
    %2851 = vmatprep.subr.bf16.mxu0 %v1835
    %2852 = vmatpush2.bf16.msra.mxu0 %v1834
    %2853 = vmatprep.subr.bf16.mxu0 %v1831
    %2854 = vmatpush2.bf16.msra.mxu0 %v1830
    %2855 = vmatprep.subr.bf16.mxu0 %v1827
    %2856 = vmatpush2.bf16.msra.mxu0 %v1826
    %2857 = vmatprep.subr.bf16.mxu0 %v1823
    %2858 = vmatpush2.bf16.msra.mxu0 %v1822
    %2859 = vmatprep.subr.bf16.mxu0 %v1819
    %2860 = vmatpush2.bf16.msra.mxu0 %v1818
    %2861 = vmatprep.subr.bf16.mxu0 %v1815
    %2862 = vmatpush2.bf16.msra.mxu0 %v1814
    %2863 = vmatprep.subr.bf16.mxu0 %v1811
    %2864 = vmatpush2.bf16.msra.mxu0 %v1810
    %2865 = vmatprep.subr.bf16.mxu0 %v1807
    %2866 = vmatpush2.bf16.msra.mxu0 %v1806
    %2867 = vmatprep.mubr.bf16.mxu0 %v2834
    %2868 = vmatmul.mubr.bf16.gmra.mxu0 %v2833
    %v2869 = vpop.f32.mrf.mxu0
    %v2870 = vadd.f32 0.0, %v2869
    %v2871 = vpop.f32.mrf.mxu0
    %v2872 = vadd.f32 0.0, %v2871
    %v2873 = vpop.f32.mrf.mxu0
    %v2874 = vpop.f32.mrf.mxu0
    %2875 = vdwg.mxu0
    %2876 = vmatprep.subr.bf16.mxu0 %v1805
    %2877 = vmatpush1.bf16.msra.mxu0 %v1804
    %2878 = vmatprep.subr.bf16.mxu0 %v1801
    %2879 = vmatpush1.bf16.msra.mxu0 %v1800
    %2880 = vmatprep.subr.bf16.mxu0 %v1797
    %2881 = vmatpush1.bf16.msra.mxu0 %v1796
    %2882 = vmatprep.subr.bf16.mxu0 %v1793
    %2883 = vmatpush1.bf16.msra.mxu0 %v1792
    %2884 = vmatprep.subr.bf16.mxu0 %v1789
    %2885 = vmatpush1.bf16.msra.mxu0 %v1788
    %2886 = vmatprep.subr.bf16.mxu0 %v1785
    %2887 = vmatpush1.bf16.msra.mxu0 %v1784
    %2888 = vmatprep.subr.bf16.mxu0 %v1781
    %2889 = vmatpush1.bf16.msra.mxu0 %v1780
    %2890 = vmatprep.subr.bf16.mxu0 %v1777
    %2891 = vmatpush1.bf16.msra.mxu0 %v1776
    %2892 = vmatprep.subr.bf16.mxu0 %v1837
    %2893 = vmatpush2.bf16.msra.mxu0 %v1836
    %2894 = vmatprep.subr.bf16.mxu0 %v1833
    %2895 = vmatpush2.bf16.msra.mxu0 %v1832
    %2896 = vmatprep.subr.bf16.mxu0 %v1829
    %2897 = vmatpush2.bf16.msra.mxu0 %v1828
    %2898 = vmatprep.subr.bf16.mxu0 %v1825
    %2899 = vmatpush2.bf16.msra.mxu0 %v1824
    %2900 = vmatprep.subr.bf16.mxu0 %v1821
    %2901 = vmatpush2.bf16.msra.mxu0 %v1820
    %2902 = vmatprep.subr.bf16.mxu0 %v1817
    %2903 = vmatpush2.bf16.msra.mxu0 %v1816
    %2904 = vmatprep.subr.bf16.mxu0 %v1813
    %2905 = vmatpush2.bf16.msra.mxu0 %v1812
    %2906 = vmatprep.subr.bf16.mxu0 %v1809
    %2907 = vmatpush2.bf16.msra.mxu0 %v1808
    %2908 = vmatprep.mubr.bf16.mxu0 %v2834
    %2909 = vmatmul.mubr.bf16.gmra.mxu0 %v2833
    %v2910 = vpop.f32.mrf.mxu0
    %v2911 = vadd.f32 0.0, %v2910
    %v2912 = vpop.f32.mrf.mxu0
    %v2913 = vadd.f32 0.0, %v2912
    %v2914 = vpop.f32.mrf.mxu0
    %v2915 = vpop.f32.mrf.mxu0
    %2916 = vdwg.mxu0
    %v2917 = vadd.f32 %v2827, %v2870
    %v2918 = vadd.f32 %v2828, %v2872
    %v2919 = vadd.f32 %v2829, %v2911
    %v2920 = vadd.f32 %v2830, %v2913
    %v2921 = vxor.u32 %v2917, 2147483648
    %v2922 = vmul.f32 %v2921, 1.442695
    %v2923 = vpow.pop %v2922
    %v2924 = vadd.f32 %v2923, 1.0
    %v2925 = vrcp.pop %v2924
    %v2926 = vmul.f32 1.0, %v2925
    %v2927 = vxor.u32 %v2918, 2147483648
    %v2928 = vmul.f32 %v2927, 1.442695
    %v2929 = vpow.pop %v2928
    %v2930 = vadd.f32 %v2929, 1.0
    %v2931 = vrcp.pop %v2930
    %v2932 = vmul.f32 1.0, %v2931
    %v2933 = vtanh.pop %v2919
    %v2934 = vxor.u32 %v2920, 2147483648
    %v2935 = vmul.f32 %v2934, 1.442695
    %v2936 = vpow.pop %v2935
    %v2937 = vadd.f32 %v2936, 1.0
    %v2938 = vrcp.pop %v2937
    %v2939 = vmul.f32 1.0, %v2938
    %v2940 = vmul.f32 %v2932, %v2801
    %v2941 = vmul.f32 %v2926, %v2933
    %v2942 = vadd.f32 %v2940, %v2941
    %v2943 = vtanh.pop %v2942
    %v2944 = vmul.f32 %v2939, %v2943
    %v2945 = vsub.f32 %v2942, %v2801
    %2946 = vset.pattern.permute.xlu0 6
    %2947 = vperm.xlu0 %2946, %v1483
    %v2948 = vpop.permute.xlu0 %2947
    %v2950 = vmul.f32 %v2948, %v2945
    %v2951 = vadd.f32 %v2801, %v2950
    %v2952 = vsub.f32 %v2944, %v2804
    %v2953 = vmul.f32 %v2948, %v2952
    %v2954 = vadd.f32 %v2804, %v2953
    %v2955 = vmul.f32 %v2948, %v2944
    %v2956 = vadd.f32 %v2806, %v2955
    %v2957 = vld [vmem:[#allocation2 + $0x20] sm:$0xc0]
    %v2958 = vld [vmem:[#allocation2 + $0x28] sm:$0xc0]
    %v2959 = vld [vmem:[#allocation2 + $0x30] sm:$0xc0]
    %v2960 = vld [vmem:[#allocation2 + $0x38] sm:$0xc0]
    %v2961 = vld [vmem:[#allocation3 + $0x40] sm:$0x3]
    %v2962 = vld [vmem:[#allocation3 + $0x48] sm:$0x3]
    %v2963 = vld [vmem:[#allocation3 + $0x50] sm:$0x3]
    %v2964 = vld [vmem:[#allocation3 + $0x58] sm:$0x3]
    %v2969 = vrot.slane %v2957, 6
    %v2970 = vrot.slane %v2958, 6
    %v2971 = vrot.slane %v2959, 6
    %v2972 = vrot.slane %v2960, 6
    %v2981 = vrot.slane %v2961, 6
    %v2982 = vrot.slane %v2962, 6
    %v2983 = vrot.slane %v2963, 6
    %v2984 = vrot.slane %v2964, 6
    %v2989 = vsel %vm122, %v2969, %v2981
    %v2990 = vsel %vm122, %v2970, %v2982
    %v2991 = vsel %vm122, %v2971, %v2983
    %v2992 = vsel %vm122, %v2972, %v2984
    %v2993 = vmul.f32 %v2954, %v1488
    %v2994 = vmul.f32 %v2954, %v1489
    %v2995 = vpack.c.bf16 %v2993, %v2993
    %v2996 = vpack.c.bf16 %v2994, %v2994
    %2997 = vmatprep.subr.bf16.mxu0 %v1803
    %2998 = vmatpush1.bf16.msra.mxu0 %v1802
    %2999 = vmatprep.subr.bf16.mxu0 %v1799
    %3000 = vmatpush1.bf16.msra.mxu0 %v1798
    %3001 = vmatprep.subr.bf16.mxu0 %v1795
    %3002 = vmatpush1.bf16.msra.mxu0 %v1794
    %3003 = vmatprep.subr.bf16.mxu0 %v1791
    %3004 = vmatpush1.bf16.msra.mxu0 %v1790
    %3005 = vmatprep.subr.bf16.mxu0 %v1787
    %3006 = vmatpush1.bf16.msra.mxu0 %v1786
    %3007 = vmatprep.subr.bf16.mxu0 %v1783
    %3008 = vmatpush1.bf16.msra.mxu0 %v1782
    %3009 = vmatprep.subr.bf16.mxu0 %v1779
    %3010 = vmatpush1.bf16.msra.mxu0 %v1778
    %3011 = vmatprep.subr.bf16.mxu0 %v1775
    %3012 = vmatpush1.bf16.msra.mxu0 %v1774
    %3013 = vmatprep.subr.bf16.mxu0 %v1835
    %3014 = vmatpush2.bf16.msra.mxu0 %v1834
    %3015 = vmatprep.subr.bf16.mxu0 %v1831
    %3016 = vmatpush2.bf16.msra.mxu0 %v1830
    %3017 = vmatprep.subr.bf16.mxu0 %v1827
    %3018 = vmatpush2.bf16.msra.mxu0 %v1826
    %3019 = vmatprep.subr.bf16.mxu0 %v1823
    %3020 = vmatpush2.bf16.msra.mxu0 %v1822
    %3021 = vmatprep.subr.bf16.mxu0 %v1819
    %3022 = vmatpush2.bf16.msra.mxu0 %v1818
    %3023 = vmatprep.subr.bf16.mxu0 %v1815
    %3024 = vmatpush2.bf16.msra.mxu0 %v1814
    %3025 = vmatprep.subr.bf16.mxu0 %v1811
    %3026 = vmatpush2.bf16.msra.mxu0 %v1810
    %3027 = vmatprep.subr.bf16.mxu0 %v1807
    %3028 = vmatpush2.bf16.msra.mxu0 %v1806
    %3029 = vmatprep.mubr.bf16.mxu0 %v2996
    %3030 = vmatmul.mubr.bf16.gmra.mxu0 %v2995
    %v3031 = vpop.f32.mrf.mxu0
    %v3032 = vadd.f32 0.0, %v3031
    %v3033 = vpop.f32.mrf.mxu0
    %v3034 = vadd.f32 0.0, %v3033
    %v3035 = vpop.f32.mrf.mxu0
    %v3036 = vpop.f32.mrf.mxu0
    %3037 = vdwg.mxu0
    %3038 = vmatprep.subr.bf16.mxu0 %v1805
    %3039 = vmatpush1.bf16.msra.mxu0 %v1804
    %3040 = vmatprep.subr.bf16.mxu0 %v1801
    %3041 = vmatpush1.bf16.msra.mxu0 %v1800
    %3042 = vmatprep.subr.bf16.mxu0 %v1797
    %3043 = vmatpush1.bf16.msra.mxu0 %v1796
    %3044 = vmatprep.subr.bf16.mxu0 %v1793
    %3045 = vmatpush1.bf16.msra.mxu0 %v1792
    %3046 = vmatprep.subr.bf16.mxu0 %v1789
    %3047 = vmatpush1.bf16.msra.mxu0 %v1788
    %3048 = vmatprep.subr.bf16.mxu0 %v1785
    %3049 = vmatpush1.bf16.msra.mxu0 %v1784
    %3050 = vmatprep.subr.bf16.mxu0 %v1781
    %3051 = vmatpush1.bf16.msra.mxu0 %v1780
    %3052 = vmatprep.subr.bf16.mxu0 %v1777
    %3053 = vmatpush1.bf16.msra.mxu0 %v1776
    %3054 = vmatprep.subr.bf16.mxu0 %v1837
    %3055 = vmatpush2.bf16.msra.mxu0 %v1836
    %3056 = vmatprep.subr.bf16.mxu0 %v1833
    %3057 = vmatpush2.bf16.msra.mxu0 %v1832
    %3058 = vmatprep.subr.bf16.mxu0 %v1829
    %3059 = vmatpush2.bf16.msra.mxu0 %v1828
    %3060 = vmatprep.subr.bf16.mxu0 %v1825
    %3061 = vmatpush2.bf16.msra.mxu0 %v1824
    %3062 = vmatprep.subr.bf16.mxu0 %v1821
    %3063 = vmatpush2.bf16.msra.mxu0 %v1820
    %3064 = vmatprep.subr.bf16.mxu0 %v1817
    %3065 = vmatpush2.bf16.msra.mxu0 %v1816
    %3066 = vmatprep.subr.bf16.mxu0 %v1813
    %3067 = vmatpush2.bf16.msra.mxu0 %v1812
    %3068 = vmatprep.subr.bf16.mxu0 %v1809
    %3069 = vmatpush2.bf16.msra.mxu0 %v1808
    %3070 = vmatprep.mubr.bf16.mxu0 %v2996
    %3071 = vmatmul.mubr.bf16.gmra.mxu0 %v2995
    %v3072 = vpop.f32.mrf.mxu0
    %v3073 = vadd.f32 0.0, %v3072
    %v3074 = vpop.f32.mrf.mxu0
    %v3075 = vadd.f32 0.0, %v3074
    %v3076 = vpop.f32.mrf.mxu0
    %v3077 = vpop.f32.mrf.mxu0
    %3078 = vdwg.mxu0
    %v3079 = vadd.f32 %v2989, %v3032
    %v3080 = vadd.f32 %v2990, %v3034
    %v3081 = vadd.f32 %v2991, %v3073
    %v3082 = vadd.f32 %v2992, %v3075
    %v3083 = vxor.u32 %v3079, 2147483648
    %v3084 = vmul.f32 %v3083, 1.442695
    %v3085 = vpow.pop %v3084
    %v3086 = vadd.f32 %v3085, 1.0
    %v3087 = vrcp.pop %v3086
    %v3088 = vmul.f32 1.0, %v3087
    %v3089 = vxor.u32 %v3080, 2147483648
    %v3090 = vmul.f32 %v3089, 1.442695
    %v3091 = vpow.pop %v3090
    %v3092 = vadd.f32 %v3091, 1.0
    %v3093 = vrcp.pop %v3092
    %v3094 = vmul.f32 1.0, %v3093
    %v3095 = vtanh.pop %v3081
    %v3096 = vxor.u32 %v3082, 2147483648
    %v3097 = vmul.f32 %v3096, 1.442695
    %v3098 = vpow.pop %v3097
    %v3099 = vadd.f32 %v3098, 1.0
    %v3100 = vrcp.pop %v3099
    %v3101 = vmul.f32 1.0, %v3100
    %v3102 = vmul.f32 %v3094, %v2951
    %v3103 = vmul.f32 %v3088, %v3095
    %v3104 = vadd.f32 %v3102, %v3103
    %v3105 = vtanh.pop %v3104
    %v3106 = vmul.f32 %v3101, %v3105
    %v3107 = vsub.f32 %v3104, %v2951
    %3108 = vset.pattern.permute.xlu0 7
    %3109 = vperm.xlu0 %3108, %v1483
    %v3110 = vpop.permute.xlu0 %3109
    %v3112 = vmul.f32 %v3110, %v3107
    %v3113 = vadd.f32 %v2951, %v3112
    %v3114 = vsub.f32 %v3106, %v2954
    %v3115 = vmul.f32 %v3110, %v3114
    %v3116 = vadd.f32 %v2954, %v3115
    %v3117 = vmul.f32 %v3110, %v3106
    %v3118 = vadd.f32 %v2956, %v3117
    %v3119 = vld [vmem:[#allocation2 + $0x40] sm:$0x3]
    %v3120 = vld [vmem:[#allocation2 + $0x48] sm:$0x3]
    %v3121 = vld [vmem:[#allocation2 + $0x50] sm:$0x3]
    %v3122 = vld [vmem:[#allocation2 + $0x58] sm:$0x3]
    %v3123 = vld [vmem:[#allocation3 + $0x20] sm:$0xc0]
    %v3124 = vld [vmem:[#allocation3 + $0x28] sm:$0xc0]
    %v3125 = vld [vmem:[#allocation3 + $0x30] sm:$0xc0]
    %v3126 = vld [vmem:[#allocation3 + $0x38] sm:$0xc0]
    %v3131 = vrot.slane %v3123, 4
    %v3132 = vrot.slane %v3124, 4
    %v3133 = vrot.slane %v3125, 4
    %v3134 = vrot.slane %v3126, 4
    %v3139 = vsel %vm122, %v3119, %v3131
    %v3140 = vsel %vm122, %v3120, %v3132
    %v3141 = vsel %vm122, %v3121, %v3133
    %v3142 = vsel %vm122, %v3122, %v3134
    %v3143 = vmul.f32 %v3116, %v1488
    %v3144 = vmul.f32 %v3116, %v1489
    %v3145 = vpack.c.bf16 %v3143, %v3143
    %v3146 = vpack.c.bf16 %v3144, %v3144
    %3147 = vmatprep.subr.bf16.mxu0 %v1803
    %3148 = vmatpush1.bf16.msra.mxu0 %v1802
    %3149 = vmatprep.subr.bf16.mxu0 %v1799
    %3150 = vmatpush1.bf16.msra.mxu0 %v1798
    %3151 = vmatprep.subr.bf16.mxu0 %v1795
    %3152 = vmatpush1.bf16.msra.mxu0 %v1794
    %3153 = vmatprep.subr.bf16.mxu0 %v1791
    %3154 = vmatpush1.bf16.msra.mxu0 %v1790
    %3155 = vmatprep.subr.bf16.mxu0 %v1787
    %3156 = vmatpush1.bf16.msra.mxu0 %v1786
    %3157 = vmatprep.subr.bf16.mxu0 %v1783
    %3158 = vmatpush1.bf16.msra.mxu0 %v1782
    %3159 = vmatprep.subr.bf16.mxu0 %v1779
    %3160 = vmatpush1.bf16.msra.mxu0 %v1778
    %3161 = vmatprep.subr.bf16.mxu0 %v1775
    %3162 = vmatpush1.bf16.msra.mxu0 %v1774
    %3163 = vmatprep.subr.bf16.mxu0 %v1835
    %3164 = vmatpush2.bf16.msra.mxu0 %v1834
    %3165 = vmatprep.subr.bf16.mxu0 %v1831
    %3166 = vmatpush2.bf16.msra.mxu0 %v1830
    %3167 = vmatprep.subr.bf16.mxu0 %v1827
    %3168 = vmatpush2.bf16.msra.mxu0 %v1826
    %3169 = vmatprep.subr.bf16.mxu0 %v1823
    %3170 = vmatpush2.bf16.msra.mxu0 %v1822
    %3171 = vmatprep.subr.bf16.mxu0 %v1819
    %3172 = vmatpush2.bf16.msra.mxu0 %v1818
    %3173 = vmatprep.subr.bf16.mxu0 %v1815
    %3174 = vmatpush2.bf16.msra.mxu0 %v1814
    %3175 = vmatprep.subr.bf16.mxu0 %v1811
    %3176 = vmatpush2.bf16.msra.mxu0 %v1810
    %3177 = vmatprep.subr.bf16.mxu0 %v1807
    %3178 = vmatpush2.bf16.msra.mxu0 %v1806
    %3179 = vmatprep.mubr.bf16.mxu0 %v3146
    %3180 = vmatmul.mubr.bf16.gmra.mxu0 %v3145
    %v3181 = vpop.f32.mrf.mxu0
    %v3182 = vadd.f32 0.0, %v3181
    %v3183 = vpop.f32.mrf.mxu0
    %v3184 = vadd.f32 0.0, %v3183
    %v3185 = vpop.f32.mrf.mxu0
    %v3186 = vpop.f32.mrf.mxu0
    %3187 = vdwg.mxu0
    %3188 = vmatprep.subr.bf16.mxu0 %v1805
    %3189 = vmatpush1.bf16.msra.mxu0 %v1804
    %3190 = vmatprep.subr.bf16.mxu0 %v1801
    %3191 = vmatpush1.bf16.msra.mxu0 %v1800
    %3192 = vmatprep.subr.bf16.mxu0 %v1797
    %3193 = vmatpush1.bf16.msra.mxu0 %v1796
    %3194 = vmatprep.subr.bf16.mxu0 %v1793
    %3195 = vmatpush1.bf16.msra.mxu0 %v1792
    %3196 = vmatprep.subr.bf16.mxu0 %v1789
    %3197 = vmatpush1.bf16.msra.mxu0 %v1788
    %3198 = vmatprep.subr.bf16.mxu0 %v1785
    %3199 = vmatpush1.bf16.msra.mxu0 %v1784
    %3200 = vmatprep.subr.bf16.mxu0 %v1781
    %3201 = vmatpush1.bf16.msra.mxu0 %v1780
    %3202 = vmatprep.subr.bf16.mxu0 %v1777
    %3203 = vmatpush1.bf16.msra.mxu0 %v1776
    %3204 = vmatprep.subr.bf16.mxu0 %v1837
    %3205 = vmatpush2.bf16.msra.mxu0 %v1836
    %3206 = vmatprep.subr.bf16.mxu0 %v1833
    %3207 = vmatpush2.bf16.msra.mxu0 %v1832
    %3208 = vmatprep.subr.bf16.mxu0 %v1829
    %3209 = vmatpush2.bf16.msra.mxu0 %v1828
    %3210 = vmatprep.subr.bf16.mxu0 %v1825
    %3211 = vmatpush2.bf16.msra.mxu0 %v1824
    %3212 = vmatprep.subr.bf16.mxu0 %v1821
    %3213 = vmatpush2.bf16.msra.mxu0 %v1820
    %3214 = vmatprep.subr.bf16.mxu0 %v1817
    %3215 = vmatpush2.bf16.msra.mxu0 %v1816
    %3216 = vmatprep.subr.bf16.mxu0 %v1813
    %3217 = vmatpush2.bf16.msra.mxu0 %v1812
    %3218 = vmatprep.subr.bf16.mxu0 %v1809
    %3219 = vmatpush2.bf16.msra.mxu0 %v1808
    %3220 = vmatprep.mubr.bf16.mxu0 %v3146
    %3221 = vmatmul.mubr.bf16.gmra.mxu0 %v3145
    %v3222 = vpop.f32.mrf.mxu0
    %v3223 = vadd.f32 0.0, %v3222
    %v3224 = vpop.f32.mrf.mxu0
    %v3225 = vadd.f32 0.0, %v3224
    %v3226 = vpop.f32.mrf.mxu0
    %v3227 = vpop.f32.mrf.mxu0
    %3228 = vdwg.mxu0
    %v3229 = vadd.f32 %v3139, %v3182
    %v3230 = vadd.f32 %v3140, %v3184
    %v3231 = vadd.f32 %v3141, %v3223
    %v3232 = vadd.f32 %v3142, %v3225
    %v3233 = vxor.u32 %v3229, 2147483648
    %v3234 = vmul.f32 %v3233, 1.442695
    %v3235 = vpow.pop %v3234
    %v3236 = vadd.f32 %v3235, 1.0
    %v3237 = vrcp.pop %v3236
    %v3238 = vmul.f32 1.0, %v3237
    %v3239 = vxor.u32 %v3230, 2147483648
    %v3240 = vmul.f32 %v3239, 1.442695
    %v3241 = vpow.pop %v3240
    %v3242 = vadd.f32 %v3241, 1.0
    %v3243 = vrcp.pop %v3242
    %v3244 = vmul.f32 1.0, %v3243
    %v3245 = vtanh.pop %v3231
    %v3246 = vxor.u32 %v3232, 2147483648
    %v3247 = vmul.f32 %v3246, 1.442695
    %v3248 = vpow.pop %v3247
    %v3249 = vadd.f32 %v3248, 1.0
    %v3250 = vrcp.pop %v3249
    %v3251 = vmul.f32 1.0, %v3250
    %v3252 = vmul.f32 %v3244, %v3113
    %v3253 = vmul.f32 %v3238, %v3245
    %v3254 = vadd.f32 %v3252, %v3253
    %v3255 = vtanh.pop %v3254
    %v3256 = vmul.f32 %v3251, %v3255
    %v3257 = vsub.f32 %v3254, %v3113
    %3258 = vset.pattern.permute.xlu0 8
    %3259 = vperm.xlu0 %3258, %v1483
    %v3260 = vpop.permute.xlu0 %3259
    %v3262 = vmul.f32 %v3260, %v3257
    %v3263 = vadd.f32 %v3113, %v3262
    %v3264 = vsub.f32 %v3256, %v3116
    %v3265 = vmul.f32 %v3260, %v3264
    %v3266 = vadd.f32 %v3116, %v3265
    %v3267 = vmul.f32 %v3260, %v3256
    %v3268 = vadd.f32 %v3118, %v3267
    %v3269 = vld [vmem:[#allocation2 + $0x40] sm:$0xc]
    %v3270 = vld [vmem:[#allocation2 + $0x48] sm:$0xc]
    %v3271 = vld [vmem:[#allocation2 + $0x50] sm:$0xc]
    %v3272 = vld [vmem:[#allocation2 + $0x58] sm:$0xc]
    %v3273 = vld [vmem:[#allocation3 + $0x20] sm:$0x30]
    %v3274 = vld [vmem:[#allocation3 + $0x28] sm:$0x30]
    %v3275 = vld [vmem:[#allocation3 + $0x30] sm:$0x30]
    %v3276 = vld [vmem:[#allocation3 + $0x38] sm:$0x30]
    %v3281 = vrot.slane %v3269, 2
    %v3282 = vrot.slane %v3270, 2
    %v3283 = vrot.slane %v3271, 2
    %v3284 = vrot.slane %v3272, 2
    %v3293 = vrot.slane %v3273, 2
    %v3294 = vrot.slane %v3274, 2
    %v3295 = vrot.slane %v3275, 2
    %v3296 = vrot.slane %v3276, 2
    %v3301 = vsel %vm122, %v3281, %v3293
    %v3302 = vsel %vm122, %v3282, %v3294
    %v3303 = vsel %vm122, %v3283, %v3295
    %v3304 = vsel %vm122, %v3284, %v3296
    %v3305 = vmul.f32 %v3266, %v1488
    %v3306 = vmul.f32 %v3266, %v1489
    %v3307 = vpack.c.bf16 %v3305, %v3305
    %v3308 = vpack.c.bf16 %v3306, %v3306
    %3309 = vmatprep.subr.bf16.mxu0 %v1803
    %3310 = vmatpush1.bf16.msra.mxu0 %v1802
    %3311 = vmatprep.subr.bf16.mxu0 %v1799
    %3312 = vmatpush1.bf16.msra.mxu0 %v1798
    %3313 = vmatprep.subr.bf16.mxu0 %v1795
    %3314 = vmatpush1.bf16.msra.mxu0 %v1794
    %3315 = vmatprep.subr.bf16.mxu0 %v1791
    %3316 = vmatpush1.bf16.msra.mxu0 %v1790
    %3317 = vmatprep.subr.bf16.mxu0 %v1787
    %3318 = vmatpush1.bf16.msra.mxu0 %v1786
    %3319 = vmatprep.subr.bf16.mxu0 %v1783
    %3320 = vmatpush1.bf16.msra.mxu0 %v1782
    %3321 = vmatprep.subr.bf16.mxu0 %v1779
    %3322 = vmatpush1.bf16.msra.mxu0 %v1778
    %3323 = vmatprep.subr.bf16.mxu0 %v1775
    %3324 = vmatpush1.bf16.msra.mxu0 %v1774
    %3325 = vmatprep.subr.bf16.mxu0 %v1835
    %3326 = vmatpush2.bf16.msra.mxu0 %v1834
    %3327 = vmatprep.subr.bf16.mxu0 %v1831
    %3328 = vmatpush2.bf16.msra.mxu0 %v1830
    %3329 = vmatprep.subr.bf16.mxu0 %v1827
    %3330 = vmatpush2.bf16.msra.mxu0 %v1826
    %3331 = vmatprep.subr.bf16.mxu0 %v1823
    %3332 = vmatpush2.bf16.msra.mxu0 %v1822
    %3333 = vmatprep.subr.bf16.mxu0 %v1819
    %3334 = vmatpush2.bf16.msra.mxu0 %v1818
    %3335 = vmatprep.subr.bf16.mxu0 %v1815
    %3336 = vmatpush2.bf16.msra.mxu0 %v1814
    %3337 = vmatprep.subr.bf16.mxu0 %v1811
    %3338 = vmatpush2.bf16.msra.mxu0 %v1810
    %3339 = vmatprep.subr.bf16.mxu0 %v1807
    %3340 = vmatpush2.bf16.msra.mxu0 %v1806
    %3341 = vmatprep.mubr.bf16.mxu0 %v3308
    %3342 = vmatmul.mubr.bf16.gmra.mxu0 %v3307
    %v3343 = vpop.f32.mrf.mxu0
    %v3344 = vadd.f32 0.0, %v3343
    %v3345 = vpop.f32.mrf.mxu0
    %v3346 = vadd.f32 0.0, %v3345
    %v3347 = vpop.f32.mrf.mxu0
    %v3348 = vpop.f32.mrf.mxu0
    %3349 = vdwg.mxu0
    %3350 = vmatprep.subr.bf16.mxu0 %v1805
    %3351 = vmatpush1.bf16.msra.mxu0 %v1804
    %3352 = vmatprep.subr.bf16.mxu0 %v1801
    %3353 = vmatpush1.bf16.msra.mxu0 %v1800
    %3354 = vmatprep.subr.bf16.mxu0 %v1797
    %3355 = vmatpush1.bf16.msra.mxu0 %v1796
    %3356 = vmatprep.subr.bf16.mxu0 %v1793
    %3357 = vmatpush1.bf16.msra.mxu0 %v1792
    %3358 = vmatprep.subr.bf16.mxu0 %v1789
    %3359 = vmatpush1.bf16.msra.mxu0 %v1788
    %3360 = vmatprep.subr.bf16.mxu0 %v1785
    %3361 = vmatpush1.bf16.msra.mxu0 %v1784
    %3362 = vmatprep.subr.bf16.mxu0 %v1781
    %3363 = vmatpush1.bf16.msra.mxu0 %v1780
    %3364 = vmatprep.subr.bf16.mxu0 %v1777
    %3365 = vmatpush1.bf16.msra.mxu0 %v1776
    %3366 = vmatprep.subr.bf16.mxu0 %v1837
    %3367 = vmatpush2.bf16.msra.mxu0 %v1836
    %3368 = vmatprep.subr.bf16.mxu0 %v1833
    %3369 = vmatpush2.bf16.msra.mxu0 %v1832
    %3370 = vmatprep.subr.bf16.mxu0 %v1829
    %3371 = vmatpush2.bf16.msra.mxu0 %v1828
    %3372 = vmatprep.subr.bf16.mxu0 %v1825
    %3373 = vmatpush2.bf16.msra.mxu0 %v1824
    %3374 = vmatprep.subr.bf16.mxu0 %v1821
    %3375 = vmatpush2.bf16.msra.mxu0 %v1820
    %3376 = vmatprep.subr.bf16.mxu0 %v1817
    %3377 = vmatpush2.bf16.msra.mxu0 %v1816
    %3378 = vmatprep.subr.bf16.mxu0 %v1813
    %3379 = vmatpush2.bf16.msra.mxu0 %v1812
    %3380 = vmatprep.subr.bf16.mxu0 %v1809
    %3381 = vmatpush2.bf16.msra.mxu0 %v1808
    %3382 = vmatprep.mubr.bf16.mxu0 %v3308
    %3383 = vmatmul.mubr.bf16.gmra.mxu0 %v3307
    %v3384 = vpop.f32.mrf.mxu0
    %v3385 = vadd.f32 0.0, %v3384
    %v3386 = vpop.f32.mrf.mxu0
    %v3387 = vadd.f32 0.0, %v3386
    %v3388 = vpop.f32.mrf.mxu0
    %v3389 = vpop.f32.mrf.mxu0
    %3390 = vdwg.mxu0
    %v3391 = vadd.f32 %v3301, %v3344
    %v3392 = vadd.f32 %v3302, %v3346
    %v3393 = vadd.f32 %v3303, %v3385
    %v3394 = vadd.f32 %v3304, %v3387
    %v3395 = vxor.u32 %v3391, 2147483648
    %v3396 = vmul.f32 %v3395, 1.442695
    %v3397 = vpow.pop %v3396
    %v3398 = vadd.f32 %v3397, 1.0
    %v3399 = vrcp.pop %v3398
    %v3400 = vmul.f32 1.0, %v3399
    %v3401 = vxor.u32 %v3392, 2147483648
    %v3402 = vmul.f32 %v3401, 1.442695
    %v3403 = vpow.pop %v3402
    %v3404 = vadd.f32 %v3403, 1.0
    %v3405 = vrcp.pop %v3404
    %v3406 = vmul.f32 1.0, %v3405
    %v3407 = vtanh.pop %v3393
    %v3408 = vxor.u32 %v3394, 2147483648
    %v3409 = vmul.f32 %v3408, 1.442695
    %v3410 = vpow.pop %v3409
    %v3411 = vadd.f32 %v3410, 1.0
    %v3412 = vrcp.pop %v3411
    %v3413 = vmul.f32 1.0, %v3412
    %v3414 = vmul.f32 %v3406, %v3263
    %v3415 = vmul.f32 %v3400, %v3407
    %v3416 = vadd.f32 %v3414, %v3415
    %v3417 = vtanh.pop %v3416
    %v3418 = vmul.f32 %v3413, %v3417
    %v3419 = vsub.f32 %v3416, %v3263
    %3420 = vset.pattern.permute.xlu0 9
    %3421 = vperm.xlu0 %3420, %v1483
    %v3422 = vpop.permute.xlu0 %3421
    %v3424 = vmul.f32 %v3422, %v3419
    %v3425 = vadd.f32 %v3263, %v3424
    %v3426 = vsub.f32 %v3418, %v3266
    %v3427 = vmul.f32 %v3422, %v3426
    %v3428 = vadd.f32 %v3266, %v3427
    %v3429 = vmul.f32 %v3422, %v3418
    %v3430 = vadd.f32 %v3268, %v3429
    %v3431 = vld [vmem:[#allocation2 + $0x40] sm:$0x30]
    %v3432 = vld [vmem:[#allocation2 + $0x48] sm:$0x30]
    %v3433 = vld [vmem:[#allocation2 + $0x50] sm:$0x30]
    %v3434 = vld [vmem:[#allocation2 + $0x58] sm:$0x30]
    %v3435 = vld [vmem:[#allocation3 + $0x20] sm:$0xc]
    %v3436 = vld [vmem:[#allocation3 + $0x28] sm:$0xc]
    %v3437 = vld [vmem:[#allocation3 + $0x30] sm:$0xc]
    %v3438 = vld [vmem:[#allocation3 + $0x38] sm:$0xc]
    %v3443 = vrot.slane %v3431, 4
    %v3444 = vrot.slane %v3432, 4
    %v3445 = vrot.slane %v3433, 4
    %v3446 = vrot.slane %v3434, 4
    %v3451 = vsel %vm122, %v3443, %v3435
    %v3452 = vsel %vm122, %v3444, %v3436
    %v3453 = vsel %vm122, %v3445, %v3437
    %v3454 = vsel %vm122, %v3446, %v3438
    %v3455 = vmul.f32 %v3428, %v1488
    %v3456 = vmul.f32 %v3428, %v1489
    %v3457 = vpack.c.bf16 %v3455, %v3455
    %v3458 = vpack.c.bf16 %v3456, %v3456
    %3459 = vmatprep.subr.bf16.mxu0 %v1803
    %3460 = vmatpush1.bf16.msra.mxu0 %v1802
    %3461 = vmatprep.subr.bf16.mxu0 %v1799
    %3462 = vmatpush1.bf16.msra.mxu0 %v1798
    %3463 = vmatprep.subr.bf16.mxu0 %v1795
    %3464 = vmatpush1.bf16.msra.mxu0 %v1794
    %3465 = vmatprep.subr.bf16.mxu0 %v1791
    %3466 = vmatpush1.bf16.msra.mxu0 %v1790
    %3467 = vmatprep.subr.bf16.mxu0 %v1787
    %3468 = vmatpush1.bf16.msra.mxu0 %v1786
    %3469 = vmatprep.subr.bf16.mxu0 %v1783
    %3470 = vmatpush1.bf16.msra.mxu0 %v1782
    %3471 = vmatprep.subr.bf16.mxu0 %v1779
    %3472 = vmatpush1.bf16.msra.mxu0 %v1778
    %3473 = vmatprep.subr.bf16.mxu0 %v1775
    %3474 = vmatpush1.bf16.msra.mxu0 %v1774
    %3475 = vmatprep.subr.bf16.mxu0 %v1835
    %3476 = vmatpush2.bf16.msra.mxu0 %v1834
    %3477 = vmatprep.subr.bf16.mxu0 %v1831
    %3478 = vmatpush2.bf16.msra.mxu0 %v1830
    %3479 = vmatprep.subr.bf16.mxu0 %v1827
    %3480 = vmatpush2.bf16.msra.mxu0 %v1826
    %3481 = vmatprep.subr.bf16.mxu0 %v1823
    %3482 = vmatpush2.bf16.msra.mxu0 %v1822
    %3483 = vmatprep.subr.bf16.mxu0 %v1819
    %3484 = vmatpush2.bf16.msra.mxu0 %v1818
    %3485 = vmatprep.subr.bf16.mxu0 %v1815
    %3486 = vmatpush2.bf16.msra.mxu0 %v1814
    %3487 = vmatprep.subr.bf16.mxu0 %v1811
    %3488 = vmatpush2.bf16.msra.mxu0 %v1810
    %3489 = vmatprep.subr.bf16.mxu0 %v1807
    %3490 = vmatpush2.bf16.msra.mxu0 %v1806
    %3491 = vmatprep.mubr.bf16.mxu0 %v3458
    %3492 = vmatmul.mubr.bf16.gmra.mxu0 %v3457
    %v3493 = vpop.f32.mrf.mxu0
    %v3494 = vadd.f32 0.0, %v3493
    %v3495 = vpop.f32.mrf.mxu0
    %v3496 = vadd.f32 0.0, %v3495
    %v3497 = vpop.f32.mrf.mxu0
    %v3498 = vpop.f32.mrf.mxu0
    %3499 = vdwg.mxu0
    %3500 = vmatprep.subr.bf16.mxu0 %v1805
    %3501 = vmatpush1.bf16.msra.mxu0 %v1804
    %3502 = vmatprep.subr.bf16.mxu0 %v1801
    %3503 = vmatpush1.bf16.msra.mxu0 %v1800
    %3504 = vmatprep.subr.bf16.mxu0 %v1797
    %3505 = vmatpush1.bf16.msra.mxu0 %v1796
    %3506 = vmatprep.subr.bf16.mxu0 %v1793
    %3507 = vmatpush1.bf16.msra.mxu0 %v1792
    %3508 = vmatprep.subr.bf16.mxu0 %v1789
    %3509 = vmatpush1.bf16.msra.mxu0 %v1788
    %3510 = vmatprep.subr.bf16.mxu0 %v1785
    %3511 = vmatpush1.bf16.msra.mxu0 %v1784
    %3512 = vmatprep.subr.bf16.mxu0 %v1781
    %3513 = vmatpush1.bf16.msra.mxu0 %v1780
    %3514 = vmatprep.subr.bf16.mxu0 %v1777
    %3515 = vmatpush1.bf16.msra.mxu0 %v1776
    %3516 = vmatprep.subr.bf16.mxu0 %v1837
    %3517 = vmatpush2.bf16.msra.mxu0 %v1836
    %3518 = vmatprep.subr.bf16.mxu0 %v1833
    %3519 = vmatpush2.bf16.msra.mxu0 %v1832
    %3520 = vmatprep.subr.bf16.mxu0 %v1829
    %3521 = vmatpush2.bf16.msra.mxu0 %v1828
    %3522 = vmatprep.subr.bf16.mxu0 %v1825
    %3523 = vmatpush2.bf16.msra.mxu0 %v1824
    %3524 = vmatprep.subr.bf16.mxu0 %v1821
    %3525 = vmatpush2.bf16.msra.mxu0 %v1820
    %3526 = vmatprep.subr.bf16.mxu0 %v1817
    %3527 = vmatpush2.bf16.msra.mxu0 %v1816
    %3528 = vmatprep.subr.bf16.mxu0 %v1813
    %3529 = vmatpush2.bf16.msra.mxu0 %v1812
    %3530 = vmatprep.subr.bf16.mxu0 %v1809
    %3531 = vmatpush2.bf16.msra.mxu0 %v1808
    %3532 = vmatprep.mubr.bf16.mxu0 %v3458
    %3533 = vmatmul.mubr.bf16.gmra.mxu0 %v3457
    %v3534 = vpop.f32.mrf.mxu0
    %v3535 = vadd.f32 0.0, %v3534
    %v3536 = vpop.f32.mrf.mxu0
    %v3537 = vadd.f32 0.0, %v3536
    %v3538 = vpop.f32.mrf.mxu0
    %v3539 = vpop.f32.mrf.mxu0
    %3540 = vdwg.mxu0
    %v3541 = vadd.f32 %v3451, %v3494
    %v3542 = vadd.f32 %v3452, %v3496
    %v3543 = vadd.f32 %v3453, %v3535
    %v3544 = vadd.f32 %v3454, %v3537
    %v3545 = vxor.u32 %v3541, 2147483648
    %v3546 = vmul.f32 %v3545, 1.442695
    %v3547 = vpow.pop %v3546
    %v3548 = vadd.f32 %v3547, 1.0
    %v3549 = vrcp.pop %v3548
    %v3550 = vmul.f32 1.0, %v3549
    %v3551 = vxor.u32 %v3542, 2147483648
    %v3552 = vmul.f32 %v3551, 1.442695
    %v3553 = vpow.pop %v3552
    %v3554 = vadd.f32 %v3553, 1.0
    %v3555 = vrcp.pop %v3554
    %v3556 = vmul.f32 1.0, %v3555
    %v3557 = vtanh.pop %v3543
    %v3558 = vxor.u32 %v3544, 2147483648
    %v3559 = vmul.f32 %v3558, 1.442695
    %v3560 = vpow.pop %v3559
    %v3561 = vadd.f32 %v3560, 1.0
    %v3562 = vrcp.pop %v3561
    %v3563 = vmul.f32 1.0, %v3562
    %v3564 = vmul.f32 %v3556, %v3425
    %v3565 = vmul.f32 %v3550, %v3557
    %v3566 = vadd.f32 %v3564, %v3565
    %v3567 = vtanh.pop %v3566
    %v3568 = vmul.f32 %v3563, %v3567
    %v3569 = vsub.f32 %v3566, %v3425
    %3570 = vset.pattern.permute.xlu0 10
    %3571 = vperm.xlu0 %3570, %v1483
    %v3572 = vpop.permute.xlu0 %3571
    %v3574 = vmul.f32 %v3572, %v3569
    %v3575 = vadd.f32 %v3425, %v3574
    %v3576 = vsub.f32 %v3568, %v3428
    %v3577 = vmul.f32 %v3572, %v3576
    %v3578 = vadd.f32 %v3428, %v3577
    %v3579 = vmul.f32 %v3572, %v3568
    %v3580 = vadd.f32 %v3430, %v3579
    %v3581 = vld [vmem:[#allocation2 + $0x40] sm:$0xc0]
    %v3582 = vld [vmem:[#allocation2 + $0x48] sm:$0xc0]
    %v3583 = vld [vmem:[#allocation2 + $0x50] sm:$0xc0]
    %v3584 = vld [vmem:[#allocation2 + $0x58] sm:$0xc0]
    %v3585 = vld [vmem:[#allocation3 + $0x20] sm:$0x3]
    %v3586 = vld [vmem:[#allocation3 + $0x28] sm:$0x3]
    %v3587 = vld [vmem:[#allocation3 + $0x30] sm:$0x3]
    %v3588 = vld [vmem:[#allocation3 + $0x38] sm:$0x3]
    %v3593 = vrot.slane %v3581, 6
    %v3594 = vrot.slane %v3582, 6
    %v3595 = vrot.slane %v3583, 6
    %v3596 = vrot.slane %v3584, 6
    %v3605 = vrot.slane %v3585, 6
    %v3606 = vrot.slane %v3586, 6
    %v3607 = vrot.slane %v3587, 6
    %v3608 = vrot.slane %v3588, 6
    %v3613 = vsel %vm122, %v3593, %v3605
    %v3614 = vsel %vm122, %v3594, %v3606
    %v3615 = vsel %vm122, %v3595, %v3607
    %v3616 = vsel %vm122, %v3596, %v3608
    %v3617 = vmul.f32 %v3578, %v1488
    %v3618 = vmul.f32 %v3578, %v1489
    %v3619 = vpack.c.bf16 %v3617, %v3617
    %v3620 = vpack.c.bf16 %v3618, %v3618
    %3621 = vmatprep.subr.bf16.mxu0 %v1803
    %3622 = vmatpush1.bf16.msra.mxu0 %v1802
    %3623 = vmatprep.subr.bf16.mxu0 %v1799
    %3624 = vmatpush1.bf16.msra.mxu0 %v1798
    %3625 = vmatprep.subr.bf16.mxu0 %v1795
    %3626 = vmatpush1.bf16.msra.mxu0 %v1794
    %3627 = vmatprep.subr.bf16.mxu0 %v1791
    %3628 = vmatpush1.bf16.msra.mxu0 %v1790
    %3629 = vmatprep.subr.bf16.mxu0 %v1787
    %3630 = vmatpush1.bf16.msra.mxu0 %v1786
    %3631 = vmatprep.subr.bf16.mxu0 %v1783
    %3632 = vmatpush1.bf16.msra.mxu0 %v1782
    %3633 = vmatprep.subr.bf16.mxu0 %v1779
    %3634 = vmatpush1.bf16.msra.mxu0 %v1778
    %3635 = vmatprep.subr.bf16.mxu0 %v1775
    %3636 = vmatpush1.bf16.msra.mxu0 %v1774
    %3637 = vmatprep.subr.bf16.mxu0 %v1835
    %3638 = vmatpush2.bf16.msra.mxu0 %v1834
    %3639 = vmatprep.subr.bf16.mxu0 %v1831
    %3640 = vmatpush2.bf16.msra.mxu0 %v1830
    %3641 = vmatprep.subr.bf16.mxu0 %v1827
    %3642 = vmatpush2.bf16.msra.mxu0 %v1826
    %3643 = vmatprep.subr.bf16.mxu0 %v1823
    %3644 = vmatpush2.bf16.msra.mxu0 %v1822
    %3645 = vmatprep.subr.bf16.mxu0 %v1819
    %3646 = vmatpush2.bf16.msra.mxu0 %v1818
    %3647 = vmatprep.subr.bf16.mxu0 %v1815
    %3648 = vmatpush2.bf16.msra.mxu0 %v1814
    %3649 = vmatprep.subr.bf16.mxu0 %v1811
    %3650 = vmatpush2.bf16.msra.mxu0 %v1810
    %3651 = vmatprep.subr.bf16.mxu0 %v1807
    %3652 = vmatpush2.bf16.msra.mxu0 %v1806
    %3653 = vmatprep.mubr.bf16.mxu0 %v3620
    %3654 = vmatmul.mubr.bf16.gmra.mxu0 %v3619
    %v3655 = vpop.f32.mrf.mxu0
    %v3656 = vadd.f32 0.0, %v3655
    %v3657 = vpop.f32.mrf.mxu0
    %v3658 = vadd.f32 0.0, %v3657
    %v3659 = vpop.f32.mrf.mxu0
    %v3660 = vpop.f32.mrf.mxu0
    %3661 = vdwg.mxu0
    %3662 = vmatprep.subr.bf16.mxu0 %v1805
    %3663 = vmatpush1.bf16.msra.mxu0 %v1804
    %3664 = vmatprep.subr.bf16.mxu0 %v1801
    %3665 = vmatpush1.bf16.msra.mxu0 %v1800
    %3666 = vmatprep.subr.bf16.mxu0 %v1797
    %3667 = vmatpush1.bf16.msra.mxu0 %v1796
    %3668 = vmatprep.subr.bf16.mxu0 %v1793
    %3669 = vmatpush1.bf16.msra.mxu0 %v1792
    %3670 = vmatprep.subr.bf16.mxu0 %v1789
    %3671 = vmatpush1.bf16.msra.mxu0 %v1788
    %3672 = vmatprep.subr.bf16.mxu0 %v1785
    %3673 = vmatpush1.bf16.msra.mxu0 %v1784
    %3674 = vmatprep.subr.bf16.mxu0 %v1781
    %3675 = vmatpush1.bf16.msra.mxu0 %v1780
    %3676 = vmatprep.subr.bf16.mxu0 %v1777
    %3677 = vmatpush1.bf16.msra.mxu0 %v1776
    %3678 = vmatprep.subr.bf16.mxu0 %v1837
    %3679 = vmatpush2.bf16.msra.mxu0 %v1836
    %3680 = vmatprep.subr.bf16.mxu0 %v1833
    %3681 = vmatpush2.bf16.msra.mxu0 %v1832
    %3682 = vmatprep.subr.bf16.mxu0 %v1829
    %3683 = vmatpush2.bf16.msra.mxu0 %v1828
    %3684 = vmatprep.subr.bf16.mxu0 %v1825
    %3685 = vmatpush2.bf16.msra.mxu0 %v1824
    %3686 = vmatprep.subr.bf16.mxu0 %v1821
    %3687 = vmatpush2.bf16.msra.mxu0 %v1820
    %3688 = vmatprep.subr.bf16.mxu0 %v1817
    %3689 = vmatpush2.bf16.msra.mxu0 %v1816
    %3690 = vmatprep.subr.bf16.mxu0 %v1813
    %3691 = vmatpush2.bf16.msra.mxu0 %v1812
    %3692 = vmatprep.subr.bf16.mxu0 %v1809
    %3693 = vmatpush2.bf16.msra.mxu0 %v1808
    %3694 = vmatprep.mubr.bf16.mxu0 %v3620
    %3695 = vmatmul.mubr.bf16.gmra.mxu0 %v3619
    %v3696 = vpop.f32.mrf.mxu0
    %v3697 = vadd.f32 0.0, %v3696
    %v3698 = vpop.f32.mrf.mxu0
    %v3699 = vadd.f32 0.0, %v3698
    %v3700 = vpop.f32.mrf.mxu0
    %v3701 = vpop.f32.mrf.mxu0
    %3702 = vdwg.mxu0
    %v3703 = vadd.f32 %v3613, %v3656
    %v3704 = vadd.f32 %v3614, %v3658
    %v3705 = vadd.f32 %v3615, %v3697
    %v3706 = vadd.f32 %v3616, %v3699
    %v3707 = vxor.u32 %v3703, 2147483648
    %v3708 = vmul.f32 %v3707, 1.442695
    %v3709 = vpow.pop %v3708
    %v3710 = vadd.f32 %v3709, 1.0
    %v3711 = vrcp.pop %v3710
    %v3712 = vmul.f32 1.0, %v3711
    %v3713 = vxor.u32 %v3704, 2147483648
    %v3714 = vmul.f32 %v3713, 1.442695
    %v3715 = vpow.pop %v3714
    %v3716 = vadd.f32 %v3715, 1.0
    %v3717 = vrcp.pop %v3716
    %v3718 = vmul.f32 1.0, %v3717
    %v3719 = vtanh.pop %v3705
    %v3720 = vxor.u32 %v3706, 2147483648
    %v3721 = vmul.f32 %v3720, 1.442695
    %v3722 = vpow.pop %v3721
    %v3723 = vadd.f32 %v3722, 1.0
    %v3724 = vrcp.pop %v3723
    %v3725 = vmul.f32 1.0, %v3724
    %v3726 = vmul.f32 %v3718, %v3575
    %v3727 = vmul.f32 %v3712, %v3719
    %v3728 = vadd.f32 %v3726, %v3727
    %v3729 = vtanh.pop %v3728
    %v3730 = vmul.f32 %v3725, %v3729
    %v3731 = vsub.f32 %v3728, %v3575
    %3732 = vset.pattern.permute.xlu0 11
    %3733 = vperm.xlu0 %3732, %v1483
    %v3734 = vpop.permute.xlu0 %3733
    %v3736 = vmul.f32 %v3734, %v3731
    %v3737 = vadd.f32 %v3575, %v3736
    %v3738 = vsub.f32 %v3730, %v3578
    %v3739 = vmul.f32 %v3734, %v3738
    %v3740 = vadd.f32 %v3578, %v3739
    %v3741 = vmul.f32 %v3734, %v3730
    %v3742 = vadd.f32 %v3580, %v3741
    %v3743 = vld [vmem:[#allocation2 + $0x60] sm:$0x3]
    %v3744 = vld [vmem:[#allocation2 + $0x68] sm:$0x3]
    %v3745 = vld [vmem:[#allocation2 + $0x70] sm:$0x3]
    %v3746 = vld [vmem:[#allocation2 + $0x78] sm:$0x3]
    %v3747 = vld [vmem:[#allocation3] sm:$0xc0]
    %v3748 = vld [vmem:[#allocation3 + $0x8] sm:$0xc0]
    %v3749 = vld [vmem:[#allocation3 + $0x10] sm:$0xc0]
    %v3750 = vld [vmem:[#allocation3 + $0x18] sm:$0xc0]
    %v3755 = vrot.slane %v3747, 4
    %v3756 = vrot.slane %v3748, 4
    %v3757 = vrot.slane %v3749, 4
    %v3758 = vrot.slane %v3750, 4
    %v3763 = vsel %vm122, %v3743, %v3755
    %v3764 = vsel %vm122, %v3744, %v3756
    %v3765 = vsel %vm122, %v3745, %v3757
    %v3766 = vsel %vm122, %v3746, %v3758
    %v3767 = vmul.f32 %v3740, %v1488
    %v3768 = vmul.f32 %v3740, %v1489
    %v3769 = vpack.c.bf16 %v3767, %v3767
    %v3770 = vpack.c.bf16 %v3768, %v3768
    %3771 = vmatprep.subr.bf16.mxu0 %v1803
    %3772 = vmatpush1.bf16.msra.mxu0 %v1802
    %3773 = vmatprep.subr.bf16.mxu0 %v1799
    %3774 = vmatpush1.bf16.msra.mxu0 %v1798
    %3775 = vmatprep.subr.bf16.mxu0 %v1795
    %3776 = vmatpush1.bf16.msra.mxu0 %v1794
    %3777 = vmatprep.subr.bf16.mxu0 %v1791
    %3778 = vmatpush1.bf16.msra.mxu0 %v1790
    %3779 = vmatprep.subr.bf16.mxu0 %v1787
    %3780 = vmatpush1.bf16.msra.mxu0 %v1786
    %3781 = vmatprep.subr.bf16.mxu0 %v1783
    %3782 = vmatpush1.bf16.msra.mxu0 %v1782
    %3783 = vmatprep.subr.bf16.mxu0 %v1779
    %3784 = vmatpush1.bf16.msra.mxu0 %v1778
    %3785 = vmatprep.subr.bf16.mxu0 %v1775
    %3786 = vmatpush1.bf16.msra.mxu0 %v1774
    %3787 = vmatprep.subr.bf16.mxu0 %v1835
    %3788 = vmatpush2.bf16.msra.mxu0 %v1834
    %3789 = vmatprep.subr.bf16.mxu0 %v1831
    %3790 = vmatpush2.bf16.msra.mxu0 %v1830
    %3791 = vmatprep.subr.bf16.mxu0 %v1827
    %3792 = vmatpush2.bf16.msra.mxu0 %v1826
    %3793 = vmatprep.subr.bf16.mxu0 %v1823
    %3794 = vmatpush2.bf16.msra.mxu0 %v1822
    %3795 = vmatprep.subr.bf16.mxu0 %v1819
    %3796 = vmatpush2.bf16.msra.mxu0 %v1818
    %3797 = vmatprep.subr.bf16.mxu0 %v1815
    %3798 = vmatpush2.bf16.msra.mxu0 %v1814
    %3799 = vmatprep.subr.bf16.mxu0 %v1811
    %3800 = vmatpush2.bf16.msra.mxu0 %v1810
    %3801 = vmatprep.subr.bf16.mxu0 %v1807
    %3802 = vmatpush2.bf16.msra.mxu0 %v1806
    %3803 = vmatprep.mubr.bf16.mxu0 %v3770
    %3804 = vmatmul.mubr.bf16.gmra.mxu0 %v3769
    %v3805 = vpop.f32.mrf.mxu0
    %v3806 = vadd.f32 0.0, %v3805
    %v3807 = vpop.f32.mrf.mxu0
    %v3808 = vadd.f32 0.0, %v3807
    %v3809 = vpop.f32.mrf.mxu0
    %v3810 = vpop.f32.mrf.mxu0
    %3811 = vdwg.mxu0
    %3812 = vmatprep.subr.bf16.mxu0 %v1805
    %3813 = vmatpush1.bf16.msra.mxu0 %v1804
    %3814 = vmatprep.subr.bf16.mxu0 %v1801
    %3815 = vmatpush1.bf16.msra.mxu0 %v1800
    %3816 = vmatprep.subr.bf16.mxu0 %v1797
    %3817 = vmatpush1.bf16.msra.mxu0 %v1796
    %3818 = vmatprep.subr.bf16.mxu0 %v1793
    %3819 = vmatpush1.bf16.msra.mxu0 %v1792
    %3820 = vmatprep.subr.bf16.mxu0 %v1789
    %3821 = vmatpush1.bf16.msra.mxu0 %v1788
    %3822 = vmatprep.subr.bf16.mxu0 %v1785
    %3823 = vmatpush1.bf16.msra.mxu0 %v1784
    %3824 = vmatprep.subr.bf16.mxu0 %v1781
    %3825 = vmatpush1.bf16.msra.mxu0 %v1780
    %3826 = vmatprep.subr.bf16.mxu0 %v1777
    %3827 = vmatpush1.bf16.msra.mxu0 %v1776
    %3828 = vmatprep.subr.bf16.mxu0 %v1837
    %3829 = vmatpush2.bf16.msra.mxu0 %v1836
    %3830 = vmatprep.subr.bf16.mxu0 %v1833
    %3831 = vmatpush2.bf16.msra.mxu0 %v1832
    %3832 = vmatprep.subr.bf16.mxu0 %v1829
    %3833 = vmatpush2.bf16.msra.mxu0 %v1828
    %3834 = vmatprep.subr.bf16.mxu0 %v1825
    %3835 = vmatpush2.bf16.msra.mxu0 %v1824
    %3836 = vmatprep.subr.bf16.mxu0 %v1821
    %3837 = vmatpush2.bf16.msra.mxu0 %v1820
    %3838 = vmatprep.subr.bf16.mxu0 %v1817
    %3839 = vmatpush2.bf16.msra.mxu0 %v1816
    %3840 = vmatprep.subr.bf16.mxu0 %v1813
    %3841 = vmatpush2.bf16.msra.mxu0 %v1812
    %3842 = vmatprep.subr.bf16.mxu0 %v1809
    %3843 = vmatpush2.bf16.msra.mxu0 %v1808
    %3844 = vmatprep.mubr.bf16.mxu0 %v3770
    %3845 = vmatmul.mubr.bf16.gmra.mxu0 %v3769
    %v3846 = vpop.f32.mrf.mxu0
    %v3847 = vadd.f32 0.0, %v3846
    %v3848 = vpop.f32.mrf.mxu0
    %v3849 = vadd.f32 0.0, %v3848
    %v3850 = vpop.f32.mrf.mxu0
    %v3851 = vpop.f32.mrf.mxu0
    %3852 = vdwg.mxu0
    %v3853 = vadd.f32 %v3763, %v3806
    %v3854 = vadd.f32 %v3764, %v3808
    %v3855 = vadd.f32 %v3765, %v3847
    %v3856 = vadd.f32 %v3766, %v3849
    %v3857 = vxor.u32 %v3853, 2147483648
    %v3858 = vmul.f32 %v3857, 1.442695
    %v3859 = vpow.pop %v3858
    %v3860 = vadd.f32 %v3859, 1.0
    %v3861 = vrcp.pop %v3860
    %v3862 = vmul.f32 1.0, %v3861
    %v3863 = vxor.u32 %v3854, 2147483648
    %v3864 = vmul.f32 %v3863, 1.442695
    %v3865 = vpow.pop %v3864
    %v3866 = vadd.f32 %v3865, 1.0
    %v3867 = vrcp.pop %v3866
    %v3868 = vmul.f32 1.0, %v3867
    %v3869 = vtanh.pop %v3855
    %v3870 = vxor.u32 %v3856, 2147483648
    %v3871 = vmul.f32 %v3870, 1.442695
    %v3872 = vpow.pop %v3871
    %v3873 = vadd.f32 %v3872, 1.0
    %v3874 = vrcp.pop %v3873
    %v3875 = vmul.f32 1.0, %v3874
    %v3876 = vmul.f32 %v3868, %v3737
    %v3877 = vmul.f32 %v3862, %v3869
    %v3878 = vadd.f32 %v3876, %v3877
    %v3879 = vtanh.pop %v3878
    %v3880 = vmul.f32 %v3875, %v3879
    %v3881 = vsub.f32 %v3878, %v3737
    %3882 = vset.pattern.permute.xlu0 12
    %3883 = vperm.xlu0 %3882, %v1483
    %v3884 = vpop.permute.xlu0 %3883
    %v3886 = vmul.f32 %v3884, %v3881
    %v3887 = vadd.f32 %v3737, %v3886
    %v3888 = vsub.f32 %v3880, %v3740
    %v3889 = vmul.f32 %v3884, %v3888
    %v3890 = vadd.f32 %v3740, %v3889
    %v3891 = vmul.f32 %v3884, %v3880
    %v3892 = vadd.f32 %v3742, %v3891
    %v3893 = vld [vmem:[#allocation2 + $0x60] sm:$0xc]
    %v3894 = vld [vmem:[#allocation2 + $0x68] sm:$0xc]
    %v3895 = vld [vmem:[#allocation2 + $0x70] sm:$0xc]
    %v3896 = vld [vmem:[#allocation2 + $0x78] sm:$0xc]
    %v3897 = vld [vmem:[#allocation3] sm:$0x30]
    %v3898 = vld [vmem:[#allocation3 + $0x8] sm:$0x30]
    %v3899 = vld [vmem:[#allocation3 + $0x10] sm:$0x30]
    %v3900 = vld [vmem:[#allocation3 + $0x18] sm:$0x30]
    %v3905 = vrot.slane %v3893, 2
    %v3906 = vrot.slane %v3894, 2
    %v3907 = vrot.slane %v3895, 2
    %v3908 = vrot.slane %v3896, 2
    %v3917 = vrot.slane %v3897, 2
    %v3918 = vrot.slane %v3898, 2
    %v3919 = vrot.slane %v3899, 2
    %v3920 = vrot.slane %v3900, 2
    %v3925 = vsel %vm122, %v3905, %v3917
    %v3926 = vsel %vm122, %v3906, %v3918
    %v3927 = vsel %vm122, %v3907, %v3919
    %v3928 = vsel %vm122, %v3908, %v3920
    %v3929 = vmul.f32 %v3890, %v1488
    %v3930 = vmul.f32 %v3890, %v1489
    %v3931 = vpack.c.bf16 %v3929, %v3929
    %v3932 = vpack.c.bf16 %v3930, %v3930
    %3933 = vmatprep.subr.bf16.mxu0 %v1803
    %3934 = vmatpush1.bf16.msra.mxu0 %v1802
    %3935 = vmatprep.subr.bf16.mxu0 %v1799
    %3936 = vmatpush1.bf16.msra.mxu0 %v1798
    %3937 = vmatprep.subr.bf16.mxu0 %v1795
    %3938 = vmatpush1.bf16.msra.mxu0 %v1794
    %3939 = vmatprep.subr.bf16.mxu0 %v1791
    %3940 = vmatpush1.bf16.msra.mxu0 %v1790
    %3941 = vmatprep.subr.bf16.mxu0 %v1787
    %3942 = vmatpush1.bf16.msra.mxu0 %v1786
    %3943 = vmatprep.subr.bf16.mxu0 %v1783
    %3944 = vmatpush1.bf16.msra.mxu0 %v1782
    %3945 = vmatprep.subr.bf16.mxu0 %v1779
    %3946 = vmatpush1.bf16.msra.mxu0 %v1778
    %3947 = vmatprep.subr.bf16.mxu0 %v1775
    %3948 = vmatpush1.bf16.msra.mxu0 %v1774
    %3949 = vmatprep.subr.bf16.mxu0 %v1835
    %3950 = vmatpush2.bf16.msra.mxu0 %v1834
    %3951 = vmatprep.subr.bf16.mxu0 %v1831
    %3952 = vmatpush2.bf16.msra.mxu0 %v1830
    %3953 = vmatprep.subr.bf16.mxu0 %v1827
    %3954 = vmatpush2.bf16.msra.mxu0 %v1826
    %3955 = vmatprep.subr.bf16.mxu0 %v1823
    %3956 = vmatpush2.bf16.msra.mxu0 %v1822
    %3957 = vmatprep.subr.bf16.mxu0 %v1819
    %3958 = vmatpush2.bf16.msra.mxu0 %v1818
    %3959 = vmatprep.subr.bf16.mxu0 %v1815
    %3960 = vmatpush2.bf16.msra.mxu0 %v1814
    %3961 = vmatprep.subr.bf16.mxu0 %v1811
    %3962 = vmatpush2.bf16.msra.mxu0 %v1810
    %3963 = vmatprep.subr.bf16.mxu0 %v1807
    %3964 = vmatpush2.bf16.msra.mxu0 %v1806
    %3965 = vmatprep.mubr.bf16.mxu0 %v3932
    %3966 = vmatmul.mubr.bf16.gmra.mxu0 %v3931
    %v3967 = vpop.f32.mrf.mxu0
    %v3968 = vadd.f32 0.0, %v3967
    %v3969 = vpop.f32.mrf.mxu0
    %v3970 = vadd.f32 0.0, %v3969
    %v3971 = vpop.f32.mrf.mxu0
    %v3972 = vpop.f32.mrf.mxu0
    %3973 = vdwg.mxu0
    %3974 = vmatprep.subr.bf16.mxu0 %v1805
    %3975 = vmatpush1.bf16.msra.mxu0 %v1804
    %3976 = vmatprep.subr.bf16.mxu0 %v1801
    %3977 = vmatpush1.bf16.msra.mxu0 %v1800
    %3978 = vmatprep.subr.bf16.mxu0 %v1797
    %3979 = vmatpush1.bf16.msra.mxu0 %v1796
    %3980 = vmatprep.subr.bf16.mxu0 %v1793
    %3981 = vmatpush1.bf16.msra.mxu0 %v1792
    %3982 = vmatprep.subr.bf16.mxu0 %v1789
    %3983 = vmatpush1.bf16.msra.mxu0 %v1788
    %3984 = vmatprep.subr.bf16.mxu0 %v1785
    %3985 = vmatpush1.bf16.msra.mxu0 %v1784
    %3986 = vmatprep.subr.bf16.mxu0 %v1781
    %3987 = vmatpush1.bf16.msra.mxu0 %v1780
    %3988 = vmatprep.subr.bf16.mxu0 %v1777
    %3989 = vmatpush1.bf16.msra.mxu0 %v1776
    %3990 = vmatprep.subr.bf16.mxu0 %v1837
    %3991 = vmatpush2.bf16.msra.mxu0 %v1836
    %3992 = vmatprep.subr.bf16.mxu0 %v1833
    %3993 = vmatpush2.bf16.msra.mxu0 %v1832
    %3994 = vmatprep.subr.bf16.mxu0 %v1829
    %3995 = vmatpush2.bf16.msra.mxu0 %v1828
    %3996 = vmatprep.subr.bf16.mxu0 %v1825
    %3997 = vmatpush2.bf16.msra.mxu0 %v1824
    %3998 = vmatprep.subr.bf16.mxu0 %v1821
    %3999 = vmatpush2.bf16.msra.mxu0 %v1820
    %4000 = vmatprep.subr.bf16.mxu0 %v1817
    %4001 = vmatpush2.bf16.msra.mxu0 %v1816
    %4002 = vmatprep.subr.bf16.mxu0 %v1813
    %4003 = vmatpush2.bf16.msra.mxu0 %v1812
    %4004 = vmatprep.subr.bf16.mxu0 %v1809
    %4005 = vmatpush2.bf16.msra.mxu0 %v1808
    %4006 = vmatprep.mubr.bf16.mxu0 %v3932
    %4007 = vmatmul.mubr.bf16.gmra.mxu0 %v3931
    %v4008 = vpop.f32.mrf.mxu0
    %v4009 = vadd.f32 0.0, %v4008
    %v4010 = vpop.f32.mrf.mxu0
    %v4011 = vadd.f32 0.0, %v4010
    %v4012 = vpop.f32.mrf.mxu0
    %v4013 = vpop.f32.mrf.mxu0
    %4014 = vdwg.mxu0
    %v4015 = vadd.f32 %v3925, %v3968
    %v4016 = vadd.f32 %v3926, %v3970
    %v4017 = vadd.f32 %v3927, %v4009
    %v4018 = vadd.f32 %v3928, %v4011
    %v4019 = vxor.u32 %v4015, 2147483648
    %v4020 = vmul.f32 %v4019, 1.442695
    %v4021 = vpow.pop %v4020
    %v4022 = vadd.f32 %v4021, 1.0
    %v4023 = vrcp.pop %v4022
    %v4024 = vmul.f32 1.0, %v4023
    %v4025 = vxor.u32 %v4016, 2147483648
    %v4026 = vmul.f32 %v4025, 1.442695
    %v4027 = vpow.pop %v4026
    %v4028 = vadd.f32 %v4027, 1.0
    %v4029 = vrcp.pop %v4028
    %v4030 = vmul.f32 1.0, %v4029
    %v4031 = vtanh.pop %v4017
    %v4032 = vxor.u32 %v4018, 2147483648
    %v4033 = vmul.f32 %v4032, 1.442695
    %v4034 = vpow.pop %v4033
    %v4035 = vadd.f32 %v4034, 1.0
    %v4036 = vrcp.pop %v4035
    %v4037 = vmul.f32 1.0, %v4036
    %v4038 = vmul.f32 %v4030, %v3887
    %v4039 = vmul.f32 %v4024, %v4031
    %v4040 = vadd.f32 %v4038, %v4039
    %v4041 = vtanh.pop %v4040
    %v4042 = vmul.f32 %v4037, %v4041
    %v4043 = vsub.f32 %v4040, %v3887
    %4044 = vset.pattern.permute.xlu0 13
    %4045 = vperm.xlu0 %4044, %v1483
    %v4046 = vpop.permute.xlu0 %4045
    %v4048 = vmul.f32 %v4046, %v4043
    %v4049 = vadd.f32 %v3887, %v4048
    %v4050 = vsub.f32 %v4042, %v3890
    %v4051 = vmul.f32 %v4046, %v4050
    %v4052 = vadd.f32 %v3890, %v4051
    %v4053 = vmul.f32 %v4046, %v4042
    %v4054 = vadd.f32 %v3892, %v4053
    %v4055 = vld [vmem:[#allocation2 + $0x60] sm:$0x30]
    %v4056 = vld [vmem:[#allocation2 + $0x68] sm:$0x30]
    %v4057 = vld [vmem:[#allocation2 + $0x70] sm:$0x30]
    %v4058 = vld [vmem:[#allocation2 + $0x78] sm:$0x30]
    %v4059 = vld [vmem:[#allocation3] sm:$0xc]
    %v4060 = vld [vmem:[#allocation3 + $0x8] sm:$0xc]
    %v4061 = vld [vmem:[#allocation3 + $0x10] sm:$0xc]
    %v4062 = vld [vmem:[#allocation3 + $0x18] sm:$0xc]
    %v4067 = vrot.slane %v4055, 4
    %v4068 = vrot.slane %v4056, 4
    %v4069 = vrot.slane %v4057, 4
    %v4070 = vrot.slane %v4058, 4
    %v4075 = vsel %vm122, %v4067, %v4059
    %v4076 = vsel %vm122, %v4068, %v4060
    %v4077 = vsel %vm122, %v4069, %v4061
    %v4078 = vsel %vm122, %v4070, %v4062
    %v4079 = vmul.f32 %v4052, %v1488
    %v4080 = vmul.f32 %v4052, %v1489
    %v4081 = vpack.c.bf16 %v4079, %v4079
    %v4082 = vpack.c.bf16 %v4080, %v4080
    %4083 = vmatprep.subr.bf16.mxu0 %v1803
    %4084 = vmatpush1.bf16.msra.mxu0 %v1802
    %4085 = vmatprep.subr.bf16.mxu0 %v1799
    %4086 = vmatpush1.bf16.msra.mxu0 %v1798
    %4087 = vmatprep.subr.bf16.mxu0 %v1795
    %4088 = vmatpush1.bf16.msra.mxu0 %v1794
    %4089 = vmatprep.subr.bf16.mxu0 %v1791
    %4090 = vmatpush1.bf16.msra.mxu0 %v1790
    %4091 = vmatprep.subr.bf16.mxu0 %v1787
    %4092 = vmatpush1.bf16.msra.mxu0 %v1786
    %4093 = vmatprep.subr.bf16.mxu0 %v1783
    %4094 = vmatpush1.bf16.msra.mxu0 %v1782
    %4095 = vmatprep.subr.bf16.mxu0 %v1779
    %4096 = vmatpush1.bf16.msra.mxu0 %v1778
    %4097 = vmatprep.subr.bf16.mxu0 %v1775
    %4098 = vmatpush1.bf16.msra.mxu0 %v1774
    %4099 = vmatprep.subr.bf16.mxu0 %v1835
    %4100 = vmatpush2.bf16.msra.mxu0 %v1834
    %4101 = vmatprep.subr.bf16.mxu0 %v1831
    %4102 = vmatpush2.bf16.msra.mxu0 %v1830
    %4103 = vmatprep.subr.bf16.mxu0 %v1827
    %4104 = vmatpush2.bf16.msra.mxu0 %v1826
    %4105 = vmatprep.subr.bf16.mxu0 %v1823
    %4106 = vmatpush2.bf16.msra.mxu0 %v1822
    %4107 = vmatprep.subr.bf16.mxu0 %v1819
    %4108 = vmatpush2.bf16.msra.mxu0 %v1818
    %4109 = vmatprep.subr.bf16.mxu0 %v1815
    %4110 = vmatpush2.bf16.msra.mxu0 %v1814
    %4111 = vmatprep.subr.bf16.mxu0 %v1811
    %4112 = vmatpush2.bf16.msra.mxu0 %v1810
    %4113 = vmatprep.subr.bf16.mxu0 %v1807
    %4114 = vmatpush2.bf16.msra.mxu0 %v1806
    %4115 = vmatprep.mubr.bf16.mxu0 %v4082
    %4116 = vmatmul.mubr.bf16.gmra.mxu0 %v4081
    %v4117 = vpop.f32.mrf.mxu0
    %v4118 = vadd.f32 0.0, %v4117
    %v4119 = vpop.f32.mrf.mxu0
    %v4120 = vadd.f32 0.0, %v4119
    %v4121 = vpop.f32.mrf.mxu0
    %v4122 = vpop.f32.mrf.mxu0
    %4123 = vdwg.mxu0
    %4124 = vmatprep.subr.bf16.mxu0 %v1805
    %4125 = vmatpush1.bf16.msra.mxu0 %v1804
    %4126 = vmatprep.subr.bf16.mxu0 %v1801
    %4127 = vmatpush1.bf16.msra.mxu0 %v1800
    %4128 = vmatprep.subr.bf16.mxu0 %v1797
    %4129 = vmatpush1.bf16.msra.mxu0 %v1796
    %4130 = vmatprep.subr.bf16.mxu0 %v1793
    %4131 = vmatpush1.bf16.msra.mxu0 %v1792
    %4132 = vmatprep.subr.bf16.mxu0 %v1789
    %4133 = vmatpush1.bf16.msra.mxu0 %v1788
    %4134 = vmatprep.subr.bf16.mxu0 %v1785
    %4135 = vmatpush1.bf16.msra.mxu0 %v1784
    %4136 = vmatprep.subr.bf16.mxu0 %v1781
    %4137 = vmatpush1.bf16.msra.mxu0 %v1780
    %4138 = vmatprep.subr.bf16.mxu0 %v1777
    %4139 = vmatpush1.bf16.msra.mxu0 %v1776
    %4140 = vmatprep.subr.bf16.mxu0 %v1837
    %4141 = vmatpush2.bf16.msra.mxu0 %v1836
    %4142 = vmatprep.subr.bf16.mxu0 %v1833
    %4143 = vmatpush2.bf16.msra.mxu0 %v1832
    %4144 = vmatprep.subr.bf16.mxu0 %v1829
    %4145 = vmatpush2.bf16.msra.mxu0 %v1828
    %4146 = vmatprep.subr.bf16.mxu0 %v1825
    %4147 = vmatpush2.bf16.msra.mxu0 %v1824
    %4148 = vmatprep.subr.bf16.mxu0 %v1821
    %4149 = vmatpush2.bf16.msra.mxu0 %v1820
    %4150 = vmatprep.subr.bf16.mxu0 %v1817
    %4151 = vmatpush2.bf16.msra.mxu0 %v1816
    %4152 = vmatprep.subr.bf16.mxu0 %v1813
    %4153 = vmatpush2.bf16.msra.mxu0 %v1812
    %4154 = vmatprep.subr.bf16.mxu0 %v1809
    %4155 = vmatpush2.bf16.msra.mxu0 %v1808
    %4156 = vmatprep.mubr.bf16.mxu0 %v4082
    %4157 = vmatmul.mubr.bf16.gmra.mxu0 %v4081
    %v4158 = vpop.f32.mrf.mxu0
    %v4159 = vadd.f32 0.0, %v4158
    %v4160 = vpop.f32.mrf.mxu0
    %v4161 = vadd.f32 0.0, %v4160
    %v4162 = vpop.f32.mrf.mxu0
    %v4163 = vpop.f32.mrf.mxu0
    %4164 = vdwg.mxu0
    %v4165 = vadd.f32 %v4075, %v4118
    %v4166 = vadd.f32 %v4076, %v4120
    %v4167 = vadd.f32 %v4077, %v4159
    %v4168 = vadd.f32 %v4078, %v4161
    %v4169 = vxor.u32 %v4165, 2147483648
    %v4170 = vmul.f32 %v4169, 1.442695
    %v4171 = vpow.pop %v4170
    %v4172 = vadd.f32 %v4171, 1.0
    %v4173 = vrcp.pop %v4172
    %v4174 = vmul.f32 1.0, %v4173
    %v4175 = vxor.u32 %v4166, 2147483648
    %v4176 = vmul.f32 %v4175, 1.442695
    %v4177 = vpow.pop %v4176
    %v4178 = vadd.f32 %v4177, 1.0
    %v4179 = vrcp.pop %v4178
    %v4180 = vmul.f32 1.0, %v4179
    %v4181 = vtanh.pop %v4167
    %v4182 = vxor.u32 %v4168, 2147483648
    %v4183 = vmul.f32 %v4182, 1.442695
    %v4184 = vpow.pop %v4183
    %v4185 = vadd.f32 %v4184, 1.0
    %v4186 = vrcp.pop %v4185
    %v4187 = vmul.f32 1.0, %v4186
    %v4188 = vmul.f32 %v4180, %v4049
    %v4189 = vmul.f32 %v4174, %v4181
    %v4190 = vadd.f32 %v4188, %v4189
    %v4191 = vtanh.pop %v4190
    %v4192 = vmul.f32 %v4187, %v4191
    %v4193 = vsub.f32 %v4190, %v4049
    %4194 = vset.pattern.permute.xlu0 14
    %4195 = vperm.xlu0 %4194, %v1483
    %v4196 = vpop.permute.xlu0 %4195
    %v4198 = vmul.f32 %v4196, %v4193
    %v4199 = vadd.f32 %v4049, %v4198
    %v4200 = vsub.f32 %v4192, %v4052
    %v4201 = vmul.f32 %v4196, %v4200
    %v4202 = vadd.f32 %v4052, %v4201
    %v4203 = vmul.f32 %v4196, %v4192
    %v4204 = vadd.f32 %v4054, %v4203
    %v4205 = vld [vmem:[#allocation2 + $0x60] sm:$0xc0]
    %v4206 = vld [vmem:[#allocation2 + $0x68] sm:$0xc0]
    %v4207 = vld [vmem:[#allocation2 + $0x70] sm:$0xc0]
    %v4208 = vld [vmem:[#allocation2 + $0x78] sm:$0xc0]
    %v4209 = vld [vmem:[#allocation3] sm:$0x3]
    %v4210 = vld [vmem:[#allocation3 + $0x8] sm:$0x3]
    %v4211 = vld [vmem:[#allocation3 + $0x10] sm:$0x3]
    %v4212 = vld [vmem:[#allocation3 + $0x18] sm:$0x3]
    %v4217 = vrot.slane %v4205, 6
    %v4218 = vrot.slane %v4206, 6
    %v4219 = vrot.slane %v4207, 6
    %v4220 = vrot.slane %v4208, 6
    %v4229 = vrot.slane %v4209, 6
    %v4230 = vrot.slane %v4210, 6
    %v4231 = vrot.slane %v4211, 6
    %v4232 = vrot.slane %v4212, 6
    %v4237 = vsel %vm122, %v4217, %v4229
    %v4238 = vsel %vm122, %v4218, %v4230
    %v4239 = vsel %vm122, %v4219, %v4231
    %v4240 = vsel %vm122, %v4220, %v4232
    %v4241 = vmul.f32 %v4202, %v1488
    %v4242 = vmul.f32 %v4202, %v1489
    %v4243 = vpack.c.bf16 %v4241, %v4241
    %v4244 = vpack.c.bf16 %v4242, %v4242
    %4245 = vmatprep.subr.bf16.mxu0 %v1803
    %4246 = vmatpush1.bf16.msra.mxu0 %v1802
    %4247 = vmatprep.subr.bf16.mxu0 %v1799
    %4248 = vmatpush1.bf16.msra.mxu0 %v1798
    %4249 = vmatprep.subr.bf16.mxu0 %v1795
    %4250 = vmatpush1.bf16.msra.mxu0 %v1794
    %4251 = vmatprep.subr.bf16.mxu0 %v1791
    %4252 = vmatpush1.bf16.msra.mxu0 %v1790
    %4253 = vmatprep.subr.bf16.mxu0 %v1787
    %4254 = vmatpush1.bf16.msra.mxu0 %v1786
    %4255 = vmatprep.subr.bf16.mxu0 %v1783
    %4256 = vmatpush1.bf16.msra.mxu0 %v1782
    %4257 = vmatprep.subr.bf16.mxu0 %v1779
    %4258 = vmatpush1.bf16.msra.mxu0 %v1778
    %4259 = vmatprep.subr.bf16.mxu0 %v1775
    %4260 = vmatpush1.bf16.msra.mxu0 %v1774
    %4261 = vmatprep.subr.bf16.mxu0 %v1835
    %4262 = vmatpush2.bf16.msra.mxu0 %v1834
    %4263 = vmatprep.subr.bf16.mxu0 %v1831
    %4264 = vmatpush2.bf16.msra.mxu0 %v1830
    %4265 = vmatprep.subr.bf16.mxu0 %v1827
    %4266 = vmatpush2.bf16.msra.mxu0 %v1826
    %4267 = vmatprep.subr.bf16.mxu0 %v1823
    %4268 = vmatpush2.bf16.msra.mxu0 %v1822
    %4269 = vmatprep.subr.bf16.mxu0 %v1819
    %4270 = vmatpush2.bf16.msra.mxu0 %v1818
    %4271 = vmatprep.subr.bf16.mxu0 %v1815
    %4272 = vmatpush2.bf16.msra.mxu0 %v1814
    %4273 = vmatprep.subr.bf16.mxu0 %v1811
    %4274 = vmatpush2.bf16.msra.mxu0 %v1810
    %4275 = vmatprep.subr.bf16.mxu0 %v1807
    %4276 = vmatpush2.bf16.msra.mxu0 %v1806
    %4277 = vmatprep.mubr.bf16.mxu0 %v4244
    %4278 = vmatmul.mubr.bf16.gmra.mxu0 %v4243
    %v4279 = vpop.f32.mrf.mxu0
    %v4280 = vadd.f32 0.0, %v4279
    %v4281 = vpop.f32.mrf.mxu0
    %v4282 = vadd.f32 0.0, %v4281
    %v4283 = vpop.f32.mrf.mxu0
    %v4284 = vpop.f32.mrf.mxu0
    %4285 = vdwg.mxu0
    %4286 = vmatprep.subr.bf16.mxu0 %v1805
    %4287 = vmatpush1.bf16.msra.mxu0 %v1804
    %4288 = vmatprep.subr.bf16.mxu0 %v1801
    %4289 = vmatpush1.bf16.msra.mxu0 %v1800
    %4290 = vmatprep.subr.bf16.mxu0 %v1797
    %4291 = vmatpush1.bf16.msra.mxu0 %v1796
    %4292 = vmatprep.subr.bf16.mxu0 %v1793
    %4293 = vmatpush1.bf16.msra.mxu0 %v1792
    %4294 = vmatprep.subr.bf16.mxu0 %v1789
    %4295 = vmatpush1.bf16.msra.mxu0 %v1788
    %4296 = vmatprep.subr.bf16.mxu0 %v1785
    %4297 = vmatpush1.bf16.msra.mxu0 %v1784
    %4298 = vmatprep.subr.bf16.mxu0 %v1781
    %4299 = vmatpush1.bf16.msra.mxu0 %v1780
    %4300 = vmatprep.subr.bf16.mxu0 %v1777
    %4301 = vmatpush1.bf16.msra.mxu0 %v1776
    %4302 = vmatprep.subr.bf16.mxu0 %v1837
    %4303 = vmatpush2.bf16.msra.mxu0 %v1836
    %4304 = vmatprep.subr.bf16.mxu0 %v1833
    %4305 = vmatpush2.bf16.msra.mxu0 %v1832
    %4306 = vmatprep.subr.bf16.mxu0 %v1829
    %4307 = vmatpush2.bf16.msra.mxu0 %v1828
    %4308 = vmatprep.subr.bf16.mxu0 %v1825
    %4309 = vmatpush2.bf16.msra.mxu0 %v1824
    %4310 = vmatprep.subr.bf16.mxu0 %v1821
    %4311 = vmatpush2.bf16.msra.mxu0 %v1820
    %4312 = vmatprep.subr.bf16.mxu0 %v1817
    %4313 = vmatpush2.bf16.msra.mxu0 %v1816
    %4314 = vmatprep.subr.bf16.mxu0 %v1813
    %4315 = vmatpush2.bf16.msra.mxu0 %v1812
    %4316 = vmatprep.subr.bf16.mxu0 %v1809
    %4317 = vmatpush2.bf16.msra.mxu0 %v1808
    %4318 = vmatprep.mubr.bf16.mxu0 %v4244
    %4319 = vmatmul.mubr.bf16.gmra.mxu0 %v4243
    %v4320 = vpop.f32.mrf.mxu0
    %v4321 = vadd.f32 0.0, %v4320
    %v4322 = vpop.f32.mrf.mxu0
    %v4323 = vadd.f32 0.0, %v4322
    %v4324 = vpop.f32.mrf.mxu0
    %v4325 = vpop.f32.mrf.mxu0
    %4326 = vdwg.mxu0
    %v4327 = vadd.f32 %v4237, %v4280
    %v4328 = vadd.f32 %v4238, %v4282
    %v4329 = vadd.f32 %v4239, %v4321
    %v4330 = vadd.f32 %v4240, %v4323
    %v4331 = vxor.u32 %v4327, 2147483648
    %v4332 = vmul.f32 %v4331, 1.442695
    %v4333 = vpow.pop %v4332
    %v4334 = vadd.f32 %v4333, 1.0
    %v4335 = vrcp.pop %v4334
    %v4336 = vmul.f32 1.0, %v4335
    %v4337 = vxor.u32 %v4328, 2147483648
    %v4338 = vmul.f32 %v4337, 1.442695
    %v4339 = vpow.pop %v4338
    %v4340 = vadd.f32 %v4339, 1.0
    %v4341 = vrcp.pop %v4340
    %v4342 = vmul.f32 1.0, %v4341
    %v4343 = vtanh.pop %v4329
    %v4344 = vxor.u32 %v4330, 2147483648
    %v4345 = vmul.f32 %v4344, 1.442695
    %v4346 = vpow.pop %v4345
    %v4347 = vadd.f32 %v4346, 1.0
    %v4348 = vrcp.pop %v4347
    %v4349 = vmul.f32 1.0, %v4348
    %v4350 = vmul.f32 %v4342, %v4199
    %v4351 = vmul.f32 %v4336, %v4343
    %v4352 = vadd.f32 %v4350, %v4351
    %v4353 = vtanh.pop %v4352
    %v4354 = vmul.f32 %v4349, %v4353
    %4355 = vset.pattern.permute.xlu0 15
    %4356 = vperm.xlu0 %4355, %v1483
    %v4357 = vpop.permute.xlu0 %4356
    %v4359 = vmul.f32 %v4357, %v4354
    %v4360 = vadd.f32 %v4204, %v4359
    %v4361 = vcvt.s32.f32 %v1464
    %v4362 = vmax.f32 %v4361, 1.0
    %v4363 = vrcp.pop %v4362
    %v4364 = vmul.f32 1.0, %v4363
    %v4366 = vrot.slane %v4360, 2
    %4369 = vset.pattern.permute.xlu0 0
    %4370 = vperm.xlu0 %4369, %v4364
    %v4371 = vpop.permute.xlu0 %4370
    %v4373 = vmul.f32 %v4360, %v4371
    %v4374 = vmul.f32 %v4366, %v4371
    %v4375 = vpack.c.bf16 %v4373, %v4373
    %v4376 = vpack.c.bf16 %v4374, %v4374
    %v4377 = vld [vmem:[%s11] sm:$0xf]
    %v4378 = vld [vmem:[%s11 + $0x4] sm:$0xf]
    %v4379 = vld [vmem:[%s11 + $0x8] sm:$0xf]
    %v4380 = vld [vmem:[%s11 + $0xc] sm:$0xf]
    %v4381 = vld [vmem:[%s11 + $0x10] sm:$0xf]
    %v4382 = vld [vmem:[%s11 + $0x14] sm:$0xf]
    %v4383 = vld [vmem:[%s11 + $0x18] sm:$0xf]
    %v4384 = vld [vmem:[%s11 + $0x1c] sm:$0xf]
    %v4385 = vld [vmem:[%s11 + $0x20] sm:$0xf]
    %v4386 = vld [vmem:[%s11 + $0x24] sm:$0xf]
    %v4387 = vld [vmem:[%s11 + $0x28] sm:$0xf]
    %v4388 = vld [vmem:[%s11 + $0x2c] sm:$0xf]
    %v4389 = vld [vmem:[%s11 + $0x30] sm:$0xf]
    %v4390 = vld [vmem:[%s11 + $0x34] sm:$0xf]
    %v4391 = vld [vmem:[%s11 + $0x38] sm:$0xf]
    %v4392 = vld [vmem:[%s11 + $0x3c] sm:$0xf]
    %v4393 = vld [vmem:[%s11 + $0x40] sm:$0xf]
    %v4394 = vld [vmem:[%s11 + $0x44] sm:$0xf]
    %v4395 = vld [vmem:[%s11 + $0x48] sm:$0xf]
    %v4396 = vld [vmem:[%s11 + $0x4c] sm:$0xf]
    %v4397 = vld [vmem:[%s11 + $0x50] sm:$0xf]
    %v4398 = vld [vmem:[%s11 + $0x54] sm:$0xf]
    %v4399 = vld [vmem:[%s11 + $0x58] sm:$0xf]
    %v4400 = vld [vmem:[%s11 + $0x5c] sm:$0xf]
    %v4401 = vld [vmem:[%s11 + $0x60] sm:$0xf]
    %v4402 = vld [vmem:[%s11 + $0x64] sm:$0xf]
    %v4403 = vld [vmem:[%s11 + $0x68] sm:$0xf]
    %v4404 = vld [vmem:[%s11 + $0x6c] sm:$0xf]
    %v4405 = vld [vmem:[%s11 + $0x70] sm:$0xf]
    %v4406 = vld [vmem:[%s11 + $0x74] sm:$0xf]
    %v4407 = vld [vmem:[%s11 + $0x78] sm:$0xf]
    %v4408 = vld [vmem:[%s11 + $0x7c] sm:$0xf]
    %v4409 = vld [vmem:[%s12] sm:$0x1]
    %v4411 = vlaneseq
    %v4412 = vshrl.u32 %v4411, 7
    %v4413 = vsub.s32 0, %v4412
    %v4414 = vrot.slane %v4409, %v4413
    %v4448 = vunpack.c.l.b16 %v4377
    %v4449 = vunpack.c.l.b16 %v4378
    %v4450 = vunpack.c.l.b16 %v4379
    %v4451 = vunpack.c.l.b16 %v4380
    %v4452 = vunpack.c.l.b16 %v4381
    %v4453 = vunpack.c.l.b16 %v4382
    %v4454 = vunpack.c.l.b16 %v4383
    %v4455 = vunpack.c.l.b16 %v4384
    %v4456 = vunpack.c.l.b16 %v4385
    %v4457 = vunpack.c.l.b16 %v4386
    %v4458 = vunpack.c.l.b16 %v4387
    %v4459 = vunpack.c.l.b16 %v4388
    %v4460 = vunpack.c.l.b16 %v4389
    %v4461 = vunpack.c.l.b16 %v4390
    %v4462 = vunpack.c.l.b16 %v4391
    %v4463 = vunpack.c.l.b16 %v4392
    %v4464 = vunpack.c.l.b16 %v4393
    %v4465 = vunpack.c.l.b16 %v4394
    %v4466 = vunpack.c.l.b16 %v4395
    %v4467 = vunpack.c.l.b16 %v4396
    %v4468 = vunpack.c.l.b16 %v4397
    %v4469 = vunpack.c.l.b16 %v4398
    %v4470 = vunpack.c.l.b16 %v4399
    %v4471 = vunpack.c.l.b16 %v4400
    %v4472 = vunpack.c.l.b16 %v4401
    %v4473 = vunpack.c.l.b16 %v4402
    %v4474 = vunpack.c.l.b16 %v4403
    %v4475 = vunpack.c.l.b16 %v4404
    %v4476 = vunpack.c.l.b16 %v4405
    %v4477 = vunpack.c.l.b16 %v4406
    %v4478 = vunpack.c.l.b16 %v4407
    %v4479 = vunpack.c.l.b16 %v4408
    %v4480 = vpack.c.b16 %v4449, %v4448
    %v4481 = vpack.c.b16 %v4451, %v4450
    %v4482 = vpack.c.b16 %v4453, %v4452
    %v4483 = vpack.c.b16 %v4455, %v4454
    %v4484 = vpack.c.b16 %v4457, %v4456
    %v4485 = vpack.c.b16 %v4459, %v4458
    %v4486 = vpack.c.b16 %v4461, %v4460
    %v4487 = vpack.c.b16 %v4463, %v4462
    %v4488 = vpack.c.b16 %v4465, %v4464
    %v4489 = vpack.c.b16 %v4467, %v4466
    %v4490 = vpack.c.b16 %v4469, %v4468
    %v4491 = vpack.c.b16 %v4471, %v4470
    %v4492 = vpack.c.b16 %v4473, %v4472
    %v4493 = vpack.c.b16 %v4475, %v4474
    %v4494 = vpack.c.b16 %v4477, %v4476
    %v4495 = vpack.c.b16 %v4479, %v4478
    %4512 = vmatprep.subr.bf16.mxu0 0
    %4513 = vmatpush1.bf16.msra.mxu0 %v4487
    %4514 = vmatprep.subr.bf16.mxu0 0
    %4515 = vmatpush1.bf16.msra.mxu0 %v4486
    %4516 = vmatprep.subr.bf16.mxu0 0
    %4517 = vmatpush1.bf16.msra.mxu0 %v4485
    %4518 = vmatprep.subr.bf16.mxu0 0
    %4519 = vmatpush1.bf16.msra.mxu0 %v4484
    %4520 = vmatprep.subr.bf16.mxu0 0
    %4521 = vmatpush1.bf16.msra.mxu0 %v4483
    %4522 = vmatprep.subr.bf16.mxu0 0
    %4523 = vmatpush1.bf16.msra.mxu0 %v4482
    %4524 = vmatprep.subr.bf16.mxu0 0
    %4525 = vmatpush1.bf16.msra.mxu0 %v4481
    %4526 = vmatprep.subr.bf16.mxu0 0
    %4527 = vmatpush1.bf16.msra.mxu0 %v4480
    %4528 = vmatprep.subr.bf16.mxu0 0
    %4529 = vmatpush2.bf16.msra.mxu0 %v4495
    %4530 = vmatprep.subr.bf16.mxu0 0
    %4531 = vmatpush2.bf16.msra.mxu0 %v4494
    %4532 = vmatprep.subr.bf16.mxu0 0
    %4533 = vmatpush2.bf16.msra.mxu0 %v4493
    %4534 = vmatprep.subr.bf16.mxu0 0
    %4535 = vmatpush2.bf16.msra.mxu0 %v4492
    %4536 = vmatprep.subr.bf16.mxu0 0
    %4537 = vmatpush2.bf16.msra.mxu0 %v4491
    %4538 = vmatprep.subr.bf16.mxu0 0
    %4539 = vmatpush2.bf16.msra.mxu0 %v4490
    %4540 = vmatprep.subr.bf16.mxu0 0
    %4541 = vmatpush2.bf16.msra.mxu0 %v4489
    %4542 = vmatprep.subr.bf16.mxu0 0
    %4543 = vmatpush2.bf16.msra.mxu0 %v4488
    %4544 = vmatprep.mubr.bf16.mxu0 %v4376
    %4545 = vmatmul.mubr.bf16.gmra.mxu0 %v4375
    %v4546 = vpop.f32.mrf.mxu0
    %v4547 = vadd.f32 %v4414, %v4546
    %v4548 = vpop.f32.mrf.mxu0
    %v4549 = vpop.f32.mrf.mxu0
    %v4550 = vpop.f32.mrf.mxu0
    %4551 = vdwg.mxu0
    %vm4552 = vcmask 58368
    %4553 = vst.msk [vmem:[#allocation13] sm:$0x3] %vm4552, %v4547
    // Predicated region
    $region74: #{tpu_custom_call.1} parent=1 // pred_check
      _
    $region75: #{tpu_custom_call.1} parent=1 // pred_check_branch
      %4555 = sbr.rel (0) target = $region77
    $region76: #{tpu_custom_call.1} parent=1 // pred_region
      %s4557 = ssub.s32 32, 32
      %4558 = vsyncadd [#allocation6], %s4557
      %s4560 = sshll.u32 [#allocation13], 4
      %s4561 = int_to_ptr.vmem [resolvable:$true] %s4560
      %4563 = dma.vmem_to_hbm [thread:$0]  %s4561, 32, %s13, [#allocation6]
    $region77: #{tpu_custom_call.1} parent=1 // pred_fallthru
      _
    // Predicated region
    $region78: #{tpu_custom_call.1} parent=1 // pred_check
      _
    $region79: #{tpu_custom_call.1} parent=1 // pred_check_branch
      %4565 = sbr.rel (0) target = $region81
    $region80: #{tpu_custom_call.1} parent=1 // pred_region
      %4566 = dma.done [#allocation6], 32
    $region81: #{tpu_custom_call.1} parent=1 // pred_fallthru
      _
    %4567 = vsyncpa [#allocation5], 1
    %4568 = vsyncpa [#allocation8], 1
    %4569 = vsyncpa [#allocation11], 1
    %4570 = vsyncpa [#allocation6], 1

</llo_original>
